<compile_context>
chip_gen: v7x
topology: tpu7x:2x2x1
jax: 0.10.0
libtpu: 0.0.40
codegen_flags: <defaults>
</compile_context>

<pallas_src>
import math

import jax
import jax.numpy as jnp
from jax.experimental import pallas as pl
from jax.experimental.pallas import tpu as pltpu

PATCH = 8            # stand-in backbone patch size (56/8 = 7 -> 49 positions)
EMB_DIM = 2048       # hard-coded by StudentNet's .view(B, 2048, 49)
PROJ_DIM = 512
NUM_CLASSES = 2
LN_EPS = 1e-5
_INV_SQRT2 = 1.0 / math.sqrt(2.0)


def _round_up(x, m):
    return ((x + m - 1) // m) * m


# ----------------------------- fused Pallas kernel --------------------------

def _fused_student_kernel(patches_ref, w1_ref, b1_ref, w2_ref, b2_ref,
                          ln_g_ref, ln_b_ref, avg_ref, fc_w_ref, fc_b_ref,
                          proj_ref, logit_ref):
    """(backbone-standin . projection) matmul + GELU + fc + residual + LN
    + token-mean + classifier, all in one grid step (everything resident)."""
    # Fused (backbone stand-in o projection.Linear): one bf16 MXU matmul.
    projected = (jnp.dot(patches_ref[...], w1_ref[...],
                         preferred_element_type=jnp.float32)
                 + b1_ref[...])                                    # (Mp, 512) f32

    # nn.GELU() default == exact erf-based GELU.
    h = 0.5 * projected * (1.0 + jax.lax.erf(projected * _INV_SQRT2))

    # projection_head.fc(512 -> 512)
    y = (jnp.dot(h.astype(jnp.bfloat16), w2_ref[...],
                 preferred_element_type=jnp.float32)
         + b2_ref[...])

    # nn.Dropout(0.1): identity (inference / deterministic semantics)
    r = y + projected

    # LayerNorm with single-pass stats: var = E[x^2] - mu^2.
    mu = jnp.mean(r, axis=-1, keepdims=True)
    ms = jnp.mean(r * r, axis=-1, keepdims=True)
    xhat = (r - mu) * jax.lax.rsqrt(ms - mu * mu + LN_EPS)
    proj = xhat * ln_g_ref[...] + ln_b_ref[...]                    # (Mp, 512) f32
    proj_ref[...] = proj

    # torch.mean over the 49 positions of each batch item (padded rows have
    # zero weight in avg), then the final classifier Linear.  Tiny matmuls:
    # run with bf16 inputs + f32 accumulate to avoid multi-pass f32 MXU.
    m = jnp.dot(avg_ref[...], proj.astype(jnp.bfloat16),
                preferred_element_type=jnp.float32)                # (B, 512) f32
    logits = (jnp.dot(m.astype(jnp.bfloat16), fc_w_ref[...],
                      preferred_element_type=jnp.float32)
              + fc_b_ref[...])                                     # (B, C) f32
    logit_ref[...] = logits[None]                                  # (1, B, C)


def _fused_call(n_pad, feat, batch, num_classes):
    grid_spec = pltpu.PrefetchScalarGridSpec(
        num_scalar_prefetch=0,
        grid=(1,),                                                  # single step
        in_specs=[
            pl.BlockSpec((n_pad, feat), lambda i: (0, 0)),             # patches bf16
            pl.BlockSpec((feat, PROJ_DIM), lambda i: (0, 0)),          # fused W1 bf16
            pl.BlockSpec((1, PROJ_DIM), lambda i: (0, 0)),             # fused b1 f32
            pl.BlockSpec((PROJ_DIM, PROJ_DIM), lambda i: (0, 0)),      # p_w2  bf16
            pl.BlockSpec((1, PROJ_DIM), lambda i: (0, 0)),             # p_b2  f32
            pl.BlockSpec((1, PROJ_DIM), lambda i: (0, 0)),             # ln_g
            pl.BlockSpec((1, PROJ_DIM), lambda i: (0, 0)),             # ln_b
            pl.BlockSpec((batch, n_pad), lambda i: (0, 0)),            # avg   bf16
            pl.BlockSpec((PROJ_DIM, num_classes), lambda i: (0, 0)),   # fc_w  bf16
            pl.BlockSpec((1, num_classes), lambda i: (0, 0)),          # fc_b  f32
        ],
        out_specs=[
            pl.BlockSpec((n_pad, PROJ_DIM), lambda i: (0, 0)),             # proj
            pl.BlockSpec((1, batch, num_classes), lambda i: (0, 0, 0)),    # logits
        ],
    )
    return pl.pallas_call(
        _fused_student_kernel,
        out_shape=(jax.ShapeDtypeStruct((n_pad, PROJ_DIM), jnp.float32),
                   jax.ShapeDtypeStruct((1, batch, num_classes), jnp.float32)),
        grid_spec=grid_spec,
        compiler_params=pltpu.CompilerParams(
            dimension_semantics=("arbitrary",)),
    )


# --------------------------- parameter construction ------------------------

def _linear_params(key, fan_in, fan_out):
    # PyTorch nn.Linear default init: U(-1/sqrt(fan_in), 1/sqrt(fan_in))
    kw, kb = jax.random.split(key)
    bound = 1.0 / math.sqrt(fan_in)
    w = jax.random.uniform(kw, (fan_in, fan_out), jnp.float32, -bound, bound)
    b = jax.random.uniform(kb, (1, fan_out), jnp.float32, -bound, bound)
    return w, b


def init_params(key, num_classes=NUM_CLASSES):
    """Raw (f32) parameters, PyTorch-style init."""
    k0, k1, k2, k3 = jax.random.split(key, 4)
    bb_w, bb_b = _linear_params(k0, 3 * PATCH * PATCH, EMB_DIM)
    p_w1, p_b1 = _linear_params(k1, EMB_DIM, PROJ_DIM)
    p_w2, p_b2 = _linear_params(k2, PROJ_DIM, PROJ_DIM)
    fc_w, fc_b = _linear_params(k3, PROJ_DIM, num_classes)
    return dict(
        bb_w=bb_w, bb_b=bb_b,
        p_w1=p_w1, p_b1=p_b1, p_w2=p_w2, p_b2=p_b2,
        ln_g=jnp.ones((1, PROJ_DIM), jnp.float32),   # LayerNorm weight
        ln_b=jnp.zeros((1, PROJ_DIM), jnp.float32),  # LayerNorm bias
        fc_w=fc_w, fc_b=fc_b,
    )


def fuse_params(params):
    """One-time host-side fold of the backbone-standin linear into
    projection.Linear (no nonlinearity between them; the 2048-d embedding is
    never emitted), plus bf16 casts for the MXU operands."""
    w_fused = params["bb_w"] @ params["p_w1"]                       # (192, 512) f32
    b_fused = params["bb_b"] @ params["p_w1"] + params["p_b1"]      # (1, 512)  f32
    return dict(
        w1=w_fused.astype(jnp.bfloat16),
        b1=b_fused,
        w2=params["p_w2"].astype(jnp.bfloat16),
        b2=params["p_b2"],
        ln_g=params["ln_g"], ln_b=params["ln_b"],
        fc_w=params["fc_w"].astype(jnp.bfloat16),
        fc_b=params["fc_b"],
    )


# -------------------------------- forward ----------------------------------

@jax.jit
def knowledge_distiller_forward(kparams, image, label=None):
    """Returns (student_img_emb (B,512,49), prediction (1,B,num_classes))."""
    del label  # only consumed by the (unavailable) teacher network
    B, C, H, W = image.shape
    gh, gw = H // PATCH, W // PATCH                  # 7 x 7 -> 49 positions
    n_tok = B * gh * gw
    feat = C * PATCH * PATCH
    n_pad = _round_up(n_tok, 128)                    # 98 -> 128 (MXU/sublane aligned)

    # TODO(synk): the 152-layer torchvision ResNet backbone (random weights,
    # pretrained=False) is not reproduced; a patchify + linear stand-in
    # (folded into the projection weights) yields the required
    # (B,2048,7,7)->(B,49,2048)->(B,49,512) path inside the fused kernel.
    patches = image.reshape(B, C, gh, PATCH, gw, PATCH)
    patches = patches.transpose(0, 2, 4, 1, 3, 5).reshape(n_tok, feat)
    patches = jnp.pad(patches, ((0, n_pad - n_tok), (0, 0))).astype(jnp.bfloat16)

    # Averaging matrix for torch.mean over the 49 positions of each batch item
    # (padded rows get zero weight).
    idx = jnp.arange(n_pad, dtype=jnp.int32)
    tok_batch = jnp.where(idx < n_tok, idx // (gh * gw), -1)
    avg = (tok_batch[None, :] == jnp.arange(B, dtype=jnp.int32)[:, None])
    avg = (avg.astype(jnp.float32) / float(gh * gw)).astype(jnp.bfloat16)

    num_classes = kparams["fc_w"].shape[1]
    proj, prediction = _fused_call(n_pad, feat, B, num_classes)(
        patches, kparams["w1"], kparams["b1"], kparams["w2"], kparams["b2"],
        kparams["ln_g"], kparams["ln_b"], avg, kparams["fc_w"], kparams["fc_b"])

    # StudentNet returns (49,B,512); Knowledge_distiller .permute(1,2,0) -> (B,512,49).
    # Kept in the wrapper: a lane-dim-49 kernel output layout would be worse.
    proj3 = proj[:n_tok].reshape(B, gh * gw, PROJ_DIM)
    student_img_emb = proj3.transpose(0, 2, 1)

    # TODO(synk): teacher DOGS network is undefined / checkpoint-only; the
    # teacher_img_emb output cannot be reproduced in-script.
    return student_img_emb, prediction


# ------------------------------ pure-JAX reference --------------------------

def _reference_forward(params, image):
    B, C, H, W = image.shape
    gh, gw = H // PATCH, W // PATCH
    n_tok = B * gh * gw
    patches = image.reshape(B, C, gh, PATCH, gw, PATCH)
    patches = patches.transpose(0, 2, 4, 1, 3, 5).reshape(n_tok, C * PATCH * PATCH)
    emb = patches @ params["bb_w"] + params["bb_b"]
    projected = emb @ params["p_w1"] + params["p_b1"]
    h = 0.5 * projected * (1.0 + jax.lax.erf(projected * _INV_SQRT2))
    y = h @ params["p_w2"] + params["p_b2"]
    r = y + projected
    mu = r.mean(-1, keepdims=True)
    var = ((r - mu) ** 2).mean(-1, keepdims=True)
    proj = (r - mu) * jax.lax.rsqrt(var + LN_EPS) * params["ln_g"] + params["ln_b"]
    proj3 = proj.reshape(B, gh * gw, PROJ_DIM)
    m = proj3.mean(axis=1)
    logits = (m @ params["fc_w"] + params["fc_b"])[None]
    return proj3.transpose(0, 2, 1), logits


# --------------------------------- driver ----------------------------------

if __name__ == "__main__":
    key = jax.random.PRNGKey(0)
    k_img, k_lbl, k_par = jax.random.split(key, 3)

    params = init_params(k_par, num_classes=NUM_CLASSES)
    kparams = fuse_params(params)      # one-time weight prep, not per forward call
    image = jax.random.normal(k_img, (2, 3, 56, 56), jnp.float32)   # NCHW
    label = jax.random.randint(k_lbl, (2,), 0, NUM_CLASSES)

    student_img_emb, prediction = knowledge_distiller_forward(kparams, image, label)
    jax.block_until_ready((student_img_emb, prediction))

    assert student_img_emb.shape == (2, PROJ_DIM, 49)
    assert prediction.shape == (1, 2, NUM_CLASSES)

    ref_emb, ref_pred = _reference_forward(params, image)
    assert jnp.allclose(student_img_emb, ref_emb, atol=0.25, rtol=0.05), (
        "student embedding mismatch vs reference")
    assert jnp.allclose(prediction, ref_pred, atol=0.05, rtol=0.05), (
        "prediction mismatch vs reference")

    print("KERNEL_OK")
</pallas_src>

<mosaic_0001>
module attributes {stable_mosaic.version = 11 : i64} {
  func.func @_fused_student_kernel(%arg0: i32, %arg1: memref<128x192xbf16, #tpu.memory_space<vmem>>, %arg2: memref<192x512xbf16, #tpu.memory_space<vmem>>, %arg3: memref<1x512xf32, #tpu.memory_space<vmem>>, %arg4: memref<512x512xbf16, #tpu.memory_space<vmem>>, %arg5: memref<1x512xf32, #tpu.memory_space<vmem>>, %arg6: memref<1x512xf32, #tpu.memory_space<vmem>>, %arg7: memref<1x512xf32, #tpu.memory_space<vmem>>, %arg8: memref<2x128xbf16, #tpu.memory_space<vmem>>, %arg9: memref<512x2xbf16, #tpu.memory_space<vmem>>, %arg10: memref<1x2xf32, #tpu.memory_space<vmem>>, %arg11: memref<128x512xf32, #tpu.memory_space<vmem>>, %arg12: memref<1x2x2xf32, #tpu.memory_space<vmem>>) attributes {dimension_semantics = [#tpu.dimension_semantics<arbitrary>], iteration_bounds = array<i64: 1>, scalar_prefetch = 0 : i64, scratch_operands = 0 : i64, tpu.core_type = #tpu.core_type<tc>, window_params = [{pipeline_mode = #tpu.pipeline_mode<synchronous>, transform_indices = @transform_0, window_bounds = array<i64: 128, 192>}, {pipeline_mode = #tpu.pipeline_mode<synchronous>, transform_indices = @transform_1, window_bounds = array<i64: 192, 512>}, {pipeline_mode = #tpu.pipeline_mode<synchronous>, transform_indices = @transform_2, window_bounds = array<i64: 1, 512>}, {pipeline_mode = #tpu.pipeline_mode<synchronous>, transform_indices = @transform_3, window_bounds = array<i64: 512, 512>}, {pipeline_mode = #tpu.pipeline_mode<synchronous>, transform_indices = @transform_4, window_bounds = array<i64: 1, 512>}, {pipeline_mode = #tpu.pipeline_mode<synchronous>, transform_indices = @transform_5, window_bounds = array<i64: 1, 512>}, {pipeline_mode = #tpu.pipeline_mode<synchronous>, transform_indices = @transform_6, window_bounds = array<i64: 1, 512>}, {pipeline_mode = #tpu.pipeline_mode<synchronous>, transform_indices = @transform_7, window_bounds = array<i64: 2, 128>}, {pipeline_mode = #tpu.pipeline_mode<synchronous>, transform_indices = @transform_8, window_bounds = array<i64: 512, 2>}, {pipeline_mode = #tpu.pipeline_mode<synchronous>, transform_indices = @transform_9, window_bounds = array<i64: 1, 2>}, {pipeline_mode = #tpu.pipeline_mode<synchronous>, transform_indices = @transform_10, window_bounds = array<i64: 128, 512>}, {pipeline_mode = #tpu.pipeline_mode<synchronous>, transform_indices = @transform_11, window_bounds = array<i64: 1, 2, 2>}]} {
    %c0 = arith.constant 0 : index
    %c0_0 = arith.constant 0 : index
    %0 = vector.load %arg1[%c0, %c0_0] : memref<128x192xbf16, #tpu.memory_space<vmem>>, vector<128x192xbf16>
    %c0_1 = arith.constant 0 : index
    %c0_2 = arith.constant 0 : index
    %1 = vector.load %arg2[%c0_1, %c0_2] : memref<192x512xbf16, #tpu.memory_space<vmem>>, vector<192x512xbf16>
    %cst = arith.constant dense<0.000000e+00> : vector<128x512xf32>
    %2 = tpu.matmul %0, %1, %cst {dimension_numbers = #tpu.dot_dimension_numbers<[1], [0], [0], [1], [0, 0, 1, 1], [], []>} : vector<128x192xbf16>, vector<192x512xbf16>, vector<128x512xf32> -> vector<128x512xf32>
    %c0_3 = arith.constant 0 : index
    %c0_4 = arith.constant 0 : index
    %3 = vector.load %arg3[%c0_3, %c0_4] : memref<1x512xf32, #tpu.memory_space<vmem>>, vector<1x512xf32>
    %4 = vector.broadcast %3 : vector<1x512xf32> to vector<128x512xf32>
    %5 = arith.addf %2, %4 : vector<128x512xf32>
    %cst_5 = arith.constant 5.000000e-01 : f32
    %6 = vector.broadcast %cst_5 : f32 to vector<128x512xf32>
    %7 = arith.mulf %6, %5 : vector<128x512xf32>
    %cst_6 = arith.constant 0.707106769 : f32
    %8 = vector.broadcast %cst_6 : f32 to vector<128x512xf32>
    %9 = arith.mulf %5, %8 : vector<128x512xf32>
    %10 = math.erf %9 : vector<128x512xf32>
    %cst_7 = arith.constant 1.000000e+00 : f32
    %11 = vector.broadcast %cst_7 : f32 to vector<128x512xf32>
    %12 = arith.addf %11, %10 : vector<128x512xf32>
    %13 = arith.mulf %7, %12 : vector<128x512xf32>
    %14 = arith.truncf %13 : vector<128x512xf32> to vector<128x512xbf16>
    %c0_8 = arith.constant 0 : index
    %c0_9 = arith.constant 0 : index
    %15 = vector.load %arg4[%c0_8, %c0_9] : memref<512x512xbf16, #tpu.memory_space<vmem>>, vector<512x512xbf16>
    %cst_10 = arith.constant dense<0.000000e+00> : vector<128x512xf32>
    %16 = tpu.matmul %14, %15, %cst_10 {dimension_numbers = #tpu.dot_dimension_numbers<[1], [0], [0], [1], [0, 0, 1, 1], [], []>} : vector<128x512xbf16>, vector<512x512xbf16>, vector<128x512xf32> -> vector<128x512xf32>
    %c0_11 = arith.constant 0 : index
    %c0_12 = arith.constant 0 : index
    %17 = vector.load %arg5[%c0_11, %c0_12] : memref<1x512xf32, #tpu.memory_space<vmem>>, vector<1x512xf32>
    %18 = vector.broadcast %17 : vector<1x512xf32> to vector<128x512xf32>
    %19 = arith.addf %16, %18 : vector<128x512xf32>
    %20 = arith.addf %19, %5 : vector<128x512xf32>
    %cst_13 = arith.constant dense<0.000000e+00> : vector<128xf32>
    %21 = vector.multi_reduction <add>, %20, %cst_13 [1] : vector<128x512xf32> to vector<128xf32>
    %22 = vector.shape_cast %21 : vector<128xf32> to vector<128x1xf32>
    %cst_14 = arith.constant 5.120000e+02 : f32
    %23 = vector.broadcast %cst_14 : f32 to vector<128x1xf32>
    %24 = arith.divf %22, %23 : vector<128x1xf32>
    %25 = arith.mulf %20, %20 : vector<128x512xf32>
    %cst_15 = arith.constant dense<0.000000e+00> : vector<128xf32>
    %26 = vector.multi_reduction <add>, %25, %cst_15 [1] : vector<128x512xf32> to vector<128xf32>
    %27 = vector.shape_cast %26 : vector<128xf32> to vector<128x1xf32>
    %cst_16 = arith.constant 5.120000e+02 : f32
    %28 = vector.broadcast %cst_16 : f32 to vector<128x1xf32>
    %29 = arith.divf %27, %28 : vector<128x1xf32>
    %30 = vector.broadcast %24 : vector<128x1xf32> to vector<128x512xf32>
    %31 = arith.subf %20, %30 : vector<128x512xf32>
    %32 = arith.mulf %24, %24 : vector<128x1xf32>
    %33 = arith.subf %29, %32 : vector<128x1xf32>
    %cst_17 = arith.constant 9.99999974E-6 : f32
    %34 = vector.broadcast %cst_17 : f32 to vector<128x1xf32>
    %35 = arith.addf %33, %34 : vector<128x1xf32>
    %36 = math.rsqrt %35 : vector<128x1xf32>
    %37 = vector.broadcast %36 : vector<128x1xf32> to vector<128x512xf32>
    %38 = arith.mulf %31, %37 : vector<128x512xf32>
    %c0_18 = arith.constant 0 : index
    %c0_19 = arith.constant 0 : index
    %39 = vector.load %arg6[%c0_18, %c0_19] : memref<1x512xf32, #tpu.memory_space<vmem>>, vector<1x512xf32>
    %40 = vector.broadcast %39 : vector<1x512xf32> to vector<128x512xf32>
    %41 = arith.mulf %38, %40 : vector<128x512xf32>
    %c0_20 = arith.constant 0 : index
    %c0_21 = arith.constant 0 : index
    %42 = vector.load %arg7[%c0_20, %c0_21] : memref<1x512xf32, #tpu.memory_space<vmem>>, vector<1x512xf32>
    %43 = vector.broadcast %42 : vector<1x512xf32> to vector<128x512xf32>
    %44 = arith.addf %41, %43 : vector<128x512xf32>
    %c0_22 = arith.constant 0 : index
    %c0_23 = arith.constant 0 : index
    %45 = vector.load %arg11[%c0_22, %c0_23] : memref<128x512xf32, #tpu.memory_space<vmem>>, vector<128x512xf32>
    tpu.vector_store %arg11[%c0_22, %c0_23], %44 {strides = array<i32>} : memref<128x512xf32, #tpu.memory_space<vmem>>, vector<128x512xf32>,
    %c0_24 = arith.constant 0 : index
    %c0_25 = arith.constant 0 : index
    %46 = vector.load %arg8[%c0_24, %c0_25] : memref<2x128xbf16, #tpu.memory_space<vmem>>, vector<2x128xbf16>
    %47 = arith.truncf %44 : vector<128x512xf32> to vector<128x512xbf16>
    %cst_26 = arith.constant dense<0.000000e+00> : vector<2x512xf32>
    %48 = tpu.matmul %46, %47, %cst_26 {dimension_numbers = #tpu.dot_dimension_numbers<[1], [0], [0], [1], [0, 0, 1, 1], [], []>} : vector<2x128xbf16>, vector<128x512xbf16>, vector<2x512xf32> -> vector<2x512xf32>
    %49 = arith.truncf %48 : vector<2x512xf32> to vector<2x512xbf16>
    %c0_27 = arith.constant 0 : index
    %c0_28 = arith.constant 0 : index
    %50 = vector.load %arg9[%c0_27, %c0_28] : memref<512x2xbf16, #tpu.memory_space<vmem>>, vector<512x2xbf16>
    %cst_29 = arith.constant dense<0.000000e+00> : vector<2x2xf32>
    %51 = tpu.matmul %49, %50, %cst_29 {dimension_numbers = #tpu.dot_dimension_numbers<[1], [0], [0], [1], [0, 0, 1, 1], [], []>} : vector<2x512xbf16>, vector<512x2xbf16>, vector<2x2xf32> -> vector<2x2xf32>
    %c0_30 = arith.constant 0 : index
    %c0_31 = arith.constant 0 : index
    %52 = vector.load %arg10[%c0_30, %c0_31] : memref<1x2xf32, #tpu.memory_space<vmem>>, vector<1x2xf32>
    %53 = vector.broadcast %52 : vector<1x2xf32> to vector<2x2xf32>
    %54 = arith.addf %51, %53 : vector<2x2xf32>
    %55 = vector.shape_cast %54 : vector<2x2xf32> to vector<1x2x2xf32>
    %c0_32 = arith.constant 0 : index
    %c0_33 = arith.constant 0 : index
    %c0_34 = arith.constant 0 : index
    %56 = vector.load %arg12[%c0_32, %c0_33, %c0_34] : memref<1x2x2xf32, #tpu.memory_space<vmem>>, vector<1x2x2xf32>
    tpu.vector_store %arg12[%c0_32, %c0_33, %c0_34], %55 {strides = array<i32>} : memref<1x2x2xf32, #tpu.memory_space<vmem>>, vector<1x2x2xf32>,
    return
  }
  func.func @transform_0(%arg0: i32) -> (i32, i32) {
    %c0_i32 = arith.constant 0 : i32
    %c0_i32_0 = arith.constant 0 : i32
    %c0_i32_1 = arith.constant 0 : i32
    return %c0_i32, %c0_i32_0 : i32, i32
  }
  func.func @transform_1(%arg0: i32) -> (i32, i32) {
    %c0_i32 = arith.constant 0 : i32
    %c0_i32_0 = arith.constant 0 : i32
    %c0_i32_1 = arith.constant 0 : i32
    return %c0_i32, %c0_i32_0 : i32, i32
  }
  func.func @transform_2(%arg0: i32) -> (i32, i32) {
    %c0_i32 = arith.constant 0 : i32
    %c0_i32_0 = arith.constant 0 : i32
    %c0_i32_1 = arith.constant 0 : i32
    return %c0_i32, %c0_i32_0 : i32, i32
  }
  func.func @transform_3(%arg0: i32) -> (i32, i32) {
    %c0_i32 = arith.constant 0 : i32
    %c0_i32_0 = arith.constant 0 : i32
    %c0_i32_1 = arith.constant 0 : i32
    return %c0_i32, %c0_i32_0 : i32, i32
  }
  func.func @transform_4(%arg0: i32) -> (i32, i32) {
    %c0_i32 = arith.constant 0 : i32
    %c0_i32_0 = arith.constant 0 : i32
    %c0_i32_1 = arith.constant 0 : i32
    return %c0_i32, %c0_i32_0 : i32, i32
  }
  func.func @transform_5(%arg0: i32) -> (i32, i32) {
    %c0_i32 = arith.constant 0 : i32
    %c0_i32_0 = arith.constant 0 : i32
    %c0_i32_1 = arith.constant 0 : i32
    return %c0_i32, %c0_i32_0 : i32, i32
  }
  func.func @transform_6(%arg0: i32) -> (i32, i32) {
    %c0_i32 = arith.constant 0 : i32
    %c0_i32_0 = arith.constant 0 : i32
    %c0_i32_1 = arith.constant 0 : i32
    return %c0_i32, %c0_i32_0 : i32, i32
  }
  func.func @transform_7(%arg0: i32) -> (i32, i32) {
    %c0_i32 = arith.constant 0 : i32
    %c0_i32_0 = arith.constant 0 : i32
    %c0_i32_1 = arith.constant 0 : i32
    return %c0_i32, %c0_i32_0 : i32, i32
  }
  func.func @transform_8(%arg0: i32) -> (i32, i32) {
    %c0_i32 = arith.constant 0 : i32
    %c0_i32_0 = arith.constant 0 : i32
    %c0_i32_1 = arith.constant 0 : i32
    return %c0_i32, %c0_i32_0 : i32, i32
  }
  func.func @transform_9(%arg0: i32) -> (i32, i32) {
    %c0_i32 = arith.constant 0 : i32
    %c0_i32_0 = arith.constant 0 : i32
    %c0_i32_1 = arith.constant 0 : i32
    return %c0_i32, %c0_i32_0 : i32, i32
  }
  func.func @transform_10(%arg0: i32) -> (i32, i32) {
    %c0_i32 = arith.constant 0 : i32
    %c0_i32_0 = arith.constant 0 : i32
    %c0_i32_1 = arith.constant 0 : i32
    return %c0_i32, %c0_i32_0 : i32, i32
  }
  func.func @transform_11(%arg0: i32) -> (i32, i32, i32) {
    %c0_i32 = arith.constant 0 : i32
    %c0_i32_0 = arith.constant 0 : i32
    %c0_i32_1 = arith.constant 0 : i32
    %c0_i32_2 = arith.constant 0 : i32
    return %c0_i32, %c0_i32_0, %c0_i32_1 : i32, i32, i32
  }
}

</mosaic_0001>

<llo_original>
// kernel: knowledge_distiller_forward.1
$region0: #{knowledge_distiller_forward.1}
  #allocation0 [shape = 'u32[]', space=smem, size = 0x4, offset = 0x4, fixed_abs, tag = 'smem constant byte address 0x4 - core index']
  #allocation1 [shape = 'u32[144,128]{1,0:T(1,128)}', space=vmem, size = 0x12000, scoped, tag = 'internal scratch']
  %s0 = inlined_call_operand.vmem [shape: bf16[128,192], index: 0, kind: input, shape index: {}]
  %s1 = inlined_call_operand.vmem [shape: bf16[192,512], index: 1, kind: input, shape index: {}]
  %s2 = inlined_call_operand.vmem [shape: f32[1,512], index: 2, kind: input, shape index: {}]
  %s3 = inlined_call_operand.vmem [shape: bf16[512,512], index: 3, kind: input, shape index: {}]
  %s4 = inlined_call_operand.vmem [shape: f32[1,512], index: 4, kind: input, shape index: {}]
  %s5 = inlined_call_operand.vmem [shape: f32[1,512], index: 5, kind: input, shape index: {}]
  %s6 = inlined_call_operand.vmem [shape: f32[1,512], index: 6, kind: input, shape index: {}]
  %s7 = inlined_call_operand.vmem [shape: bf16[2,128], index: 7, kind: input, shape index: {}]
  %s8 = inlined_call_operand.vmem [shape: bf16[512,2], index: 8, kind: input, shape index: {}]
  %s9 = inlined_call_operand.vmem [shape: f32[1,2], index: 9, kind: input, shape index: {}]
  %s10 = inlined_call_operand.vmem [shape: f32[128,512], index: 10, kind: output, shape index: {0}]
  %s11 = inlined_call_operand.hbm [shape: f32[1,2,2], index: 11, kind: output, shape index: {1}]
  %12 = xla_tuple %s10, %s11
  %s13 = sld [smem:[#allocation0]]
  $region58: #{knowledge_distiller_forward.1} parent=0
    _
  %s15 = ssub.s32 1, %s13
  %s16 = scalar_select 0, %s15, %s13
  $region1: #{knowledge_distiller_forward.1} parent=0
    #allocation2 [shape = 'u8[1024]{0}', space=vmem, size = 0x400, scoped, tag = 'output window, operand 1, single buffered']
    #allocation3 [shape = 's32[1]{0}', space=sflag, size = 0x4, scoped, tag = 'scoped memory for knowledge_distiller_forward.1']
    %17 = vsyncpa [#allocation3], 0
    // Predicated region
    $region2: #{knowledge_distiller_forward.1} parent=1 // pred_check
      _
    $region3: #{knowledge_distiller_forward.1} parent=1 // pred_check_branch
      %19 = sbr.rel (0) target = $region5
    $region4: #{knowledge_distiller_forward.1} parent=1 // pred_region
      _
    $region5: #{knowledge_distiller_forward.1} parent=1 // pred_fallthru
      _
    // Predicated region
    $region6: #{knowledge_distiller_forward.1} parent=1 // pred_check
      _
    $region7: #{knowledge_distiller_forward.1} parent=1 // pred_check_branch
      %21 = sbr.rel (0) target = $region9
    $region8: #{knowledge_distiller_forward.1} parent=1 // pred_region
      _
    $region9: #{knowledge_distiller_forward.1} parent=1 // pred_fallthru
      _
    // Predicated region
    $region10: #{knowledge_distiller_forward.1} parent=1 // pred_check
      _
    $region11: #{knowledge_distiller_forward.1} parent=1 // pred_check_branch
      %23 = sbr.rel (0) target = $region13
    $region12: #{knowledge_distiller_forward.1} parent=1 // pred_region
      _
    $region13: #{knowledge_distiller_forward.1} parent=1 // pred_fallthru
      _
    // Predicated region
    $region14: #{knowledge_distiller_forward.1} parent=1 // pred_check
      _
    $region15: #{knowledge_distiller_forward.1} parent=1 // pred_check_branch
      %25 = sbr.rel (0) target = $region17
    $region16: #{knowledge_distiller_forward.1} parent=1 // pred_region
      _
    $region17: #{knowledge_distiller_forward.1} parent=1 // pred_fallthru
      _
    // Predicated region
    $region18: #{knowledge_distiller_forward.1} parent=1 // pred_check
      _
    $region19: #{knowledge_distiller_forward.1} parent=1 // pred_check_branch
      %27 = sbr.rel (0) target = $region21
    $region20: #{knowledge_distiller_forward.1} parent=1 // pred_region
      _
    $region21: #{knowledge_distiller_forward.1} parent=1 // pred_fallthru
      _
    // Predicated region
    $region22: #{knowledge_distiller_forward.1} parent=1 // pred_check
      _
    $region23: #{knowledge_distiller_forward.1} parent=1 // pred_check_branch
      %29 = sbr.rel (0) target = $region25
    $region24: #{knowledge_distiller_forward.1} parent=1 // pred_region
      _
    $region25: #{knowledge_distiller_forward.1} parent=1 // pred_fallthru
      _
    // Predicated region
    $region26: #{knowledge_distiller_forward.1} parent=1 // pred_check
      _
    $region27: #{knowledge_distiller_forward.1} parent=1 // pred_check_branch
      %31 = sbr.rel (0) target = $region29
    $region28: #{knowledge_distiller_forward.1} parent=1 // pred_region
      _
    $region29: #{knowledge_distiller_forward.1} parent=1 // pred_fallthru
      _
    // Predicated region
    $region30: #{knowledge_distiller_forward.1} parent=1 // pred_check
      _
    $region31: #{knowledge_distiller_forward.1} parent=1 // pred_check_branch
      %33 = sbr.rel (0) target = $region33
    $region32: #{knowledge_distiller_forward.1} parent=1 // pred_region
      _
    $region33: #{knowledge_distiller_forward.1} parent=1 // pred_fallthru
      _
    // Predicated region
    $region34: #{knowledge_distiller_forward.1} parent=1 // pred_check
      _
    $region35: #{knowledge_distiller_forward.1} parent=1 // pred_check_branch
      %35 = sbr.rel (0) target = $region37
    $region36: #{knowledge_distiller_forward.1} parent=1 // pred_region
      _
    $region37: #{knowledge_distiller_forward.1} parent=1 // pred_fallthru
      _
    // Predicated region
    $region38: #{knowledge_distiller_forward.1} parent=1 // pred_check
      _
    $region39: #{knowledge_distiller_forward.1} parent=1 // pred_check_branch
      %37 = sbr.rel (0) target = $region41
    $region40: #{knowledge_distiller_forward.1} parent=1 // pred_region
      _
    $region41: #{knowledge_distiller_forward.1} parent=1 // pred_fallthru
      _
    %v39 = vld [vmem:[%s0] sm:$0xff]
    %v40 = vld [vmem:[%s0 + $0x8] sm:$0xff]
    %v41 = vld [vmem:[%s0 + $0x10] sm:$0xff]
    %v42 = vld [vmem:[%s0 + $0x18] sm:$0xff]
    %v43 = vld [vmem:[%s0 + $0x20] sm:$0xff]
    %v44 = vld [vmem:[%s0 + $0x28] sm:$0xff]
    %v45 = vld [vmem:[%s0 + $0x30] sm:$0xff]
    %v46 = vld [vmem:[%s0 + $0x38] sm:$0xff]
    %v47 = vld [vmem:[%s0 + $0x40] sm:$0xff]
    %v48 = vld [vmem:[%s0 + $0x48] sm:$0xff]
    %v49 = vld [vmem:[%s0 + $0x50] sm:$0xff]
    %v50 = vld [vmem:[%s0 + $0x58] sm:$0xff]
    %v51 = vld [vmem:[%s0 + $0x60] sm:$0xff]
    %v52 = vld [vmem:[%s0 + $0x68] sm:$0xff]
    %v53 = vld [vmem:[%s0 + $0x70] sm:$0xff]
    %v54 = vld [vmem:[%s0 + $0x78] sm:$0xff]
    %v55 = vld [vmem:[%s1] sm:$0xff]
    %v56 = vld [vmem:[%s1 + $0x8] sm:$0xff]
    %v57 = vld [vmem:[%s1 + $0x10] sm:$0xff]
    %v58 = vld [vmem:[%s1 + $0x18] sm:$0xff]
    %v59 = vld [vmem:[%s1 + $0x20] sm:$0xff]
    %v60 = vld [vmem:[%s1 + $0x28] sm:$0xff]
    %v61 = vld [vmem:[%s1 + $0x30] sm:$0xff]
    %v62 = vld [vmem:[%s1 + $0x38] sm:$0xff]
    %v63 = vld [vmem:[%s1 + $0x40] sm:$0xff]
    %v64 = vld [vmem:[%s1 + $0x48] sm:$0xff]
    %v65 = vld [vmem:[%s1 + $0x50] sm:$0xff]
    %v66 = vld [vmem:[%s1 + $0x58] sm:$0xff]
    %v67 = vld [vmem:[%s1 + $0x60] sm:$0xff]
    %v68 = vld [vmem:[%s1 + $0x68] sm:$0xff]
    %v69 = vld [vmem:[%s1 + $0x70] sm:$0xff]
    %v70 = vld [vmem:[%s1 + $0x78] sm:$0xff]
    %v71 = vld [vmem:[%s1 + $0x80] sm:$0xff]
    %v72 = vld [vmem:[%s1 + $0x88] sm:$0xff]
    %v73 = vld [vmem:[%s1 + $0x90] sm:$0xff]
    %v74 = vld [vmem:[%s1 + $0x98] sm:$0xff]
    %v75 = vld [vmem:[%s1 + $0xa0] sm:$0xff]
    %v76 = vld [vmem:[%s1 + $0xa8] sm:$0xff]
    %v77 = vld [vmem:[%s1 + $0xb0] sm:$0xff]
    %v78 = vld [vmem:[%s1 + $0xb8] sm:$0xff]
    %v79 = vld [vmem:[%s1 + $0xc0] sm:$0xff]
    %v80 = vld [vmem:[%s1 + $0xc8] sm:$0xff]
    %v81 = vld [vmem:[%s1 + $0xd0] sm:$0xff]
    %v82 = vld [vmem:[%s1 + $0xd8] sm:$0xff]
    %v83 = vld [vmem:[%s1 + $0xe0] sm:$0xff]
    %v84 = vld [vmem:[%s1 + $0xe8] sm:$0xff]
    %v85 = vld [vmem:[%s1 + $0xf0] sm:$0xff]
    %v86 = vld [vmem:[%s1 + $0xf8] sm:$0xff]
    %v87 = vld [vmem:[%s1 + $0x100] sm:$0xff]
    %v88 = vld [vmem:[%s1 + $0x108] sm:$0xff]
    %v89 = vld [vmem:[%s1 + $0x110] sm:$0xff]
    %v90 = vld [vmem:[%s1 + $0x118] sm:$0xff]
    %v91 = vld [vmem:[%s1 + $0x120] sm:$0xff]
    %v92 = vld [vmem:[%s1 + $0x128] sm:$0xff]
    %v93 = vld [vmem:[%s1 + $0x130] sm:$0xff]
    %v94 = vld [vmem:[%s1 + $0x138] sm:$0xff]
    %v95 = vld [vmem:[%s1 + $0x140] sm:$0xff]
    %v96 = vld [vmem:[%s1 + $0x148] sm:$0xff]
    %v97 = vld [vmem:[%s1 + $0x150] sm:$0xff]
    %v98 = vld [vmem:[%s1 + $0x158] sm:$0xff]
    %v99 = vld [vmem:[%s1 + $0x160] sm:$0xff]
    %v100 = vld [vmem:[%s1 + $0x168] sm:$0xff]
    %v101 = vld [vmem:[%s1 + $0x170] sm:$0xff]
    %v102 = vld [vmem:[%s1 + $0x178] sm:$0xff]
    %v103 = vld [vmem:[%s2] sm:$0xf]
    %v105 = vlaneseq
    %v106 = vshrl.u32 %v105, 7
    %v107 = vsub.s32 0, %v106
    %v108 = vrot.slane %v103, %v107
    %v109 = vlaneseq
    %v110 = vshrl.u32 %v109, 7
    %v111 = vsub.s32 1, %v110
    %v112 = vrot.slane %v103, %v111
    %v113 = vlaneseq
    %v114 = vshrl.u32 %v113, 7
    %v115 = vsub.s32 2, %v114
    %v116 = vrot.slane %v103, %v115
    %v117 = vlaneseq
    %v118 = vshrl.u32 %v117, 7
    %v119 = vsub.s32 3, %v118
    %v120 = vrot.slane %v103, %v119
    %v141 = vunpack.c.l.b16 %v39
    %v142 = vunpack.c.h.b16 %v39
    %v143 = vunpack.c.l.b16 %v40
    %v144 = vunpack.c.h.b16 %v40
    %v145 = vunpack.c.l.b16 %v41
    %v146 = vunpack.c.h.b16 %v41
    %v147 = vunpack.c.l.b16 %v42
    %v148 = vunpack.c.h.b16 %v42
    %v149 = vunpack.c.l.b16 %v43
    %v150 = vunpack.c.h.b16 %v43
    %v151 = vunpack.c.l.b16 %v44
    %v152 = vunpack.c.h.b16 %v44
    %v153 = vunpack.c.l.b16 %v45
    %v154 = vunpack.c.h.b16 %v45
    %v155 = vunpack.c.l.b16 %v46
    %v156 = vunpack.c.h.b16 %v46
    %v157 = vunpack.c.l.b16 %v47
    %v158 = vunpack.c.h.b16 %v47
    %v159 = vunpack.c.l.b16 %v48
    %v160 = vunpack.c.h.b16 %v48
    %v161 = vunpack.c.l.b16 %v49
    %v162 = vunpack.c.h.b16 %v49
    %v163 = vunpack.c.l.b16 %v50
    %v164 = vunpack.c.h.b16 %v50
    %v165 = vunpack.c.l.b16 %v51
    %v166 = vunpack.c.h.b16 %v51
    %v167 = vunpack.c.l.b16 %v52
    %v168 = vunpack.c.h.b16 %v52
    %v169 = vunpack.c.l.b16 %v53
    %v170 = vunpack.c.h.b16 %v53
    %v171 = vunpack.c.l.b16 %v54
    %v172 = vunpack.c.h.b16 %v54
    %v173 = vpack.c.b16 %v143, %v141
    %v174 = vpack.c.b16 %v144, %v142
    %v175 = vpack.c.b16 %v147, %v145
    %v176 = vpack.c.b16 %v148, %v146
    %v177 = vpack.c.b16 %v151, %v149
    %v178 = vpack.c.b16 %v152, %v150
    %v179 = vpack.c.b16 %v155, %v153
    %v180 = vpack.c.b16 %v156, %v154
    %v181 = vpack.c.b16 %v159, %v157
    %v182 = vpack.c.b16 %v160, %v158
    %v183 = vpack.c.b16 %v163, %v161
    %v184 = vpack.c.b16 %v164, %v162
    %v185 = vpack.c.b16 %v167, %v165
    %v186 = vpack.c.b16 %v168, %v166
    %v187 = vpack.c.b16 %v171, %v169
    %v188 = vpack.c.b16 %v172, %v170
    %v245 = vunpack.c.l.b16 %v55
    %v246 = vunpack.c.h.b16 %v55
    %v247 = vunpack.c.l.b16 %v56
    %v248 = vunpack.c.h.b16 %v56
    %v249 = vunpack.c.l.b16 %v57
    %v250 = vunpack.c.h.b16 %v57
    %v251 = vunpack.c.l.b16 %v58
    %v252 = vunpack.c.h.b16 %v58
    %v253 = vunpack.c.l.b16 %v59
    %v254 = vunpack.c.h.b16 %v59
    %v255 = vunpack.c.l.b16 %v60
    %v256 = vunpack.c.h.b16 %v60
    %v257 = vunpack.c.l.b16 %v61
    %v258 = vunpack.c.h.b16 %v61
    %v259 = vunpack.c.l.b16 %v62
    %v260 = vunpack.c.h.b16 %v62
    %v261 = vunpack.c.l.b16 %v63
    %v262 = vunpack.c.h.b16 %v63
    %v263 = vunpack.c.l.b16 %v64
    %v264 = vunpack.c.h.b16 %v64
    %v265 = vunpack.c.l.b16 %v65
    %v266 = vunpack.c.h.b16 %v65
    %v267 = vunpack.c.l.b16 %v66
    %v268 = vunpack.c.h.b16 %v66
    %v269 = vunpack.c.l.b16 %v67
    %v270 = vunpack.c.h.b16 %v67
    %v271 = vunpack.c.l.b16 %v68
    %v272 = vunpack.c.h.b16 %v68
    %v273 = vunpack.c.l.b16 %v69
    %v274 = vunpack.c.h.b16 %v69
    %v275 = vunpack.c.l.b16 %v70
    %v276 = vunpack.c.h.b16 %v70
    %v277 = vunpack.c.l.b16 %v71
    %v278 = vunpack.c.h.b16 %v71
    %v279 = vunpack.c.l.b16 %v72
    %v280 = vunpack.c.h.b16 %v72
    %v281 = vunpack.c.l.b16 %v73
    %v282 = vunpack.c.h.b16 %v73
    %v283 = vunpack.c.l.b16 %v74
    %v284 = vunpack.c.h.b16 %v74
    %v285 = vunpack.c.l.b16 %v75
    %v286 = vunpack.c.h.b16 %v75
    %v287 = vunpack.c.l.b16 %v76
    %v288 = vunpack.c.h.b16 %v76
    %v289 = vunpack.c.l.b16 %v77
    %v290 = vunpack.c.h.b16 %v77
    %v291 = vunpack.c.l.b16 %v78
    %v292 = vunpack.c.h.b16 %v78
    %v293 = vunpack.c.l.b16 %v79
    %v294 = vunpack.c.h.b16 %v79
    %v295 = vunpack.c.l.b16 %v80
    %v296 = vunpack.c.h.b16 %v80
    %v297 = vunpack.c.l.b16 %v81
    %v298 = vunpack.c.h.b16 %v81
    %v299 = vunpack.c.l.b16 %v82
    %v300 = vunpack.c.h.b16 %v82
    %v301 = vunpack.c.l.b16 %v83
    %v302 = vunpack.c.h.b16 %v83
    %v303 = vunpack.c.l.b16 %v84
    %v304 = vunpack.c.h.b16 %v84
    %v305 = vunpack.c.l.b16 %v85
    %v306 = vunpack.c.h.b16 %v85
    %v307 = vunpack.c.l.b16 %v86
    %v308 = vunpack.c.h.b16 %v86
    %v309 = vunpack.c.l.b16 %v87
    %v310 = vunpack.c.h.b16 %v87
    %v311 = vunpack.c.l.b16 %v88
    %v312 = vunpack.c.h.b16 %v88
    %v313 = vunpack.c.l.b16 %v89
    %v314 = vunpack.c.h.b16 %v89
    %v315 = vunpack.c.l.b16 %v90
    %v316 = vunpack.c.h.b16 %v90
    %v317 = vunpack.c.l.b16 %v91
    %v318 = vunpack.c.h.b16 %v91
    %v319 = vunpack.c.l.b16 %v92
    %v320 = vunpack.c.h.b16 %v92
    %v321 = vunpack.c.l.b16 %v93
    %v322 = vunpack.c.h.b16 %v93
    %v323 = vunpack.c.l.b16 %v94
    %v324 = vunpack.c.h.b16 %v94
    %v325 = vunpack.c.l.b16 %v95
    %v326 = vunpack.c.h.b16 %v95
    %v327 = vunpack.c.l.b16 %v96
    %v328 = vunpack.c.h.b16 %v96
    %v329 = vunpack.c.l.b16 %v97
    %v330 = vunpack.c.h.b16 %v97
    %v331 = vunpack.c.l.b16 %v98
    %v332 = vunpack.c.h.b16 %v98
    %v333 = vunpack.c.l.b16 %v99
    %v334 = vunpack.c.h.b16 %v99
    %v335 = vunpack.c.l.b16 %v100
    %v336 = vunpack.c.h.b16 %v100
    %v337 = vunpack.c.l.b16 %v101
    %v338 = vunpack.c.h.b16 %v101
    %v339 = vunpack.c.l.b16 %v102
    %v340 = vunpack.c.h.b16 %v102
    %v341 = vpack.c.b16 %v249, %v245
    %v342 = vpack.c.b16 %v250, %v246
    %v343 = vpack.c.b16 %v251, %v247
    %v344 = vpack.c.b16 %v252, %v248
    %v345 = vpack.c.b16 %v257, %v253
    %v346 = vpack.c.b16 %v258, %v254
    %v347 = vpack.c.b16 %v259, %v255
    %v348 = vpack.c.b16 %v260, %v256
    %v349 = vpack.c.b16 %v265, %v261
    %v350 = vpack.c.b16 %v266, %v262
    %v351 = vpack.c.b16 %v267, %v263
    %v352 = vpack.c.b16 %v268, %v264
    %v353 = vpack.c.b16 %v273, %v269
    %v354 = vpack.c.b16 %v274, %v270
    %v355 = vpack.c.b16 %v275, %v271
    %v356 = vpack.c.b16 %v276, %v272
    %v357 = vpack.c.b16 %v281, %v277
    %v358 = vpack.c.b16 %v282, %v278
    %v359 = vpack.c.b16 %v283, %v279
    %v360 = vpack.c.b16 %v284, %v280
    %v361 = vpack.c.b16 %v289, %v285
    %v362 = vpack.c.b16 %v290, %v286
    %v363 = vpack.c.b16 %v291, %v287
    %v364 = vpack.c.b16 %v292, %v288
    %v365 = vpack.c.b16 %v297, %v293
    %v366 = vpack.c.b16 %v298, %v294
    %v367 = vpack.c.b16 %v299, %v295
    %v368 = vpack.c.b16 %v300, %v296
    %v369 = vpack.c.b16 %v305, %v301
    %v370 = vpack.c.b16 %v306, %v302
    %v371 = vpack.c.b16 %v307, %v303
    %v372 = vpack.c.b16 %v308, %v304
    %v373 = vpack.c.b16 %v313, %v309
    %v374 = vpack.c.b16 %v314, %v310
    %v375 = vpack.c.b16 %v315, %v311
    %v376 = vpack.c.b16 %v316, %v312
    %v377 = vpack.c.b16 %v321, %v317
    %v378 = vpack.c.b16 %v322, %v318
    %v379 = vpack.c.b16 %v323, %v319
    %v380 = vpack.c.b16 %v324, %v320
    %v381 = vpack.c.b16 %v329, %v325
    %v382 = vpack.c.b16 %v330, %v326
    %v383 = vpack.c.b16 %v331, %v327
    %v384 = vpack.c.b16 %v332, %v328
    %v385 = vpack.c.b16 %v337, %v333
    %v386 = vpack.c.b16 %v338, %v334
    %v387 = vpack.c.b16 %v339, %v335
    %v388 = vpack.c.b16 %v340, %v336
    %vm437 = vcmask 523264
    %v439 = vsel %vm437, %v174, 0
    %v442 = vsel %vm437, %v176, 0
    %v445 = vsel %vm437, %v178, 0
    %v448 = vsel %vm437, %v180, 0
    %v451 = vsel %vm437, %v182, 0
    %v454 = vsel %vm437, %v184, 0
    %v457 = vsel %vm437, %v186, 0
    %v460 = vsel %vm437, %v188, 0
    %462 = vmatprep.subr.bf16.mxu0 %v342
    %463 = vmatpush1.bf16.msra.mxu0 %v341
    %464 = vmatprep.subr.bf16.mxu0 %v346
    %465 = vmatpush1.bf16.msra.mxu0 %v345
    %466 = vmatprep.subr.bf16.mxu0 %v350
    %467 = vmatpush1.bf16.msra.mxu0 %v349
    %468 = vmatprep.subr.bf16.mxu0 %v354
    %469 = vmatpush1.bf16.msra.mxu0 %v353
    %470 = vmatprep.subr.bf16.mxu0 %v358
    %471 = vmatpush1.bf16.msra.mxu0 %v357
    %472 = vmatprep.subr.bf16.mxu0 %v362
    %473 = vmatpush1.bf16.msra.mxu0 %v361
    %474 = vmatprep.subr.bf16.mxu0 %v366
    %475 = vmatpush1.bf16.msra.mxu0 %v365
    %476 = vmatprep.subr.bf16.mxu0 %v370
    %477 = vmatpush1.bf16.msra.mxu0 %v369
    %478 = vmatprep.subr.bf16.mxu0 %v374
    %479 = vmatpush1.bf16.msra.mxu0 %v373
    %480 = vmatprep.subr.bf16.mxu0 %v378
    %481 = vmatpush1.bf16.msra.mxu0 %v377
    %482 = vmatprep.subr.bf16.mxu0 %v382
    %483 = vmatpush1.bf16.msra.mxu0 %v381
    %484 = vmatprep.subr.bf16.mxu0 %v386
    %485 = vmatpush1.bf16.msra.mxu0 %v385
    %486 = vmatprep.subr.bf16.mxu0 0
    %487 = vmatpush1.bf16.msra.mxu0 0
    %488 = vmatprep.subr.bf16.mxu0 0
    %489 = vmatpush1.bf16.msra.mxu0 0
    %490 = vmatprep.subr.bf16.mxu0 0
    %491 = vmatpush1.bf16.msra.mxu0 0
    %492 = vmatprep.subr.bf16.mxu0 0
    %493 = vmatpush1.bf16.msra.mxu0 0
    %494 = vmatprep.mubr.bf16.mxu0 %v439
    %495 = vmatmul.mubr.bf16.gmra.mrb[0].mxu0 %v173
    %v496 = vpop.f32.mrb[0].mxu0
    %v497 = vadd.f32 %v108, %v496
    %v498 = vpop.f32.mrb[0].mxu0
    %v499 = vadd.f32 %v112, %v498
    %v500 = vpop.f32.mrb[0].mxu0
    %v501 = vadd.f32 %v108, %v500
    %v502 = vpop.f32.mrb[0].mxu0
    %v503 = vadd.f32 %v112, %v502
    %504 = vmatprep.mubr.bf16.mxu0 %v442
    %505 = vmatmul.mubr.bf16.gmra.mrb[0].mxu0 %v175
    %v506 = vpop.f32.mrb[0].mxu0
    %v507 = vadd.f32 %v108, %v506
    %v508 = vpop.f32.mrb[0].mxu0
    %v509 = vadd.f32 %v112, %v508
    %v510 = vpop.f32.mrb[0].mxu0
    %v511 = vadd.f32 %v108, %v510
    %v512 = vpop.f32.mrb[0].mxu0
    %v513 = vadd.f32 %v112, %v512
    %514 = vmatprep.mubr.bf16.mxu0 %v445
    %515 = vmatmul.mubr.bf16.gmra.mrb[0].mxu0 %v177
    %v516 = vpop.f32.mrb[0].mxu0
    %v517 = vadd.f32 %v108, %v516
    %v518 = vpop.f32.mrb[0].mxu0
    %v519 = vadd.f32 %v112, %v518
    %v520 = vpop.f32.mrb[0].mxu0
    %v521 = vadd.f32 %v108, %v520
    %v522 = vpop.f32.mrb[0].mxu0
    %v523 = vadd.f32 %v112, %v522
    %524 = vmatprep.mubr.bf16.mxu0 %v448
    %525 = vmatmul.mubr.bf16.gmra.mrb[0].mxu0 %v179
    %v526 = vpop.f32.mrb[0].mxu0
    %v527 = vadd.f32 %v108, %v526
    %v528 = vpop.f32.mrb[0].mxu0
    %v529 = vadd.f32 %v112, %v528
    %v530 = vpop.f32.mrb[0].mxu0
    %v531 = vadd.f32 %v108, %v530
    %v532 = vpop.f32.mrb[0].mxu0
    %v533 = vadd.f32 %v112, %v532
    %534 = vmatprep.mubr.bf16.mxu0 %v451
    %535 = vmatmul.mubr.bf16.gmra.mrb[0].mxu0 %v181
    %v536 = vpop.f32.mrb[0].mxu0
    %v537 = vadd.f32 %v108, %v536
    %v538 = vpop.f32.mrb[0].mxu0
    %v539 = vadd.f32 %v112, %v538
    %v540 = vpop.f32.mrb[0].mxu0
    %v541 = vadd.f32 %v108, %v540
    %v542 = vpop.f32.mrb[0].mxu0
    %v543 = vadd.f32 %v112, %v542
    %544 = vmatprep.mubr.bf16.mxu0 %v454
    %545 = vmatmul.mubr.bf16.gmra.mrb[0].mxu0 %v183
    %v546 = vpop.f32.mrb[0].mxu0
    %v547 = vadd.f32 %v108, %v546
    %v548 = vpop.f32.mrb[0].mxu0
    %v549 = vadd.f32 %v112, %v548
    %v550 = vpop.f32.mrb[0].mxu0
    %v551 = vadd.f32 %v108, %v550
    %v552 = vpop.f32.mrb[0].mxu0
    %v553 = vadd.f32 %v112, %v552
    %554 = vmatprep.mubr.bf16.mxu0 %v457
    %555 = vmatmul.mubr.bf16.gmra.mrb[0].mxu0 %v185
    %v556 = vpop.f32.mrb[0].mxu0
    %v557 = vadd.f32 %v108, %v556
    %v558 = vpop.f32.mrb[0].mxu0
    %v559 = vadd.f32 %v112, %v558
    %v560 = vpop.f32.mrb[0].mxu0
    %v561 = vadd.f32 %v108, %v560
    %v562 = vpop.f32.mrb[0].mxu0
    %v563 = vadd.f32 %v112, %v562
    %564 = vmatprep.mubr.bf16.mxu0 %v460
    %565 = vmatmul.mubr.bf16.gmra.mrb[0].mxu0 %v187
    %v566 = vpop.f32.mrb[0].mxu0
    %v567 = vadd.f32 %v108, %v566
    %v568 = vpop.f32.mrb[0].mxu0
    %v569 = vadd.f32 %v112, %v568
    %v570 = vpop.f32.mrb[0].mxu0
    %v571 = vadd.f32 %v108, %v570
    %v572 = vpop.f32.mrb[0].mxu0
    %v573 = vadd.f32 %v112, %v572
    %574 = vdwg.mxu0
    %575 = vmatprep.subr.bf16.mxu0 %v344
    %576 = vmatpush1.bf16.msra.mxu0 %v343
    %577 = vmatprep.subr.bf16.mxu0 %v348
    %578 = vmatpush1.bf16.msra.mxu0 %v347
    %579 = vmatprep.subr.bf16.mxu0 %v352
    %580 = vmatpush1.bf16.msra.mxu0 %v351
    %581 = vmatprep.subr.bf16.mxu0 %v356
    %582 = vmatpush1.bf16.msra.mxu0 %v355
    %583 = vmatprep.subr.bf16.mxu0 %v360
    %584 = vmatpush1.bf16.msra.mxu0 %v359
    %585 = vmatprep.subr.bf16.mxu0 %v364
    %586 = vmatpush1.bf16.msra.mxu0 %v363
    %587 = vmatprep.subr.bf16.mxu0 %v368
    %588 = vmatpush1.bf16.msra.mxu0 %v367
    %589 = vmatprep.subr.bf16.mxu0 %v372
    %590 = vmatpush1.bf16.msra.mxu0 %v371
    %591 = vmatprep.subr.bf16.mxu0 %v376
    %592 = vmatpush1.bf16.msra.mxu0 %v375
    %593 = vmatprep.subr.bf16.mxu0 %v380
    %594 = vmatpush1.bf16.msra.mxu0 %v379
    %595 = vmatprep.subr.bf16.mxu0 %v384
    %596 = vmatpush1.bf16.msra.mxu0 %v383
    %597 = vmatprep.subr.bf16.mxu0 %v388
    %598 = vmatpush1.bf16.msra.mxu0 %v387
    %599 = vmatprep.subr.bf16.mxu0 0
    %600 = vmatpush1.bf16.msra.mxu0 0
    %601 = vmatprep.subr.bf16.mxu0 0
    %602 = vmatpush1.bf16.msra.mxu0 0
    %603 = vmatprep.subr.bf16.mxu0 0
    %604 = vmatpush1.bf16.msra.mxu0 0
    %605 = vmatprep.subr.bf16.mxu0 0
    %606 = vmatpush1.bf16.msra.mxu0 0
    %607 = vmatprep.mubr.bf16.mxu0 %v439
    %608 = vmatmul.mubr.bf16.gmra.mrb[0].mxu0 %v173
    %v609 = vpop.f32.mrb[0].mxu0
    %v610 = vadd.f32 %v116, %v609
    %v611 = vpop.f32.mrb[0].mxu0
    %v612 = vadd.f32 %v120, %v611
    %v613 = vpop.f32.mrb[0].mxu0
    %v614 = vadd.f32 %v116, %v613
    %v615 = vpop.f32.mrb[0].mxu0
    %v616 = vadd.f32 %v120, %v615
    %617 = vmatprep.mubr.bf16.mxu0 %v442
    %618 = vmatmul.mubr.bf16.gmra.mrb[0].mxu0 %v175
    %v619 = vpop.f32.mrb[0].mxu0
    %v620 = vadd.f32 %v116, %v619
    %v621 = vpop.f32.mrb[0].mxu0
    %v622 = vadd.f32 %v120, %v621
    %v623 = vpop.f32.mrb[0].mxu0
    %v624 = vadd.f32 %v116, %v623
    %v625 = vpop.f32.mrb[0].mxu0
    %v626 = vadd.f32 %v120, %v625
    %627 = vmatprep.mubr.bf16.mxu0 %v445
    %628 = vmatmul.mubr.bf16.gmra.mrb[0].mxu0 %v177
    %v629 = vpop.f32.mrb[0].mxu0
    %v630 = vadd.f32 %v116, %v629
    %v631 = vpop.f32.mrb[0].mxu0
    %v632 = vadd.f32 %v120, %v631
    %v633 = vpop.f32.mrb[0].mxu0
    %v634 = vadd.f32 %v116, %v633
    %v635 = vpop.f32.mrb[0].mxu0
    %v636 = vadd.f32 %v120, %v635
    %637 = vmatprep.mubr.bf16.mxu0 %v448
    %638 = vmatmul.mubr.bf16.gmra.mrb[0].mxu0 %v179
    %v639 = vpop.f32.mrb[0].mxu0
    %v640 = vadd.f32 %v116, %v639
    %v641 = vpop.f32.mrb[0].mxu0
    %v642 = vadd.f32 %v120, %v641
    %v643 = vpop.f32.mrb[0].mxu0
    %v644 = vadd.f32 %v116, %v643
    %v645 = vpop.f32.mrb[0].mxu0
    %v646 = vadd.f32 %v120, %v645
    %647 = vmatprep.mubr.bf16.mxu0 %v451
    %648 = vmatmul.mubr.bf16.gmra.mrb[0].mxu0 %v181
    %v649 = vpop.f32.mrb[0].mxu0
    %v650 = vadd.f32 %v116, %v649
    %v651 = vpop.f32.mrb[0].mxu0
    %v652 = vadd.f32 %v120, %v651
    %v653 = vpop.f32.mrb[0].mxu0
    %v654 = vadd.f32 %v116, %v653
    %v655 = vpop.f32.mrb[0].mxu0
    %v656 = vadd.f32 %v120, %v655
    %657 = vmatprep.mubr.bf16.mxu0 %v454
    %658 = vmatmul.mubr.bf16.gmra.mrb[0].mxu0 %v183
    %v659 = vpop.f32.mrb[0].mxu0
    %v660 = vadd.f32 %v116, %v659
    %v661 = vpop.f32.mrb[0].mxu0
    %v662 = vadd.f32 %v120, %v661
    %v663 = vpop.f32.mrb[0].mxu0
    %v664 = vadd.f32 %v116, %v663
    %v665 = vpop.f32.mrb[0].mxu0
    %v666 = vadd.f32 %v120, %v665
    %667 = vmatprep.mubr.bf16.mxu0 %v457
    %668 = vmatmul.mubr.bf16.gmra.mrb[0].mxu0 %v185
    %v669 = vpop.f32.mrb[0].mxu0
    %v670 = vadd.f32 %v116, %v669
    %v671 = vpop.f32.mrb[0].mxu0
    %v672 = vadd.f32 %v120, %v671
    %v673 = vpop.f32.mrb[0].mxu0
    %v674 = vadd.f32 %v116, %v673
    %v675 = vpop.f32.mrb[0].mxu0
    %v676 = vadd.f32 %v120, %v675
    %677 = vmatprep.mubr.bf16.mxu0 %v460
    %678 = vmatmul.mubr.bf16.gmra.mrb[0].mxu0 %v187
    %v679 = vpop.f32.mrb[0].mxu0
    %v680 = vadd.f32 %v116, %v679
    %v681 = vpop.f32.mrb[0].mxu0
    %v682 = vadd.f32 %v120, %v681
    %v683 = vpop.f32.mrb[0].mxu0
    %v684 = vadd.f32 %v116, %v683
    %v685 = vpop.f32.mrb[0].mxu0
    %v686 = vadd.f32 %v120, %v685
    %687 = vdwg.mxu0
    %v688 = vmul.f32 %v497, 0.5
    %v689 = vmul.f32 %v499, 0.5
    %v690 = vmul.f32 %v610, 0.5
    %v691 = vmul.f32 %v612, 0.5
    %v692 = vmul.f32 %v501, 0.5
    %v693 = vmul.f32 %v503, 0.5
    %v694 = vmul.f32 %v614, 0.5
    %v695 = vmul.f32 %v616, 0.5
    %v696 = vmul.f32 %v507, 0.5
    %v697 = vmul.f32 %v509, 0.5
    %v698 = vmul.f32 %v620, 0.5
    %v699 = vmul.f32 %v622, 0.5
    %v700 = vmul.f32 %v511, 0.5
    %v701 = vmul.f32 %v513, 0.5
    %v702 = vmul.f32 %v624, 0.5
    %v703 = vmul.f32 %v626, 0.5
    %v704 = vmul.f32 %v517, 0.5
    %v705 = vmul.f32 %v519, 0.5
    %v706 = vmul.f32 %v630, 0.5
    %v707 = vmul.f32 %v632, 0.5
    %v708 = vmul.f32 %v521, 0.5
    %v709 = vmul.f32 %v523, 0.5
    %v710 = vmul.f32 %v634, 0.5
    %v711 = vmul.f32 %v636, 0.5
    %v712 = vmul.f32 %v527, 0.5
    %v713 = vmul.f32 %v529, 0.5
    %v714 = vmul.f32 %v640, 0.5
    %v715 = vmul.f32 %v642, 0.5
    %v716 = vmul.f32 %v531, 0.5
    %v717 = vmul.f32 %v533, 0.5
    %v718 = vmul.f32 %v644, 0.5
    %v719 = vmul.f32 %v646, 0.5
    %v720 = vmul.f32 %v537, 0.5
    %v721 = vmul.f32 %v539, 0.5
    %v722 = vmul.f32 %v650, 0.5
    %v723 = vmul.f32 %v652, 0.5
    %v724 = vmul.f32 %v541, 0.5
    %v725 = vmul.f32 %v543, 0.5
    %v726 = vmul.f32 %v654, 0.5
    %v727 = vmul.f32 %v656, 0.5
    %v728 = vmul.f32 %v547, 0.5
    %v729 = vmul.f32 %v549, 0.5
    %v730 = vmul.f32 %v660, 0.5
    %v731 = vmul.f32 %v662, 0.5
    %v732 = vmul.f32 %v551, 0.5
    %v733 = vmul.f32 %v553, 0.5
    %v734 = vmul.f32 %v664, 0.5
    %v735 = vmul.f32 %v666, 0.5
    %v736 = vmul.f32 %v557, 0.5
    %v737 = vmul.f32 %v559, 0.5
    %v738 = vmul.f32 %v670, 0.5
    %v739 = vmul.f32 %v672, 0.5
    %v740 = vmul.f32 %v561, 0.5
    %v741 = vmul.f32 %v563, 0.5
    %v742 = vmul.f32 %v674, 0.5
    %v743 = vmul.f32 %v676, 0.5
    %v744 = vmul.f32 %v567, 0.5
    %v745 = vmul.f32 %v569, 0.5
    %v746 = vmul.f32 %v680, 0.5
    %v747 = vmul.f32 %v682, 0.5
    %v748 = vmul.f32 %v571, 0.5
    %v749 = vmul.f32 %v573, 0.5
    %v750 = vmul.f32 %v684, 0.5
    %v751 = vmul.f32 %v686, 0.5
    %v752 = vmul.f32 %v497, 0.70710677
    %v753 = vmul.f32 %v499, 0.70710677
    %v754 = vmul.f32 %v610, 0.70710677
    %v755 = vmul.f32 %v612, 0.70710677
    %v756 = vmul.f32 %v501, 0.70710677
    %v757 = vmul.f32 %v503, 0.70710677
    %v758 = vmul.f32 %v614, 0.70710677
    %v759 = vmul.f32 %v616, 0.70710677
    %v760 = vmul.f32 %v507, 0.70710677
    %v761 = vmul.f32 %v509, 0.70710677
    %v762 = vmul.f32 %v620, 0.70710677
    %v763 = vmul.f32 %v622, 0.70710677
    %v764 = vmul.f32 %v511, 0.70710677
    %v765 = vmul.f32 %v513, 0.70710677
    %v766 = vmul.f32 %v624, 0.70710677
    %v767 = vmul.f32 %v626, 0.70710677
    %v768 = vmul.f32 %v517, 0.70710677
    %v769 = vmul.f32 %v519, 0.70710677
    %v770 = vmul.f32 %v630, 0.70710677
    %v771 = vmul.f32 %v632, 0.70710677
    %v772 = vmul.f32 %v521, 0.70710677
    %v773 = vmul.f32 %v523, 0.70710677
    %v774 = vmul.f32 %v634, 0.70710677
    %v775 = vmul.f32 %v636, 0.70710677
    %v776 = vmul.f32 %v527, 0.70710677
    %v777 = vmul.f32 %v529, 0.70710677
    %v778 = vmul.f32 %v640, 0.70710677
    %v779 = vmul.f32 %v642, 0.70710677
    %v780 = vmul.f32 %v531, 0.70710677
    %v781 = vmul.f32 %v533, 0.70710677
    %v782 = vmul.f32 %v644, 0.70710677
    %v783 = vmul.f32 %v646, 0.70710677
    %v784 = vmul.f32 %v537, 0.70710677
    %v785 = vmul.f32 %v539, 0.70710677
    %v786 = vmul.f32 %v650, 0.70710677
    %v787 = vmul.f32 %v652, 0.70710677
    %v788 = vmul.f32 %v541, 0.70710677
    %v789 = vmul.f32 %v543, 0.70710677
    %v790 = vmul.f32 %v654, 0.70710677
    %v791 = vmul.f32 %v656, 0.70710677
    %v792 = vmul.f32 %v547, 0.70710677
    %v793 = vmul.f32 %v549, 0.70710677
    %v794 = vmul.f32 %v660, 0.70710677
    %v795 = vmul.f32 %v662, 0.70710677
    %v796 = vmul.f32 %v551, 0.70710677
    %v797 = vmul.f32 %v553, 0.70710677
    %v798 = vmul.f32 %v664, 0.70710677
    %v799 = vmul.f32 %v666, 0.70710677
    %v800 = vmul.f32 %v557, 0.70710677
    %v801 = vmul.f32 %v559, 0.70710677
    %v802 = vmul.f32 %v670, 0.70710677
    %v803 = vmul.f32 %v672, 0.70710677
    %v804 = vmul.f32 %v561, 0.70710677
    %v805 = vmul.f32 %v563, 0.70710677
    %v806 = vmul.f32 %v674, 0.70710677
    %v807 = vmul.f32 %v676, 0.70710677
    %v808 = vmul.f32 %v567, 0.70710677
    %v809 = vmul.f32 %v569, 0.70710677
    %v810 = vmul.f32 %v680, 0.70710677
    %v811 = vmul.f32 %v682, 0.70710677
    %v812 = vmul.f32 %v571, 0.70710677
    %v813 = vmul.f32 %v573, 0.70710677
    %v814 = vmul.f32 %v684, 0.70710677
    %v815 = vmul.f32 %v686, 0.70710677
    %v816 = verf.f32.pop %v752
    %v817 = verf.f32.pop %v753
    %v818 = verf.f32.pop %v754
    %v819 = verf.f32.pop %v755
    %v820 = verf.f32.pop %v756
    %v821 = verf.f32.pop %v757
    %v822 = verf.f32.pop %v758
    %v823 = verf.f32.pop %v759
    %v824 = verf.f32.pop %v760
    %v825 = verf.f32.pop %v761
    %v826 = verf.f32.pop %v762
    %v827 = verf.f32.pop %v763
    %v828 = verf.f32.pop %v764
    %v829 = verf.f32.pop %v765
    %v830 = verf.f32.pop %v766
    %v831 = verf.f32.pop %v767
    %v832 = verf.f32.pop %v768
    %v833 = verf.f32.pop %v769
    %v834 = verf.f32.pop %v770
    %v835 = verf.f32.pop %v771
    %v836 = verf.f32.pop %v772
    %v837 = verf.f32.pop %v773
    %v838 = verf.f32.pop %v774
    %v839 = verf.f32.pop %v775
    %v840 = verf.f32.pop %v776
    %v841 = verf.f32.pop %v777
    %v842 = verf.f32.pop %v778
    %v843 = verf.f32.pop %v779
    %v844 = verf.f32.pop %v780
    %v845 = verf.f32.pop %v781
    %v846 = verf.f32.pop %v782
    %v847 = verf.f32.pop %v783
    %v848 = verf.f32.pop %v784
    %v849 = verf.f32.pop %v785
    %v850 = verf.f32.pop %v786
    %v851 = verf.f32.pop %v787
    %v852 = verf.f32.pop %v788
    %v853 = verf.f32.pop %v789
    %v854 = verf.f32.pop %v790
    %v855 = verf.f32.pop %v791
    %v856 = verf.f32.pop %v792
    %v857 = verf.f32.pop %v793
    %v858 = verf.f32.pop %v794
    %v859 = verf.f32.pop %v795
    %v860 = verf.f32.pop %v796
    %v861 = verf.f32.pop %v797
    %v862 = verf.f32.pop %v798
    %v863 = verf.f32.pop %v799
    %v864 = verf.f32.pop %v800
    %v865 = verf.f32.pop %v801
    %v866 = verf.f32.pop %v802
    %v867 = verf.f32.pop %v803
    %v868 = verf.f32.pop %v804
    %v869 = verf.f32.pop %v805
    %v870 = verf.f32.pop %v806
    %v871 = verf.f32.pop %v807
    %v872 = verf.f32.pop %v808
    %v873 = verf.f32.pop %v809
    %v874 = verf.f32.pop %v810
    %v875 = verf.f32.pop %v811
    %v876 = verf.f32.pop %v812
    %v877 = verf.f32.pop %v813
    %v878 = verf.f32.pop %v814
    %v879 = verf.f32.pop %v815
    %v880 = vadd.f32 %v816, 1.0
    %v881 = vadd.f32 %v817, 1.0
    %v882 = vadd.f32 %v818, 1.0
    %v883 = vadd.f32 %v819, 1.0
    %v884 = vadd.f32 %v820, 1.0
    %v885 = vadd.f32 %v821, 1.0
    %v886 = vadd.f32 %v822, 1.0
    %v887 = vadd.f32 %v823, 1.0
    %v888 = vadd.f32 %v824, 1.0
    %v889 = vadd.f32 %v825, 1.0
    %v890 = vadd.f32 %v826, 1.0
    %v891 = vadd.f32 %v827, 1.0
    %v892 = vadd.f32 %v828, 1.0
    %v893 = vadd.f32 %v829, 1.0
    %v894 = vadd.f32 %v830, 1.0
    %v895 = vadd.f32 %v831, 1.0
    %v896 = vadd.f32 %v832, 1.0
    %v897 = vadd.f32 %v833, 1.0
    %v898 = vadd.f32 %v834, 1.0
    %v899 = vadd.f32 %v835, 1.0
    %v900 = vadd.f32 %v836, 1.0
    %v901 = vadd.f32 %v837, 1.0
    %v902 = vadd.f32 %v838, 1.0
    %v903 = vadd.f32 %v839, 1.0
    %v904 = vadd.f32 %v840, 1.0
    %v905 = vadd.f32 %v841, 1.0
    %v906 = vadd.f32 %v842, 1.0
    %v907 = vadd.f32 %v843, 1.0
    %v908 = vadd.f32 %v844, 1.0
    %v909 = vadd.f32 %v845, 1.0
    %v910 = vadd.f32 %v846, 1.0
    %v911 = vadd.f32 %v847, 1.0
    %v912 = vadd.f32 %v848, 1.0
    %v913 = vadd.f32 %v849, 1.0
    %v914 = vadd.f32 %v850, 1.0
    %v915 = vadd.f32 %v851, 1.0
    %v916 = vadd.f32 %v852, 1.0
    %v917 = vadd.f32 %v853, 1.0
    %v918 = vadd.f32 %v854, 1.0
    %v919 = vadd.f32 %v855, 1.0
    %v920 = vadd.f32 %v856, 1.0
    %v921 = vadd.f32 %v857, 1.0
    %v922 = vadd.f32 %v858, 1.0
    %v923 = vadd.f32 %v859, 1.0
    %v924 = vadd.f32 %v860, 1.0
    %v925 = vadd.f32 %v861, 1.0
    %v926 = vadd.f32 %v862, 1.0
    %v927 = vadd.f32 %v863, 1.0
    %v928 = vadd.f32 %v864, 1.0
    %v929 = vadd.f32 %v865, 1.0
    %v930 = vadd.f32 %v866, 1.0
    %v931 = vadd.f32 %v867, 1.0
    %v932 = vadd.f32 %v868, 1.0
    %v933 = vadd.f32 %v869, 1.0
    %v934 = vadd.f32 %v870, 1.0
    %v935 = vadd.f32 %v871, 1.0
    %v936 = vadd.f32 %v872, 1.0
    %v937 = vadd.f32 %v873, 1.0
    %v938 = vadd.f32 %v874, 1.0
    %v939 = vadd.f32 %v875, 1.0
    %v940 = vadd.f32 %v876, 1.0
    %v941 = vadd.f32 %v877, 1.0
    %v942 = vadd.f32 %v878, 1.0
    %v943 = vadd.f32 %v879, 1.0
    %v944 = vmul.f32 %v688, %v880
    %v945 = vmul.f32 %v689, %v881
    %v946 = vmul.f32 %v690, %v882
    %v947 = vmul.f32 %v691, %v883
    %v948 = vmul.f32 %v692, %v884
    %v949 = vmul.f32 %v693, %v885
    %v950 = vmul.f32 %v694, %v886
    %v951 = vmul.f32 %v695, %v887
    %v952 = vmul.f32 %v696, %v888
    %v953 = vmul.f32 %v697, %v889
    %v954 = vmul.f32 %v698, %v890
    %v955 = vmul.f32 %v699, %v891
    %v956 = vmul.f32 %v700, %v892
    %v957 = vmul.f32 %v701, %v893
    %v958 = vmul.f32 %v702, %v894
    %v959 = vmul.f32 %v703, %v895
    %v960 = vmul.f32 %v704, %v896
    %v961 = vmul.f32 %v705, %v897
    %v962 = vmul.f32 %v706, %v898
    %v963 = vmul.f32 %v707, %v899
    %v964 = vmul.f32 %v708, %v900
    %v965 = vmul.f32 %v709, %v901
    %v966 = vmul.f32 %v710, %v902
    %v967 = vmul.f32 %v711, %v903
    %v968 = vmul.f32 %v712, %v904
    %v969 = vmul.f32 %v713, %v905
    %v970 = vmul.f32 %v714, %v906
    %v971 = vmul.f32 %v715, %v907
    %v972 = vmul.f32 %v716, %v908
    %v973 = vmul.f32 %v717, %v909
    %v974 = vmul.f32 %v718, %v910
    %v975 = vmul.f32 %v719, %v911
    %v976 = vmul.f32 %v720, %v912
    %v977 = vmul.f32 %v721, %v913
    %v978 = vmul.f32 %v722, %v914
    %v979 = vmul.f32 %v723, %v915
    %v980 = vmul.f32 %v724, %v916
    %v981 = vmul.f32 %v725, %v917
    %v982 = vmul.f32 %v726, %v918
    %v983 = vmul.f32 %v727, %v919
    %v984 = vmul.f32 %v728, %v920
    %v985 = vmul.f32 %v729, %v921
    %v986 = vmul.f32 %v730, %v922
    %v987 = vmul.f32 %v731, %v923
    %v988 = vmul.f32 %v732, %v924
    %v989 = vmul.f32 %v733, %v925
    %v990 = vmul.f32 %v734, %v926
    %v991 = vmul.f32 %v735, %v927
    %v992 = vmul.f32 %v736, %v928
    %v993 = vmul.f32 %v737, %v929
    %v994 = vmul.f32 %v738, %v930
    %v995 = vmul.f32 %v739, %v931
    %v996 = vmul.f32 %v740, %v932
    %v997 = vmul.f32 %v741, %v933
    %v998 = vmul.f32 %v742, %v934
    %v999 = vmul.f32 %v743, %v935
    %v1000 = vmul.f32 %v744, %v936
    %v1001 = vmul.f32 %v745, %v937
    %v1002 = vmul.f32 %v746, %v938
    %v1003 = vmul.f32 %v747, %v939
    %v1004 = vmul.f32 %v748, %v940
    %v1005 = vmul.f32 %v749, %v941
    %v1006 = vmul.f32 %v750, %v942
    %v1007 = vmul.f32 %v751, %v943
    %v1008 = vpack.c.bf16 %v948, %v944
    %v1009 = vpack.c.bf16 %v949, %v945
    %v1010 = vpack.c.bf16 %v950, %v946
    %v1011 = vpack.c.bf16 %v951, %v947
    %v1012 = vpack.c.bf16 %v956, %v952
    %v1013 = vpack.c.bf16 %v957, %v953
    %v1014 = vpack.c.bf16 %v958, %v954
    %v1015 = vpack.c.bf16 %v959, %v955
    %v1016 = vpack.c.bf16 %v964, %v960
    %v1017 = vpack.c.bf16 %v965, %v961
    %v1018 = vpack.c.bf16 %v966, %v962
    %v1019 = vpack.c.bf16 %v967, %v963
    %v1020 = vpack.c.bf16 %v972, %v968
    %v1021 = vpack.c.bf16 %v973, %v969
    %v1022 = vpack.c.bf16 %v974, %v970
    %v1023 = vpack.c.bf16 %v975, %v971
    %v1024 = vpack.c.bf16 %v980, %v976
    %v1025 = vpack.c.bf16 %v981, %v977
    %v1026 = vpack.c.bf16 %v982, %v978
    %v1027 = vpack.c.bf16 %v983, %v979
    %v1028 = vpack.c.bf16 %v988, %v984
    %v1029 = vpack.c.bf16 %v989, %v985
    %v1030 = vpack.c.bf16 %v990, %v986
    %v1031 = vpack.c.bf16 %v991, %v987
    %v1032 = vpack.c.bf16 %v996, %v992
    %v1033 = vpack.c.bf16 %v997, %v993
    %v1034 = vpack.c.bf16 %v998, %v994
    %v1035 = vpack.c.bf16 %v999, %v995
    %v1036 = vpack.c.bf16 %v1004, %v1000
    %v1037 = vpack.c.bf16 %v1005, %v1001
    %v1038 = vpack.c.bf16 %v1006, %v1002
    %v1039 = vpack.c.bf16 %v1007, %v1003
    %v1040 = vld [vmem:[%s3] sm:$0xff]
    %v1041 = vld [vmem:[%s3 + $0x8] sm:$0xff]
    %v1042 = vld [vmem:[%s3 + $0x10] sm:$0xff]
    %v1043 = vld [vmem:[%s3 + $0x18] sm:$0xff]
    %v1044 = vld [vmem:[%s3 + $0x20] sm:$0xff]
    %v1045 = vld [vmem:[%s3 + $0x28] sm:$0xff]
    %v1046 = vld [vmem:[%s3 + $0x30] sm:$0xff]
    %v1047 = vld [vmem:[%s3 + $0x38] sm:$0xff]
    %v1048 = vld [vmem:[%s3 + $0x40] sm:$0xff]
    %v1049 = vld [vmem:[%s3 + $0x48] sm:$0xff]
    %v1050 = vld [vmem:[%s3 + $0x50] sm:$0xff]
    %v1051 = vld [vmem:[%s3 + $0x58] sm:$0xff]
    %v1052 = vld [vmem:[%s3 + $0x60] sm:$0xff]
    %v1053 = vld [vmem:[%s3 + $0x68] sm:$0xff]
    %v1054 = vld [vmem:[%s3 + $0x70] sm:$0xff]
    %v1055 = vld [vmem:[%s3 + $0x78] sm:$0xff]
    %v1056 = vld [vmem:[%s3 + $0x80] sm:$0xff]
    %v1057 = vld [vmem:[%s3 + $0x88] sm:$0xff]
    %v1058 = vld [vmem:[%s3 + $0x90] sm:$0xff]
    %v1059 = vld [vmem:[%s3 + $0x98] sm:$0xff]
    %v1060 = vld [vmem:[%s3 + $0xa0] sm:$0xff]
    %v1061 = vld [vmem:[%s3 + $0xa8] sm:$0xff]
    %v1062 = vld [vmem:[%s3 + $0xb0] sm:$0xff]
    %v1063 = vld [vmem:[%s3 + $0xb8] sm:$0xff]
    %v1064 = vld [vmem:[%s3 + $0xc0] sm:$0xff]
    %v1065 = vld [vmem:[%s3 + $0xc8] sm:$0xff]
    %v1066 = vld [vmem:[%s3 + $0xd0] sm:$0xff]
    %v1067 = vld [vmem:[%s3 + $0xd8] sm:$0xff]
    %v1068 = vld [vmem:[%s3 + $0xe0] sm:$0xff]
    %v1069 = vld [vmem:[%s3 + $0xe8] sm:$0xff]
    %v1070 = vld [vmem:[%s3 + $0xf0] sm:$0xff]
    %v1071 = vld [vmem:[%s3 + $0xf8] sm:$0xff]
    %v1072 = vld [vmem:[%s3 + $0x100] sm:$0xff]
    %v1073 = vld [vmem:[%s3 + $0x108] sm:$0xff]
    %v1074 = vld [vmem:[%s3 + $0x110] sm:$0xff]
    %v1075 = vld [vmem:[%s3 + $0x118] sm:$0xff]
    %v1076 = vld [vmem:[%s3 + $0x120] sm:$0xff]
    %v1077 = vld [vmem:[%s3 + $0x128] sm:$0xff]
    %v1078 = vld [vmem:[%s3 + $0x130] sm:$0xff]
    %v1079 = vld [vmem:[%s3 + $0x138] sm:$0xff]
    %v1080 = vld [vmem:[%s3 + $0x140] sm:$0xff]
    %v1081 = vld [vmem:[%s3 + $0x148] sm:$0xff]
    %v1082 = vld [vmem:[%s3 + $0x150] sm:$0xff]
    %v1083 = vld [vmem:[%s3 + $0x158] sm:$0xff]
    %v1084 = vld [vmem:[%s3 + $0x160] sm:$0xff]
    %v1085 = vld [vmem:[%s3 + $0x168] sm:$0xff]
    %v1086 = vld [vmem:[%s3 + $0x170] sm:$0xff]
    %v1087 = vld [vmem:[%s3 + $0x178] sm:$0xff]
    %v1088 = vld [vmem:[%s3 + $0x180] sm:$0xff]
    %v1089 = vld [vmem:[%s3 + $0x188] sm:$0xff]
    %v1090 = vld [vmem:[%s3 + $0x190] sm:$0xff]
    %v1091 = vld [vmem:[%s3 + $0x198] sm:$0xff]
    %v1092 = vld [vmem:[%s3 + $0x1a0] sm:$0xff]
    %v1093 = vld [vmem:[%s3 + $0x1a8] sm:$0xff]
    %v1094 = vld [vmem:[%s3 + $0x1b0] sm:$0xff]
    %v1095 = vld [vmem:[%s3 + $0x1b8] sm:$0xff]
    %v1096 = vld [vmem:[%s3 + $0x1c0] sm:$0xff]
    %v1097 = vld [vmem:[%s3 + $0x1c8] sm:$0xff]
    %v1098 = vld [vmem:[%s3 + $0x1d0] sm:$0xff]
    %v1099 = vld [vmem:[%s3 + $0x1d8] sm:$0xff]
    %v1100 = vld [vmem:[%s3 + $0x1e0] sm:$0xff]
    %v1101 = vld [vmem:[%s3 + $0x1e8] sm:$0xff]
    %v1102 = vld [vmem:[%s3 + $0x1f0] sm:$0xff]
    %v1103 = vld [vmem:[%s3 + $0x1f8] sm:$0xff]
    %v1104 = vld [vmem:[%s3 + $0x200] sm:$0xff]
    %v1105 = vld [vmem:[%s3 + $0x208] sm:$0xff]
    %v1106 = vld [vmem:[%s3 + $0x210] sm:$0xff]
    %v1107 = vld [vmem:[%s3 + $0x218] sm:$0xff]
    %v1108 = vld [vmem:[%s3 + $0x220] sm:$0xff]
    %v1109 = vld [vmem:[%s3 + $0x228] sm:$0xff]
    %v1110 = vld [vmem:[%s3 + $0x230] sm:$0xff]
    %v1111 = vld [vmem:[%s3 + $0x238] sm:$0xff]
    %v1112 = vld [vmem:[%s3 + $0x240] sm:$0xff]
    %v1113 = vld [vmem:[%s3 + $0x248] sm:$0xff]
    %v1114 = vld [vmem:[%s3 + $0x250] sm:$0xff]
    %v1115 = vld [vmem:[%s3 + $0x258] sm:$0xff]
    %v1116 = vld [vmem:[%s3 + $0x260] sm:$0xff]
    %v1117 = vld [vmem:[%s3 + $0x268] sm:$0xff]
    %v1118 = vld [vmem:[%s3 + $0x270] sm:$0xff]
    %v1119 = vld [vmem:[%s3 + $0x278] sm:$0xff]
    %v1120 = vld [vmem:[%s3 + $0x280] sm:$0xff]
    %v1121 = vld [vmem:[%s3 + $0x288] sm:$0xff]
    %v1122 = vld [vmem:[%s3 + $0x290] sm:$0xff]
    %v1123 = vld [vmem:[%s3 + $0x298] sm:$0xff]
    %v1124 = vld [vmem:[%s3 + $0x2a0] sm:$0xff]
    %v1125 = vld [vmem:[%s3 + $0x2a8] sm:$0xff]
    %v1126 = vld [vmem:[%s3 + $0x2b0] sm:$0xff]
    %v1127 = vld [vmem:[%s3 + $0x2b8] sm:$0xff]
    %v1128 = vld [vmem:[%s3 + $0x2c0] sm:$0xff]
    %v1129 = vld [vmem:[%s3 + $0x2c8] sm:$0xff]
    %v1130 = vld [vmem:[%s3 + $0x2d0] sm:$0xff]
    %v1131 = vld [vmem:[%s3 + $0x2d8] sm:$0xff]
    %v1132 = vld [vmem:[%s3 + $0x2e0] sm:$0xff]
    %v1133 = vld [vmem:[%s3 + $0x2e8] sm:$0xff]
    %v1134 = vld [vmem:[%s3 + $0x2f0] sm:$0xff]
    %v1135 = vld [vmem:[%s3 + $0x2f8] sm:$0xff]
    %v1136 = vld [vmem:[%s3 + $0x300] sm:$0xff]
    %v1137 = vld [vmem:[%s3 + $0x308] sm:$0xff]
    %v1138 = vld [vmem:[%s3 + $0x310] sm:$0xff]
    %v1139 = vld [vmem:[%s3 + $0x318] sm:$0xff]
    %v1140 = vld [vmem:[%s3 + $0x320] sm:$0xff]
    %v1141 = vld [vmem:[%s3 + $0x328] sm:$0xff]
    %v1142 = vld [vmem:[%s3 + $0x330] sm:$0xff]
    %v1143 = vld [vmem:[%s3 + $0x338] sm:$0xff]
    %v1144 = vld [vmem:[%s3 + $0x340] sm:$0xff]
    %v1145 = vld [vmem:[%s3 + $0x348] sm:$0xff]
    %v1146 = vld [vmem:[%s3 + $0x350] sm:$0xff]
    %v1147 = vld [vmem:[%s3 + $0x358] sm:$0xff]
    %v1148 = vld [vmem:[%s3 + $0x360] sm:$0xff]
    %v1149 = vld [vmem:[%s3 + $0x368] sm:$0xff]
    %v1150 = vld [vmem:[%s3 + $0x370] sm:$0xff]
    %v1151 = vld [vmem:[%s3 + $0x378] sm:$0xff]
    %v1152 = vld [vmem:[%s3 + $0x380] sm:$0xff]
    %v1153 = vld [vmem:[%s3 + $0x388] sm:$0xff]
    %v1154 = vld [vmem:[%s3 + $0x390] sm:$0xff]
    %v1155 = vld [vmem:[%s3 + $0x398] sm:$0xff]
    %v1156 = vld [vmem:[%s3 + $0x3a0] sm:$0xff]
    %v1157 = vld [vmem:[%s3 + $0x3a8] sm:$0xff]
    %v1158 = vld [vmem:[%s3 + $0x3b0] sm:$0xff]
    %v1159 = vld [vmem:[%s3 + $0x3b8] sm:$0xff]
    %v1160 = vld [vmem:[%s3 + $0x3c0] sm:$0xff]
    %v1161 = vld [vmem:[%s3 + $0x3c8] sm:$0xff]
    %v1162 = vld [vmem:[%s3 + $0x3d0] sm:$0xff]
    %v1163 = vld [vmem:[%s3 + $0x3d8] sm:$0xff]
    %v1164 = vld [vmem:[%s3 + $0x3e0] sm:$0xff]
    %v1165 = vld [vmem:[%s3 + $0x3e8] sm:$0xff]
    %v1166 = vld [vmem:[%s3 + $0x3f0] sm:$0xff]
    %v1167 = vld [vmem:[%s3 + $0x3f8] sm:$0xff]
    %v1168 = vld [vmem:[%s4] sm:$0xf]
    %v1170 = vlaneseq
    %v1171 = vshrl.u32 %v1170, 7
    %v1172 = vsub.s32 0, %v1171
    %v1173 = vrot.slane %v1168, %v1172
    %v1174 = vlaneseq
    %v1175 = vshrl.u32 %v1174, 7
    %v1176 = vsub.s32 1, %v1175
    %v1177 = vrot.slane %v1168, %v1176
    %v1178 = vlaneseq
    %v1179 = vshrl.u32 %v1178, 7
    %v1180 = vsub.s32 2, %v1179
    %v1181 = vrot.slane %v1168, %v1180
    %v1182 = vlaneseq
    %v1183 = vshrl.u32 %v1182, 7
    %v1184 = vsub.s32 3, %v1183
    %v1185 = vrot.slane %v1168, %v1184
    %v1318 = vunpack.c.l.b16 %v1040
    %v1319 = vunpack.c.h.b16 %v1040
    %v1320 = vunpack.c.l.b16 %v1041
    %v1321 = vunpack.c.h.b16 %v1041
    %v1322 = vunpack.c.l.b16 %v1042
    %v1323 = vunpack.c.h.b16 %v1042
    %v1324 = vunpack.c.l.b16 %v1043
    %v1325 = vunpack.c.h.b16 %v1043
    %v1326 = vunpack.c.l.b16 %v1044
    %v1327 = vunpack.c.h.b16 %v1044
    %v1328 = vunpack.c.l.b16 %v1045
    %v1329 = vunpack.c.h.b16 %v1045
    %v1330 = vunpack.c.l.b16 %v1046
    %v1331 = vunpack.c.h.b16 %v1046
    %v1332 = vunpack.c.l.b16 %v1047
    %v1333 = vunpack.c.h.b16 %v1047
    %v1334 = vunpack.c.l.b16 %v1048
    %v1335 = vunpack.c.h.b16 %v1048
    %v1336 = vunpack.c.l.b16 %v1049
    %v1337 = vunpack.c.h.b16 %v1049
    %v1338 = vunpack.c.l.b16 %v1050
    %v1339 = vunpack.c.h.b16 %v1050
    %v1340 = vunpack.c.l.b16 %v1051
    %v1341 = vunpack.c.h.b16 %v1051
    %v1342 = vunpack.c.l.b16 %v1052
    %v1343 = vunpack.c.h.b16 %v1052
    %v1344 = vunpack.c.l.b16 %v1053
    %v1345 = vunpack.c.h.b16 %v1053
    %v1346 = vunpack.c.l.b16 %v1054
    %v1347 = vunpack.c.h.b16 %v1054
    %v1348 = vunpack.c.l.b16 %v1055
    %v1349 = vunpack.c.h.b16 %v1055
    %v1350 = vunpack.c.l.b16 %v1056
    %v1351 = vunpack.c.h.b16 %v1056
    %v1352 = vunpack.c.l.b16 %v1057
    %v1353 = vunpack.c.h.b16 %v1057
    %v1354 = vunpack.c.l.b16 %v1058
    %v1355 = vunpack.c.h.b16 %v1058
    %v1356 = vunpack.c.l.b16 %v1059
    %v1357 = vunpack.c.h.b16 %v1059
    %v1358 = vunpack.c.l.b16 %v1060
    %v1359 = vunpack.c.h.b16 %v1060
    %v1360 = vunpack.c.l.b16 %v1061
    %v1361 = vunpack.c.h.b16 %v1061
    %v1362 = vunpack.c.l.b16 %v1062
    %v1363 = vunpack.c.h.b16 %v1062
    %v1364 = vunpack.c.l.b16 %v1063
    %v1365 = vunpack.c.h.b16 %v1063
    %v1366 = vunpack.c.l.b16 %v1064
    %v1367 = vunpack.c.h.b16 %v1064
    %v1368 = vunpack.c.l.b16 %v1065
    %v1369 = vunpack.c.h.b16 %v1065
    %v1370 = vunpack.c.l.b16 %v1066
    %v1371 = vunpack.c.h.b16 %v1066
    %v1372 = vunpack.c.l.b16 %v1067
    %v1373 = vunpack.c.h.b16 %v1067
    %v1374 = vunpack.c.l.b16 %v1068
    %v1375 = vunpack.c.h.b16 %v1068
    %v1376 = vunpack.c.l.b16 %v1069
    %v1377 = vunpack.c.h.b16 %v1069
    %v1378 = vunpack.c.l.b16 %v1070
    %v1379 = vunpack.c.h.b16 %v1070
    %v1380 = vunpack.c.l.b16 %v1071
    %v1381 = vunpack.c.h.b16 %v1071
    %v1382 = vunpack.c.l.b16 %v1072
    %v1383 = vunpack.c.h.b16 %v1072
    %v1384 = vunpack.c.l.b16 %v1073
    %v1385 = vunpack.c.h.b16 %v1073
    %v1386 = vunpack.c.l.b16 %v1074
    %v1387 = vunpack.c.h.b16 %v1074
    %v1388 = vunpack.c.l.b16 %v1075
    %v1389 = vunpack.c.h.b16 %v1075
    %v1390 = vunpack.c.l.b16 %v1076
    %v1391 = vunpack.c.h.b16 %v1076
    %v1392 = vunpack.c.l.b16 %v1077
    %v1393 = vunpack.c.h.b16 %v1077
    %v1394 = vunpack.c.l.b16 %v1078
    %v1395 = vunpack.c.h.b16 %v1078
    %v1396 = vunpack.c.l.b16 %v1079
    %v1397 = vunpack.c.h.b16 %v1079
    %v1398 = vunpack.c.l.b16 %v1080
    %v1399 = vunpack.c.h.b16 %v1080
    %v1400 = vunpack.c.l.b16 %v1081
    %v1401 = vunpack.c.h.b16 %v1081
    %v1402 = vunpack.c.l.b16 %v1082
    %v1403 = vunpack.c.h.b16 %v1082
    %v1404 = vunpack.c.l.b16 %v1083
    %v1405 = vunpack.c.h.b16 %v1083
    %v1406 = vunpack.c.l.b16 %v1084
    %v1407 = vunpack.c.h.b16 %v1084
    %v1408 = vunpack.c.l.b16 %v1085
    %v1409 = vunpack.c.h.b16 %v1085
    %v1410 = vunpack.c.l.b16 %v1086
    %v1411 = vunpack.c.h.b16 %v1086
    %v1412 = vunpack.c.l.b16 %v1087
    %v1413 = vunpack.c.h.b16 %v1087
    %v1414 = vunpack.c.l.b16 %v1088
    %v1415 = vunpack.c.h.b16 %v1088
    %v1416 = vunpack.c.l.b16 %v1089
    %v1417 = vunpack.c.h.b16 %v1089
    %v1418 = vunpack.c.l.b16 %v1090
    %v1419 = vunpack.c.h.b16 %v1090
    %v1420 = vunpack.c.l.b16 %v1091
    %v1421 = vunpack.c.h.b16 %v1091
    %v1422 = vunpack.c.l.b16 %v1092
    %v1423 = vunpack.c.h.b16 %v1092
    %v1424 = vunpack.c.l.b16 %v1093
    %v1425 = vunpack.c.h.b16 %v1093
    %v1426 = vunpack.c.l.b16 %v1094
    %v1427 = vunpack.c.h.b16 %v1094
    %v1428 = vunpack.c.l.b16 %v1095
    %v1429 = vunpack.c.h.b16 %v1095
    %v1430 = vunpack.c.l.b16 %v1096
    %v1431 = vunpack.c.h.b16 %v1096
    %v1432 = vunpack.c.l.b16 %v1097
    %v1433 = vunpack.c.h.b16 %v1097
    %v1434 = vunpack.c.l.b16 %v1098
    %v1435 = vunpack.c.h.b16 %v1098
    %v1436 = vunpack.c.l.b16 %v1099
    %v1437 = vunpack.c.h.b16 %v1099
    %v1438 = vunpack.c.l.b16 %v1100
    %v1439 = vunpack.c.h.b16 %v1100
    %v1440 = vunpack.c.l.b16 %v1101
    %v1441 = vunpack.c.h.b16 %v1101
    %v1442 = vunpack.c.l.b16 %v1102
    %v1443 = vunpack.c.h.b16 %v1102
    %v1444 = vunpack.c.l.b16 %v1103
    %v1445 = vunpack.c.h.b16 %v1103
    %v1446 = vunpack.c.l.b16 %v1104
    %v1447 = vunpack.c.h.b16 %v1104
    %v1448 = vunpack.c.l.b16 %v1105
    %v1449 = vunpack.c.h.b16 %v1105
    %v1450 = vunpack.c.l.b16 %v1106
    %v1451 = vunpack.c.h.b16 %v1106
    %v1452 = vunpack.c.l.b16 %v1107
    %v1453 = vunpack.c.h.b16 %v1107
    %v1454 = vunpack.c.l.b16 %v1108
    %v1455 = vunpack.c.h.b16 %v1108
    %v1456 = vunpack.c.l.b16 %v1109
    %v1457 = vunpack.c.h.b16 %v1109
    %v1458 = vunpack.c.l.b16 %v1110
    %v1459 = vunpack.c.h.b16 %v1110
    %v1460 = vunpack.c.l.b16 %v1111
    %v1461 = vunpack.c.h.b16 %v1111
    %v1462 = vunpack.c.l.b16 %v1112
    %v1463 = vunpack.c.h.b16 %v1112
    %v1464 = vunpack.c.l.b16 %v1113
    %v1465 = vunpack.c.h.b16 %v1113
    %v1466 = vunpack.c.l.b16 %v1114
    %v1467 = vunpack.c.h.b16 %v1114
    %v1468 = vunpack.c.l.b16 %v1115
    %v1469 = vunpack.c.h.b16 %v1115
    %v1470 = vunpack.c.l.b16 %v1116
    %v1471 = vunpack.c.h.b16 %v1116
    %v1472 = vunpack.c.l.b16 %v1117
    %v1473 = vunpack.c.h.b16 %v1117
    %v1474 = vunpack.c.l.b16 %v1118
    %v1475 = vunpack.c.h.b16 %v1118
    %v1476 = vunpack.c.l.b16 %v1119
    %v1477 = vunpack.c.h.b16 %v1119
    %v1478 = vunpack.c.l.b16 %v1120
    %v1479 = vunpack.c.h.b16 %v1120
    %v1480 = vunpack.c.l.b16 %v1121
    %v1481 = vunpack.c.h.b16 %v1121
    %v1482 = vunpack.c.l.b16 %v1122
    %v1483 = vunpack.c.h.b16 %v1122
    %v1484 = vunpack.c.l.b16 %v1123
    %v1485 = vunpack.c.h.b16 %v1123
    %v1486 = vunpack.c.l.b16 %v1124
    %v1487 = vunpack.c.h.b16 %v1124
    %v1488 = vunpack.c.l.b16 %v1125
    %v1489 = vunpack.c.h.b16 %v1125
    %v1490 = vunpack.c.l.b16 %v1126
    %v1491 = vunpack.c.h.b16 %v1126
    %v1492 = vunpack.c.l.b16 %v1127
    %v1493 = vunpack.c.h.b16 %v1127
    %v1494 = vunpack.c.l.b16 %v1128
    %v1495 = vunpack.c.h.b16 %v1128
    %v1496 = vunpack.c.l.b16 %v1129
    %v1497 = vunpack.c.h.b16 %v1129
    %v1498 = vunpack.c.l.b16 %v1130
    %v1499 = vunpack.c.h.b16 %v1130
    %v1500 = vunpack.c.l.b16 %v1131
    %v1501 = vunpack.c.h.b16 %v1131
    %v1502 = vunpack.c.l.b16 %v1132
    %v1503 = vunpack.c.h.b16 %v1132
    %v1504 = vunpack.c.l.b16 %v1133
    %v1505 = vunpack.c.h.b16 %v1133
    %v1506 = vunpack.c.l.b16 %v1134
    %v1507 = vunpack.c.h.b16 %v1134
    %v1508 = vunpack.c.l.b16 %v1135
    %v1509 = vunpack.c.h.b16 %v1135
    %v1510 = vunpack.c.l.b16 %v1136
    %v1511 = vunpack.c.h.b16 %v1136
    %v1512 = vunpack.c.l.b16 %v1137
    %v1513 = vunpack.c.h.b16 %v1137
    %v1514 = vunpack.c.l.b16 %v1138
    %v1515 = vunpack.c.h.b16 %v1138
    %v1516 = vunpack.c.l.b16 %v1139
    %v1517 = vunpack.c.h.b16 %v1139
    %v1518 = vunpack.c.l.b16 %v1140
    %v1519 = vunpack.c.h.b16 %v1140
    %v1520 = vunpack.c.l.b16 %v1141
    %v1521 = vunpack.c.h.b16 %v1141
    %v1522 = vunpack.c.l.b16 %v1142
    %v1523 = vunpack.c.h.b16 %v1142
    %v1524 = vunpack.c.l.b16 %v1143
    %v1525 = vunpack.c.h.b16 %v1143
    %v1526 = vunpack.c.l.b16 %v1144
    %v1527 = vunpack.c.h.b16 %v1144
    %v1528 = vunpack.c.l.b16 %v1145
    %v1529 = vunpack.c.h.b16 %v1145
    %v1530 = vunpack.c.l.b16 %v1146
    %v1531 = vunpack.c.h.b16 %v1146
    %v1532 = vunpack.c.l.b16 %v1147
    %v1533 = vunpack.c.h.b16 %v1147
    %v1534 = vunpack.c.l.b16 %v1148
    %v1535 = vunpack.c.h.b16 %v1148
    %v1536 = vunpack.c.l.b16 %v1149
    %v1537 = vunpack.c.h.b16 %v1149
    %v1538 = vunpack.c.l.b16 %v1150
    %v1539 = vunpack.c.h.b16 %v1150
    %v1540 = vunpack.c.l.b16 %v1151
    %v1541 = vunpack.c.h.b16 %v1151
    %v1542 = vunpack.c.l.b16 %v1152
    %v1543 = vunpack.c.h.b16 %v1152
    %v1544 = vunpack.c.l.b16 %v1153
    %v1545 = vunpack.c.h.b16 %v1153
    %v1546 = vunpack.c.l.b16 %v1154
    %v1547 = vunpack.c.h.b16 %v1154
    %v1548 = vunpack.c.l.b16 %v1155
    %v1549 = vunpack.c.h.b16 %v1155
    %v1550 = vunpack.c.l.b16 %v1156
    %v1551 = vunpack.c.h.b16 %v1156
    %v1552 = vunpack.c.l.b16 %v1157
    %v1553 = vunpack.c.h.b16 %v1157
    %v1554 = vunpack.c.l.b16 %v1158
    %v1555 = vunpack.c.h.b16 %v1158
    %v1556 = vunpack.c.l.b16 %v1159
    %v1557 = vunpack.c.h.b16 %v1159
    %v1558 = vunpack.c.l.b16 %v1160
    %v1559 = vunpack.c.h.b16 %v1160
    %v1560 = vunpack.c.l.b16 %v1161
    %v1561 = vunpack.c.h.b16 %v1161
    %v1562 = vunpack.c.l.b16 %v1162
    %v1563 = vunpack.c.h.b16 %v1162
    %v1564 = vunpack.c.l.b16 %v1163
    %v1565 = vunpack.c.h.b16 %v1163
    %v1566 = vunpack.c.l.b16 %v1164
    %v1567 = vunpack.c.h.b16 %v1164
    %v1568 = vunpack.c.l.b16 %v1165
    %v1569 = vunpack.c.h.b16 %v1165
    %v1570 = vunpack.c.l.b16 %v1166
    %v1571 = vunpack.c.h.b16 %v1166
    %v1572 = vunpack.c.l.b16 %v1167
    %v1573 = vunpack.c.h.b16 %v1167
    %v1574 = vpack.c.b16 %v1322, %v1318
    %v1575 = vpack.c.b16 %v1323, %v1319
    %v1576 = vpack.c.b16 %v1324, %v1320
    %v1577 = vpack.c.b16 %v1325, %v1321
    %v1578 = vpack.c.b16 %v1330, %v1326
    %v1579 = vpack.c.b16 %v1331, %v1327
    %v1580 = vpack.c.b16 %v1332, %v1328
    %v1581 = vpack.c.b16 %v1333, %v1329
    %v1582 = vpack.c.b16 %v1338, %v1334
    %v1583 = vpack.c.b16 %v1339, %v1335
    %v1584 = vpack.c.b16 %v1340, %v1336
    %v1585 = vpack.c.b16 %v1341, %v1337
    %v1586 = vpack.c.b16 %v1346, %v1342
    %v1587 = vpack.c.b16 %v1347, %v1343
    %v1588 = vpack.c.b16 %v1348, %v1344
    %v1589 = vpack.c.b16 %v1349, %v1345
    %v1590 = vpack.c.b16 %v1354, %v1350
    %v1591 = vpack.c.b16 %v1355, %v1351
    %v1592 = vpack.c.b16 %v1356, %v1352
    %v1593 = vpack.c.b16 %v1357, %v1353
    %v1594 = vpack.c.b16 %v1362, %v1358
    %v1595 = vpack.c.b16 %v1363, %v1359
    %v1596 = vpack.c.b16 %v1364, %v1360
    %v1597 = vpack.c.b16 %v1365, %v1361
    %v1598 = vpack.c.b16 %v1370, %v1366
    %v1599 = vpack.c.b16 %v1371, %v1367
    %v1600 = vpack.c.b16 %v1372, %v1368
    %v1601 = vpack.c.b16 %v1373, %v1369
    %v1602 = vpack.c.b16 %v1378, %v1374
    %v1603 = vpack.c.b16 %v1379, %v1375
    %v1604 = vpack.c.b16 %v1380, %v1376
    %v1605 = vpack.c.b16 %v1381, %v1377
    %v1606 = vpack.c.b16 %v1386, %v1382
    %v1607 = vpack.c.b16 %v1387, %v1383
    %v1608 = vpack.c.b16 %v1388, %v1384
    %v1609 = vpack.c.b16 %v1389, %v1385
    %v1610 = vpack.c.b16 %v1394, %v1390
    %v1611 = vpack.c.b16 %v1395, %v1391
    %v1612 = vpack.c.b16 %v1396, %v1392
    %v1613 = vpack.c.b16 %v1397, %v1393
    %v1614 = vpack.c.b16 %v1402, %v1398
    %v1615 = vpack.c.b16 %v1403, %v1399
    %v1616 = vpack.c.b16 %v1404, %v1400
    %v1617 = vpack.c.b16 %v1405, %v1401
    %v1618 = vpack.c.b16 %v1410, %v1406
    %v1619 = vpack.c.b16 %v1411, %v1407
    %v1620 = vpack.c.b16 %v1412, %v1408
    %v1621 = vpack.c.b16 %v1413, %v1409
    %v1622 = vpack.c.b16 %v1418, %v1414
    %v1623 = vpack.c.b16 %v1419, %v1415
    %v1624 = vpack.c.b16 %v1420, %v1416
    %v1625 = vpack.c.b16 %v1421, %v1417
    %v1626 = vpack.c.b16 %v1426, %v1422
    %v1627 = vpack.c.b16 %v1427, %v1423
    %v1628 = vpack.c.b16 %v1428, %v1424
    %v1629 = vpack.c.b16 %v1429, %v1425
    %v1630 = vpack.c.b16 %v1434, %v1430
    %v1631 = vpack.c.b16 %v1435, %v1431
    %v1632 = vpack.c.b16 %v1436, %v1432
    %v1633 = vpack.c.b16 %v1437, %v1433
    %v1634 = vpack.c.b16 %v1442, %v1438
    %v1635 = vpack.c.b16 %v1443, %v1439
    %v1636 = vpack.c.b16 %v1444, %v1440
    %v1637 = vpack.c.b16 %v1445, %v1441
    %v1638 = vpack.c.b16 %v1450, %v1446
    %v1639 = vpack.c.b16 %v1451, %v1447
    %v1640 = vpack.c.b16 %v1452, %v1448
    %v1641 = vpack.c.b16 %v1453, %v1449
    %v1642 = vpack.c.b16 %v1458, %v1454
    %v1643 = vpack.c.b16 %v1459, %v1455
    %v1644 = vpack.c.b16 %v1460, %v1456
    %v1645 = vpack.c.b16 %v1461, %v1457
    %v1646 = vpack.c.b16 %v1466, %v1462
    %v1647 = vpack.c.b16 %v1467, %v1463
    %v1648 = vpack.c.b16 %v1468, %v1464
    %v1649 = vpack.c.b16 %v1469, %v1465
    %v1650 = vpack.c.b16 %v1474, %v1470
    %v1651 = vpack.c.b16 %v1475, %v1471
    %v1652 = vpack.c.b16 %v1476, %v1472
    %v1653 = vpack.c.b16 %v1477, %v1473
    %v1654 = vpack.c.b16 %v1482, %v1478
    %v1655 = vpack.c.b16 %v1483, %v1479
    %v1656 = vpack.c.b16 %v1484, %v1480
    %v1657 = vpack.c.b16 %v1485, %v1481
    %v1658 = vpack.c.b16 %v1490, %v1486
    %v1659 = vpack.c.b16 %v1491, %v1487
    %v1660 = vpack.c.b16 %v1492, %v1488
    %v1661 = vpack.c.b16 %v1493, %v1489
    %v1662 = vpack.c.b16 %v1498, %v1494
    %v1663 = vpack.c.b16 %v1499, %v1495
    %v1664 = vpack.c.b16 %v1500, %v1496
    %v1665 = vpack.c.b16 %v1501, %v1497
    %v1666 = vpack.c.b16 %v1506, %v1502
    %v1667 = vpack.c.b16 %v1507, %v1503
    %v1668 = vpack.c.b16 %v1508, %v1504
    %v1669 = vpack.c.b16 %v1509, %v1505
    %v1670 = vpack.c.b16 %v1514, %v1510
    %v1671 = vpack.c.b16 %v1515, %v1511
    %v1672 = vpack.c.b16 %v1516, %v1512
    %v1673 = vpack.c.b16 %v1517, %v1513
    %v1674 = vpack.c.b16 %v1522, %v1518
    %v1675 = vpack.c.b16 %v1523, %v1519
    %v1676 = vpack.c.b16 %v1524, %v1520
    %v1677 = vpack.c.b16 %v1525, %v1521
    %v1678 = vpack.c.b16 %v1530, %v1526
    %v1679 = vpack.c.b16 %v1531, %v1527
    %v1680 = vpack.c.b16 %v1532, %v1528
    %v1681 = vpack.c.b16 %v1533, %v1529
    %v1682 = vpack.c.b16 %v1538, %v1534
    %v1683 = vpack.c.b16 %v1539, %v1535
    %v1684 = vpack.c.b16 %v1540, %v1536
    %v1685 = vpack.c.b16 %v1541, %v1537
    %v1686 = vpack.c.b16 %v1546, %v1542
    %v1687 = vpack.c.b16 %v1547, %v1543
    %v1688 = vpack.c.b16 %v1548, %v1544
    %v1689 = vpack.c.b16 %v1549, %v1545
    %v1690 = vpack.c.b16 %v1554, %v1550
    %v1691 = vpack.c.b16 %v1555, %v1551
    %v1692 = vpack.c.b16 %v1556, %v1552
    %v1693 = vpack.c.b16 %v1557, %v1553
    %v1694 = vpack.c.b16 %v1562, %v1558
    %v1695 = vpack.c.b16 %v1563, %v1559
    %v1696 = vpack.c.b16 %v1564, %v1560
    %v1697 = vpack.c.b16 %v1565, %v1561
    %v1698 = vpack.c.b16 %v1570, %v1566
    %v1699 = vpack.c.b16 %v1571, %v1567
    %v1700 = vpack.c.b16 %v1572, %v1568
    %v1701 = vpack.c.b16 %v1573, %v1569
    %1830 = vmatprep.subr.bf16.mxu0 %v1575
    %1831 = vmatpush1.bf16.msra.mxu0 %v1574
    %1832 = vmatprep.subr.bf16.mxu0 %v1579
    %1833 = vmatpush1.bf16.msra.mxu0 %v1578
    %1834 = vmatprep.subr.bf16.mxu0 %v1583
    %1835 = vmatpush1.bf16.msra.mxu0 %v1582
    %1836 = vmatprep.subr.bf16.mxu0 %v1587
    %1837 = vmatpush1.bf16.msra.mxu0 %v1586
    %1838 = vmatprep.subr.bf16.mxu0 %v1591
    %1839 = vmatpush1.bf16.msra.mxu0 %v1590
    %1840 = vmatprep.subr.bf16.mxu0 %v1595
    %1841 = vmatpush1.bf16.msra.mxu0 %v1594
    %1842 = vmatprep.subr.bf16.mxu0 %v1599
    %1843 = vmatpush1.bf16.msra.mxu0 %v1598
    %1844 = vmatprep.subr.bf16.mxu0 %v1603
    %1845 = vmatpush1.bf16.msra.mxu0 %v1602
    %1846 = vmatprep.subr.bf16.mxu0 %v1607
    %1847 = vmatpush1.bf16.msra.mxu0 %v1606
    %1848 = vmatprep.subr.bf16.mxu0 %v1611
    %1849 = vmatpush1.bf16.msra.mxu0 %v1610
    %1850 = vmatprep.subr.bf16.mxu0 %v1615
    %1851 = vmatpush1.bf16.msra.mxu0 %v1614
    %1852 = vmatprep.subr.bf16.mxu0 %v1619
    %1853 = vmatpush1.bf16.msra.mxu0 %v1618
    %1854 = vmatprep.subr.bf16.mxu0 %v1623
    %1855 = vmatpush1.bf16.msra.mxu0 %v1622
    %1856 = vmatprep.subr.bf16.mxu0 %v1627
    %1857 = vmatpush1.bf16.msra.mxu0 %v1626
    %1858 = vmatprep.subr.bf16.mxu0 %v1631
    %1859 = vmatpush1.bf16.msra.mxu0 %v1630
    %1860 = vmatprep.subr.bf16.mxu0 %v1635
    %1861 = vmatpush1.bf16.msra.mxu0 %v1634
    %1862 = vmatprep.mubr.bf16.mxu0 %v1009
    %1863 = vmatmul.mubr.bf16.gmra.mrb[0].mxu0 %v1008
    %v1864 = vpop.f32.mrb[0].mxu0
    %v1865 = vadd.f32 %v1173, %v1864
    %v1866 = vpop.f32.mrb[0].mxu0
    %v1867 = vadd.f32 %v1177, %v1866
    %v1868 = vpop.f32.mrb[0].mxu0
    %v1869 = vadd.f32 %v1173, %v1868
    %v1870 = vpop.f32.mrb[0].mxu0
    %v1871 = vadd.f32 %v1177, %v1870
    %1872 = vmatprep.mubr.bf16.mxu0 %v1013
    %1873 = vmatmul.mubr.bf16.gmra.mrb[0].mxu0 %v1012
    %v1874 = vpop.f32.mrb[0].mxu0
    %v1875 = vadd.f32 %v1173, %v1874
    %v1876 = vpop.f32.mrb[0].mxu0
    %v1877 = vadd.f32 %v1177, %v1876
    %v1878 = vpop.f32.mrb[0].mxu0
    %v1879 = vadd.f32 %v1173, %v1878
    %v1880 = vpop.f32.mrb[0].mxu0
    %v1881 = vadd.f32 %v1177, %v1880
    %1882 = vmatprep.mubr.bf16.mxu0 %v1017
    %1883 = vmatmul.mubr.bf16.gmra.mrb[0].mxu0 %v1016
    %v1884 = vpop.f32.mrb[0].mxu0
    %v1885 = vadd.f32 %v1173, %v1884
    %v1886 = vpop.f32.mrb[0].mxu0
    %v1887 = vadd.f32 %v1177, %v1886
    %v1888 = vpop.f32.mrb[0].mxu0
    %v1889 = vadd.f32 %v1173, %v1888
    %v1890 = vpop.f32.mrb[0].mxu0
    %v1891 = vadd.f32 %v1177, %v1890
    %1892 = vmatprep.mubr.bf16.mxu0 %v1021
    %1893 = vmatmul.mubr.bf16.gmra.mrb[0].mxu0 %v1020
    %v1894 = vpop.f32.mrb[0].mxu0
    %v1895 = vadd.f32 %v1173, %v1894
    %v1896 = vpop.f32.mrb[0].mxu0
    %v1897 = vadd.f32 %v1177, %v1896
    %v1898 = vpop.f32.mrb[0].mxu0
    %v1899 = vadd.f32 %v1173, %v1898
    %v1900 = vpop.f32.mrb[0].mxu0
    %v1901 = vadd.f32 %v1177, %v1900
    %1902 = vmatprep.mubr.bf16.mxu0 %v1025
    %1903 = vmatmul.mubr.bf16.gmra.mrb[0].mxu0 %v1024
    %v1904 = vpop.f32.mrb[0].mxu0
    %v1905 = vadd.f32 %v1173, %v1904
    %v1906 = vpop.f32.mrb[0].mxu0
    %v1907 = vadd.f32 %v1177, %v1906
    %v1908 = vpop.f32.mrb[0].mxu0
    %v1909 = vadd.f32 %v1173, %v1908
    %v1910 = vpop.f32.mrb[0].mxu0
    %v1911 = vadd.f32 %v1177, %v1910
    %1912 = vmatprep.mubr.bf16.mxu0 %v1029
    %1913 = vmatmul.mubr.bf16.gmra.mrb[0].mxu0 %v1028
    %v1914 = vpop.f32.mrb[0].mxu0
    %v1915 = vadd.f32 %v1173, %v1914
    %v1916 = vpop.f32.mrb[0].mxu0
    %v1917 = vadd.f32 %v1177, %v1916
    %v1918 = vpop.f32.mrb[0].mxu0
    %v1919 = vadd.f32 %v1173, %v1918
    %v1920 = vpop.f32.mrb[0].mxu0
    %v1921 = vadd.f32 %v1177, %v1920
    %1922 = vmatprep.mubr.bf16.mxu0 %v1033
    %1923 = vmatmul.mubr.bf16.gmra.mrb[0].mxu0 %v1032
    %v1924 = vpop.f32.mrb[0].mxu0
    %v1925 = vadd.f32 %v1173, %v1924
    %v1926 = vpop.f32.mrb[0].mxu0
    %v1927 = vadd.f32 %v1177, %v1926
    %v1928 = vpop.f32.mrb[0].mxu0
    %v1929 = vadd.f32 %v1173, %v1928
    %v1930 = vpop.f32.mrb[0].mxu0
    %v1931 = vadd.f32 %v1177, %v1930
    %1932 = vmatprep.mubr.bf16.mxu0 %v1037
    %1933 = vmatmul.mubr.bf16.gmra.mrb[0].mxu0 %v1036
    %v1934 = vpop.f32.mrb[0].mxu0
    %v1935 = vadd.f32 %v1173, %v1934
    %v1936 = vpop.f32.mrb[0].mxu0
    %v1937 = vadd.f32 %v1177, %v1936
    %v1938 = vpop.f32.mrb[0].mxu0
    %v1939 = vadd.f32 %v1173, %v1938
    %v1940 = vpop.f32.mrb[0].mxu0
    %v1941 = vadd.f32 %v1177, %v1940
    %1942 = vdwg.mxu0
    %1943 = vmatprep.subr.bf16.mxu0 %v1639
    %1944 = vmatpush1.bf16.msra.mxu0 %v1638
    %1945 = vmatprep.subr.bf16.mxu0 %v1643
    %1946 = vmatpush1.bf16.msra.mxu0 %v1642
    %1947 = vmatprep.subr.bf16.mxu0 %v1647
    %1948 = vmatpush1.bf16.msra.mxu0 %v1646
    %1949 = vmatprep.subr.bf16.mxu0 %v1651
    %1950 = vmatpush1.bf16.msra.mxu0 %v1650
    %1951 = vmatprep.subr.bf16.mxu0 %v1655
    %1952 = vmatpush1.bf16.msra.mxu0 %v1654
    %1953 = vmatprep.subr.bf16.mxu0 %v1659
    %1954 = vmatpush1.bf16.msra.mxu0 %v1658
    %1955 = vmatprep.subr.bf16.mxu0 %v1663
    %1956 = vmatpush1.bf16.msra.mxu0 %v1662
    %1957 = vmatprep.subr.bf16.mxu0 %v1667
    %1958 = vmatpush1.bf16.msra.mxu0 %v1666
    %1959 = vmatprep.subr.bf16.mxu0 %v1671
    %1960 = vmatpush1.bf16.msra.mxu0 %v1670
    %1961 = vmatprep.subr.bf16.mxu0 %v1675
    %1962 = vmatpush1.bf16.msra.mxu0 %v1674
    %1963 = vmatprep.subr.bf16.mxu0 %v1679
    %1964 = vmatpush1.bf16.msra.mxu0 %v1678
    %1965 = vmatprep.subr.bf16.mxu0 %v1683
    %1966 = vmatpush1.bf16.msra.mxu0 %v1682
    %1967 = vmatprep.subr.bf16.mxu0 %v1687
    %1968 = vmatpush1.bf16.msra.mxu0 %v1686
    %1969 = vmatprep.subr.bf16.mxu0 %v1691
    %1970 = vmatpush1.bf16.msra.mxu0 %v1690
    %1971 = vmatprep.subr.bf16.mxu0 %v1695
    %1972 = vmatpush1.bf16.msra.mxu0 %v1694
    %1973 = vmatprep.subr.bf16.mxu0 %v1699
    %1974 = vmatpush1.bf16.msra.mxu0 %v1698
    %1975 = vmatprep.mubr.bf16.mxu0 %v1011
    %1976 = vmatmul.mubr.bf16.gmra.mrb[0].mxu0 %v1010
    %v1977 = vpop.f32.mrb[0].mxu0
    %v1978 = vadd.f32 %v1865, %v1977
    %v1979 = vpop.f32.mrb[0].mxu0
    %v1980 = vadd.f32 %v1867, %v1979
    %v1981 = vpop.f32.mrb[0].mxu0
    %v1982 = vadd.f32 %v1869, %v1981
    %v1983 = vpop.f32.mrb[0].mxu0
    %v1984 = vadd.f32 %v1871, %v1983
    %1985 = vmatprep.mubr.bf16.mxu0 %v1015
    %1986 = vmatmul.mubr.bf16.gmra.mrb[0].mxu0 %v1014
    %v1987 = vpop.f32.mrb[0].mxu0
    %v1988 = vadd.f32 %v1875, %v1987
    %v1989 = vpop.f32.mrb[0].mxu0
    %v1990 = vadd.f32 %v1877, %v1989
    %v1991 = vpop.f32.mrb[0].mxu0
    %v1992 = vadd.f32 %v1879, %v1991
    %v1993 = vpop.f32.mrb[0].mxu0
    %v1994 = vadd.f32 %v1881, %v1993
    %1995 = vmatprep.mubr.bf16.mxu0 %v1019
    %1996 = vmatmul.mubr.bf16.gmra.mrb[0].mxu0 %v1018
    %v1997 = vpop.f32.mrb[0].mxu0
    %v1998 = vadd.f32 %v1885, %v1997
    %v1999 = vpop.f32.mrb[0].mxu0
    %v2000 = vadd.f32 %v1887, %v1999
    %v2001 = vpop.f32.mrb[0].mxu0
    %v2002 = vadd.f32 %v1889, %v2001
    %v2003 = vpop.f32.mrb[0].mxu0
    %v2004 = vadd.f32 %v1891, %v2003
    %2005 = vmatprep.mubr.bf16.mxu0 %v1023
    %2006 = vmatmul.mubr.bf16.gmra.mrb[0].mxu0 %v1022
    %v2007 = vpop.f32.mrb[0].mxu0
    %v2008 = vadd.f32 %v1895, %v2007
    %v2009 = vpop.f32.mrb[0].mxu0
    %v2010 = vadd.f32 %v1897, %v2009
    %v2011 = vpop.f32.mrb[0].mxu0
    %v2012 = vadd.f32 %v1899, %v2011
    %v2013 = vpop.f32.mrb[0].mxu0
    %v2014 = vadd.f32 %v1901, %v2013
    %2015 = vmatprep.mubr.bf16.mxu0 %v1027
    %2016 = vmatmul.mubr.bf16.gmra.mrb[0].mxu0 %v1026
    %v2017 = vpop.f32.mrb[0].mxu0
    %v2018 = vadd.f32 %v1905, %v2017
    %v2019 = vpop.f32.mrb[0].mxu0
    %v2020 = vadd.f32 %v1907, %v2019
    %v2021 = vpop.f32.mrb[0].mxu0
    %v2022 = vadd.f32 %v1909, %v2021
    %v2023 = vpop.f32.mrb[0].mxu0
    %v2024 = vadd.f32 %v1911, %v2023
    %2025 = vmatprep.mubr.bf16.mxu0 %v1031
    %2026 = vmatmul.mubr.bf16.gmra.mrb[0].mxu0 %v1030
    %v2027 = vpop.f32.mrb[0].mxu0
    %v2028 = vadd.f32 %v1915, %v2027
    %v2029 = vpop.f32.mrb[0].mxu0
    %v2030 = vadd.f32 %v1917, %v2029
    %v2031 = vpop.f32.mrb[0].mxu0
    %v2032 = vadd.f32 %v1919, %v2031
    %v2033 = vpop.f32.mrb[0].mxu0
    %v2034 = vadd.f32 %v1921, %v2033
    %2035 = vmatprep.mubr.bf16.mxu0 %v1035
    %2036 = vmatmul.mubr.bf16.gmra.mrb[0].mxu0 %v1034
    %v2037 = vpop.f32.mrb[0].mxu0
    %v2038 = vadd.f32 %v1925, %v2037
    %v2039 = vpop.f32.mrb[0].mxu0
    %v2040 = vadd.f32 %v1927, %v2039
    %v2041 = vpop.f32.mrb[0].mxu0
    %v2042 = vadd.f32 %v1929, %v2041
    %v2043 = vpop.f32.mrb[0].mxu0
    %v2044 = vadd.f32 %v1931, %v2043
    %2045 = vmatprep.mubr.bf16.mxu0 %v1039
    %2046 = vmatmul.mubr.bf16.gmra.mrb[0].mxu0 %v1038
    %v2047 = vpop.f32.mrb[0].mxu0
    %v2048 = vadd.f32 %v1935, %v2047
    %v2049 = vpop.f32.mrb[0].mxu0
    %v2050 = vadd.f32 %v1937, %v2049
    %v2051 = vpop.f32.mrb[0].mxu0
    %v2052 = vadd.f32 %v1939, %v2051
    %v2053 = vpop.f32.mrb[0].mxu0
    %v2054 = vadd.f32 %v1941, %v2053
    %2055 = vdwg.mxu0
    %2056 = vmatprep.subr.bf16.mxu0 %v1577
    %2057 = vmatpush1.bf16.msra.mxu0 %v1576
    %2058 = vmatprep.subr.bf16.mxu0 %v1581
    %2059 = vmatpush1.bf16.msra.mxu0 %v1580
    %2060 = vmatprep.subr.bf16.mxu0 %v1585
    %2061 = vmatpush1.bf16.msra.mxu0 %v1584
    %2062 = vmatprep.subr.bf16.mxu0 %v1589
    %2063 = vmatpush1.bf16.msra.mxu0 %v1588
    %2064 = vmatprep.subr.bf16.mxu0 %v1593
    %2065 = vmatpush1.bf16.msra.mxu0 %v1592
    %2066 = vmatprep.subr.bf16.mxu0 %v1597
    %2067 = vmatpush1.bf16.msra.mxu0 %v1596
    %2068 = vmatprep.subr.bf16.mxu0 %v1601
    %2069 = vmatpush1.bf16.msra.mxu0 %v1600
    %2070 = vmatprep.subr.bf16.mxu0 %v1605
    %2071 = vmatpush1.bf16.msra.mxu0 %v1604
    %2072 = vmatprep.subr.bf16.mxu0 %v1609
    %2073 = vmatpush1.bf16.msra.mxu0 %v1608
    %2074 = vmatprep.subr.bf16.mxu0 %v1613
    %2075 = vmatpush1.bf16.msra.mxu0 %v1612
    %2076 = vmatprep.subr.bf16.mxu0 %v1617
    %2077 = vmatpush1.bf16.msra.mxu0 %v1616
    %2078 = vmatprep.subr.bf16.mxu0 %v1621
    %2079 = vmatpush1.bf16.msra.mxu0 %v1620
    %2080 = vmatprep.subr.bf16.mxu0 %v1625
    %2081 = vmatpush1.bf16.msra.mxu0 %v1624
    %2082 = vmatprep.subr.bf16.mxu0 %v1629
    %2083 = vmatpush1.bf16.msra.mxu0 %v1628
    %2084 = vmatprep.subr.bf16.mxu0 %v1633
    %2085 = vmatpush1.bf16.msra.mxu0 %v1632
    %2086 = vmatprep.subr.bf16.mxu0 %v1637
    %2087 = vmatpush1.bf16.msra.mxu0 %v1636
    %2088 = vmatprep.mubr.bf16.mxu0 %v1009
    %2089 = vmatmul.mubr.bf16.gmra.mrb[0].mxu0 %v1008
    %v2090 = vpop.f32.mrb[0].mxu0
    %v2091 = vadd.f32 %v1181, %v2090
    %v2092 = vpop.f32.mrb[0].mxu0
    %v2093 = vadd.f32 %v1185, %v2092
    %v2094 = vpop.f32.mrb[0].mxu0
    %v2095 = vadd.f32 %v1181, %v2094
    %v2096 = vpop.f32.mrb[0].mxu0
    %v2097 = vadd.f32 %v1185, %v2096
    %2098 = vmatprep.mubr.bf16.mxu0 %v1013
    %2099 = vmatmul.mubr.bf16.gmra.mrb[0].mxu0 %v1012
    %v2100 = vpop.f32.mrb[0].mxu0
    %v2101 = vadd.f32 %v1181, %v2100
    %v2102 = vpop.f32.mrb[0].mxu0
    %v2103 = vadd.f32 %v1185, %v2102
    %v2104 = vpop.f32.mrb[0].mxu0
    %v2105 = vadd.f32 %v1181, %v2104
    %v2106 = vpop.f32.mrb[0].mxu0
    %v2107 = vadd.f32 %v1185, %v2106
    %2108 = vmatprep.mubr.bf16.mxu0 %v1017
    %2109 = vmatmul.mubr.bf16.gmra.mrb[0].mxu0 %v1016
    %v2110 = vpop.f32.mrb[0].mxu0
    %v2111 = vadd.f32 %v1181, %v2110
    %v2112 = vpop.f32.mrb[0].mxu0
    %v2113 = vadd.f32 %v1185, %v2112
    %v2114 = vpop.f32.mrb[0].mxu0
    %v2115 = vadd.f32 %v1181, %v2114
    %v2116 = vpop.f32.mrb[0].mxu0
    %v2117 = vadd.f32 %v1185, %v2116
    %2118 = vmatprep.mubr.bf16.mxu0 %v1021
    %2119 = vmatmul.mubr.bf16.gmra.mrb[0].mxu0 %v1020
    %v2120 = vpop.f32.mrb[0].mxu0
    %v2121 = vadd.f32 %v1181, %v2120
    %v2122 = vpop.f32.mrb[0].mxu0
    %v2123 = vadd.f32 %v1185, %v2122
    %v2124 = vpop.f32.mrb[0].mxu0
    %v2125 = vadd.f32 %v1181, %v2124
    %v2126 = vpop.f32.mrb[0].mxu0
    %v2127 = vadd.f32 %v1185, %v2126
    %2128 = vmatprep.mubr.bf16.mxu0 %v1025
    %2129 = vmatmul.mubr.bf16.gmra.mrb[0].mxu0 %v1024
    %v2130 = vpop.f32.mrb[0].mxu0
    %v2131 = vadd.f32 %v1181, %v2130
    %v2132 = vpop.f32.mrb[0].mxu0
    %v2133 = vadd.f32 %v1185, %v2132
    %v2134 = vpop.f32.mrb[0].mxu0
    %v2135 = vadd.f32 %v1181, %v2134
    %v2136 = vpop.f32.mrb[0].mxu0
    %v2137 = vadd.f32 %v1185, %v2136
    %2138 = vmatprep.mubr.bf16.mxu0 %v1029
    %2139 = vmatmul.mubr.bf16.gmra.mrb[0].mxu0 %v1028
    %v2140 = vpop.f32.mrb[0].mxu0
    %v2141 = vadd.f32 %v1181, %v2140
    %v2142 = vpop.f32.mrb[0].mxu0
    %v2143 = vadd.f32 %v1185, %v2142
    %v2144 = vpop.f32.mrb[0].mxu0
    %v2145 = vadd.f32 %v1181, %v2144
    %v2146 = vpop.f32.mrb[0].mxu0
    %v2147 = vadd.f32 %v1185, %v2146
    %2148 = vmatprep.mubr.bf16.mxu0 %v1033
    %2149 = vmatmul.mubr.bf16.gmra.mrb[0].mxu0 %v1032
    %v2150 = vpop.f32.mrb[0].mxu0
    %v2151 = vadd.f32 %v1181, %v2150
    %v2152 = vpop.f32.mrb[0].mxu0
    %v2153 = vadd.f32 %v1185, %v2152
    %v2154 = vpop.f32.mrb[0].mxu0
    %v2155 = vadd.f32 %v1181, %v2154
    %v2156 = vpop.f32.mrb[0].mxu0
    %v2157 = vadd.f32 %v1185, %v2156
    %2158 = vmatprep.mubr.bf16.mxu0 %v1037
    %2159 = vmatmul.mubr.bf16.gmra.mrb[0].mxu0 %v1036
    %v2160 = vpop.f32.mrb[0].mxu0
    %v2161 = vadd.f32 %v1181, %v2160
    %v2162 = vpop.f32.mrb[0].mxu0
    %v2163 = vadd.f32 %v1185, %v2162
    %v2164 = vpop.f32.mrb[0].mxu0
    %v2165 = vadd.f32 %v1181, %v2164
    %v2166 = vpop.f32.mrb[0].mxu0
    %v2167 = vadd.f32 %v1185, %v2166
    %2168 = vdwg.mxu0
    %2169 = vmatprep.subr.bf16.mxu0 %v1641
    %2170 = vmatpush1.bf16.msra.mxu0 %v1640
    %2171 = vmatprep.subr.bf16.mxu0 %v1645
    %2172 = vmatpush1.bf16.msra.mxu0 %v1644
    %2173 = vmatprep.subr.bf16.mxu0 %v1649
    %2174 = vmatpush1.bf16.msra.mxu0 %v1648
    %2175 = vmatprep.subr.bf16.mxu0 %v1653
    %2176 = vmatpush1.bf16.msra.mxu0 %v1652
    %2177 = vmatprep.subr.bf16.mxu0 %v1657
    %2178 = vmatpush1.bf16.msra.mxu0 %v1656
    %2179 = vmatprep.subr.bf16.mxu0 %v1661
    %2180 = vmatpush1.bf16.msra.mxu0 %v1660
    %2181 = vmatprep.subr.bf16.mxu0 %v1665
    %2182 = vmatpush1.bf16.msra.mxu0 %v1664
    %2183 = vmatprep.subr.bf16.mxu0 %v1669
    %2184 = vmatpush1.bf16.msra.mxu0 %v1668
    %2185 = vmatprep.subr.bf16.mxu0 %v1673
    %2186 = vmatpush1.bf16.msra.mxu0 %v1672
    %2187 = vmatprep.subr.bf16.mxu0 %v1677
    %2188 = vmatpush1.bf16.msra.mxu0 %v1676
    %2189 = vmatprep.subr.bf16.mxu0 %v1681
    %2190 = vmatpush1.bf16.msra.mxu0 %v1680
    %2191 = vmatprep.subr.bf16.mxu0 %v1685
    %2192 = vmatpush1.bf16.msra.mxu0 %v1684
    %2193 = vmatprep.subr.bf16.mxu0 %v1689
    %2194 = vmatpush1.bf16.msra.mxu0 %v1688
    %2195 = vmatprep.subr.bf16.mxu0 %v1693
    %2196 = vmatpush1.bf16.msra.mxu0 %v1692
    %2197 = vmatprep.subr.bf16.mxu0 %v1697
    %2198 = vmatpush1.bf16.msra.mxu0 %v1696
    %2199 = vmatprep.subr.bf16.mxu0 %v1701
    %2200 = vmatpush1.bf16.msra.mxu0 %v1700
    %2201 = vmatprep.mubr.bf16.mxu0 %v1011
    %2202 = vmatmul.mubr.bf16.gmra.mrb[0].mxu0 %v1010
    %v2203 = vpop.f32.mrb[0].mxu0
    %v2204 = vadd.f32 %v2091, %v2203
    %v2205 = vpop.f32.mrb[0].mxu0
    %v2206 = vadd.f32 %v2093, %v2205
    %v2207 = vpop.f32.mrb[0].mxu0
    %v2208 = vadd.f32 %v2095, %v2207
    %v2209 = vpop.f32.mrb[0].mxu0
    %v2210 = vadd.f32 %v2097, %v2209
    %2211 = vmatprep.mubr.bf16.mxu0 %v1015
    %2212 = vmatmul.mubr.bf16.gmra.mrb[0].mxu0 %v1014
    %v2213 = vpop.f32.mrb[0].mxu0
    %v2214 = vadd.f32 %v2101, %v2213
    %v2215 = vpop.f32.mrb[0].mxu0
    %v2216 = vadd.f32 %v2103, %v2215
    %v2217 = vpop.f32.mrb[0].mxu0
    %v2218 = vadd.f32 %v2105, %v2217
    %v2219 = vpop.f32.mrb[0].mxu0
    %v2220 = vadd.f32 %v2107, %v2219
    %2221 = vmatprep.mubr.bf16.mxu0 %v1019
    %2222 = vmatmul.mubr.bf16.gmra.mrb[0].mxu0 %v1018
    %v2223 = vpop.f32.mrb[0].mxu0
    %v2224 = vadd.f32 %v2111, %v2223
    %v2225 = vpop.f32.mrb[0].mxu0
    %v2226 = vadd.f32 %v2113, %v2225
    %v2227 = vpop.f32.mrb[0].mxu0
    %v2228 = vadd.f32 %v2115, %v2227
    %v2229 = vpop.f32.mrb[0].mxu0
    %v2230 = vadd.f32 %v2117, %v2229
    %2231 = vmatprep.mubr.bf16.mxu0 %v1023
    %2232 = vmatmul.mubr.bf16.gmra.mrb[0].mxu0 %v1022
    %v2233 = vpop.f32.mrb[0].mxu0
    %v2234 = vadd.f32 %v2121, %v2233
    %v2235 = vpop.f32.mrb[0].mxu0
    %v2236 = vadd.f32 %v2123, %v2235
    %v2237 = vpop.f32.mrb[0].mxu0
    %v2238 = vadd.f32 %v2125, %v2237
    %v2239 = vpop.f32.mrb[0].mxu0
    %v2240 = vadd.f32 %v2127, %v2239
    %2241 = vmatprep.mubr.bf16.mxu0 %v1027
    %2242 = vmatmul.mubr.bf16.gmra.mrb[0].mxu0 %v1026
    %v2243 = vpop.f32.mrb[0].mxu0
    %v2244 = vadd.f32 %v2131, %v2243
    %v2245 = vpop.f32.mrb[0].mxu0
    %v2246 = vadd.f32 %v2133, %v2245
    %v2247 = vpop.f32.mrb[0].mxu0
    %v2248 = vadd.f32 %v2135, %v2247
    %v2249 = vpop.f32.mrb[0].mxu0
    %v2250 = vadd.f32 %v2137, %v2249
    %2251 = vmatprep.mubr.bf16.mxu0 %v1031
    %2252 = vmatmul.mubr.bf16.gmra.mrb[0].mxu0 %v1030
    %v2253 = vpop.f32.mrb[0].mxu0
    %v2254 = vadd.f32 %v2141, %v2253
    %v2255 = vpop.f32.mrb[0].mxu0
    %v2256 = vadd.f32 %v2143, %v2255
    %v2257 = vpop.f32.mrb[0].mxu0
    %v2258 = vadd.f32 %v2145, %v2257
    %v2259 = vpop.f32.mrb[0].mxu0
    %v2260 = vadd.f32 %v2147, %v2259
    %2261 = vmatprep.mubr.bf16.mxu0 %v1035
    %2262 = vmatmul.mubr.bf16.gmra.mrb[0].mxu0 %v1034
    %v2263 = vpop.f32.mrb[0].mxu0
    %v2264 = vadd.f32 %v2151, %v2263
    %v2265 = vpop.f32.mrb[0].mxu0
    %v2266 = vadd.f32 %v2153, %v2265
    %v2267 = vpop.f32.mrb[0].mxu0
    %v2268 = vadd.f32 %v2155, %v2267
    %v2269 = vpop.f32.mrb[0].mxu0
    %v2270 = vadd.f32 %v2157, %v2269
    %2271 = vmatprep.mubr.bf16.mxu0 %v1039
    %2272 = vmatmul.mubr.bf16.gmra.mrb[0].mxu0 %v1038
    %v2273 = vpop.f32.mrb[0].mxu0
    %v2274 = vadd.f32 %v2161, %v2273
    %v2275 = vpop.f32.mrb[0].mxu0
    %v2276 = vadd.f32 %v2163, %v2275
    %v2277 = vpop.f32.mrb[0].mxu0
    %v2278 = vadd.f32 %v2165, %v2277
    %v2279 = vpop.f32.mrb[0].mxu0
    %v2280 = vadd.f32 %v2167, %v2279
    %2281 = vdwg.mxu0
    %v2282 = vadd.f32 %v1978, %v497
    %v2283 = vadd.f32 %v1980, %v499
    %v2284 = vadd.f32 %v2204, %v610
    %v2285 = vadd.f32 %v2206, %v612
    %v2286 = vadd.f32 %v1982, %v501
    %v2287 = vadd.f32 %v1984, %v503
    %v2288 = vadd.f32 %v2208, %v614
    %v2289 = vadd.f32 %v2210, %v616
    %v2290 = vadd.f32 %v1988, %v507
    %v2291 = vadd.f32 %v1990, %v509
    %v2292 = vadd.f32 %v2214, %v620
    %v2293 = vadd.f32 %v2216, %v622
    %v2294 = vadd.f32 %v1992, %v511
    %v2295 = vadd.f32 %v1994, %v513
    %v2296 = vadd.f32 %v2218, %v624
    %v2297 = vadd.f32 %v2220, %v626
    %v2298 = vadd.f32 %v1998, %v517
    %v2299 = vadd.f32 %v2000, %v519
    %v2300 = vadd.f32 %v2224, %v630
    %v2301 = vadd.f32 %v2226, %v632
    %v2302 = vadd.f32 %v2002, %v521
    %v2303 = vadd.f32 %v2004, %v523
    %v2304 = vadd.f32 %v2228, %v634
    %v2305 = vadd.f32 %v2230, %v636
    %v2306 = vadd.f32 %v2008, %v527
    %v2307 = vadd.f32 %v2010, %v529
    %v2308 = vadd.f32 %v2234, %v640
    %v2309 = vadd.f32 %v2236, %v642
    %v2310 = vadd.f32 %v2012, %v531
    %v2311 = vadd.f32 %v2014, %v533
    %v2312 = vadd.f32 %v2238, %v644
    %v2313 = vadd.f32 %v2240, %v646
    %v2314 = vadd.f32 %v2018, %v537
    %v2315 = vadd.f32 %v2020, %v539
    %v2316 = vadd.f32 %v2244, %v650
    %v2317 = vadd.f32 %v2246, %v652
    %v2318 = vadd.f32 %v2022, %v541
    %v2319 = vadd.f32 %v2024, %v543
    %v2320 = vadd.f32 %v2248, %v654
    %v2321 = vadd.f32 %v2250, %v656
    %v2322 = vadd.f32 %v2028, %v547
    %v2323 = vadd.f32 %v2030, %v549
    %v2324 = vadd.f32 %v2254, %v660
    %v2325 = vadd.f32 %v2256, %v662
    %v2326 = vadd.f32 %v2032, %v551
    %v2327 = vadd.f32 %v2034, %v553
    %v2328 = vadd.f32 %v2258, %v664
    %v2329 = vadd.f32 %v2260, %v666
    %v2330 = vadd.f32 %v2038, %v557
    %v2331 = vadd.f32 %v2040, %v559
    %v2332 = vadd.f32 %v2264, %v670
    %v2333 = vadd.f32 %v2266, %v672
    %v2334 = vadd.f32 %v2042, %v561
    %v2335 = vadd.f32 %v2044, %v563
    %v2336 = vadd.f32 %v2268, %v674
    %v2337 = vadd.f32 %v2270, %v676
    %v2338 = vadd.f32 %v2048, %v567
    %v2339 = vadd.f32 %v2050, %v569
    %v2340 = vadd.f32 %v2274, %v680
    %v2341 = vadd.f32 %v2276, %v682
    %v2342 = vadd.f32 %v2052, %v571
    %v2343 = vadd.f32 %v2054, %v573
    %v2344 = vadd.f32 %v2278, %v684
    %v2345 = vadd.f32 %v2280, %v686
    %v2346 = vadd.f32 %v2282, %v2283
    %v2347 = vadd.f32 %v2346, %v2284
    %v2348 = vadd.f32 %v2347, %v2285
    %2349 = vadd.xlane.f32.xlu0 %v2348
    %v2350 = vpop.xlane.xlu0 %2349
    %v2351 = vadd.f32 %v2286, %v2287
    %v2352 = vadd.f32 %v2351, %v2288
    %v2353 = vadd.f32 %v2352, %v2289
    %2354 = vadd.xlane.f32.xlu0 %v2353
    %v2355 = vpop.xlane.xlu0 %2354
    %v2356 = vadd.f32 %v2290, %v2291
    %v2357 = vadd.f32 %v2356, %v2292
    %v2358 = vadd.f32 %v2357, %v2293
    %2359 = vadd.xlane.f32.xlu0 %v2358
    %v2360 = vpop.xlane.xlu0 %2359
    %v2361 = vadd.f32 %v2294, %v2295
    %v2362 = vadd.f32 %v2361, %v2296
    %v2363 = vadd.f32 %v2362, %v2297
    %2364 = vadd.xlane.f32.xlu0 %v2363
    %v2365 = vpop.xlane.xlu0 %2364
    %v2366 = vadd.f32 %v2298, %v2299
    %v2367 = vadd.f32 %v2366, %v2300
    %v2368 = vadd.f32 %v2367, %v2301
    %2369 = vadd.xlane.f32.xlu0 %v2368
    %v2370 = vpop.xlane.xlu0 %2369
    %v2371 = vadd.f32 %v2302, %v2303
    %v2372 = vadd.f32 %v2371, %v2304
    %v2373 = vadd.f32 %v2372, %v2305
    %2374 = vadd.xlane.f32.xlu0 %v2373
    %v2375 = vpop.xlane.xlu0 %2374
    %v2376 = vadd.f32 %v2306, %v2307
    %v2377 = vadd.f32 %v2376, %v2308
    %v2378 = vadd.f32 %v2377, %v2309
    %2379 = vadd.xlane.f32.xlu0 %v2378
    %v2380 = vpop.xlane.xlu0 %2379
    %v2381 = vadd.f32 %v2310, %v2311
    %v2382 = vadd.f32 %v2381, %v2312
    %v2383 = vadd.f32 %v2382, %v2313
    %2384 = vadd.xlane.f32.xlu0 %v2383
    %v2385 = vpop.xlane.xlu0 %2384
    %v2386 = vadd.f32 %v2314, %v2315
    %v2387 = vadd.f32 %v2386, %v2316
    %v2388 = vadd.f32 %v2387, %v2317
    %2389 = vadd.xlane.f32.xlu0 %v2388
    %v2390 = vpop.xlane.xlu0 %2389
    %v2391 = vadd.f32 %v2318, %v2319
    %v2392 = vadd.f32 %v2391, %v2320
    %v2393 = vadd.f32 %v2392, %v2321
    %2394 = vadd.xlane.f32.xlu0 %v2393
    %v2395 = vpop.xlane.xlu0 %2394
    %v2396 = vadd.f32 %v2322, %v2323
    %v2397 = vadd.f32 %v2396, %v2324
    %v2398 = vadd.f32 %v2397, %v2325
    %2399 = vadd.xlane.f32.xlu0 %v2398
    %v2400 = vpop.xlane.xlu0 %2399
    %v2401 = vadd.f32 %v2326, %v2327
    %v2402 = vadd.f32 %v2401, %v2328
    %v2403 = vadd.f32 %v2402, %v2329
    %2404 = vadd.xlane.f32.xlu0 %v2403
    %v2405 = vpop.xlane.xlu0 %2404
    %v2406 = vadd.f32 %v2330, %v2331
    %v2407 = vadd.f32 %v2406, %v2332
    %v2408 = vadd.f32 %v2407, %v2333
    %2409 = vadd.xlane.f32.xlu0 %v2408
    %v2410 = vpop.xlane.xlu0 %2409
    %v2411 = vadd.f32 %v2334, %v2335
    %v2412 = vadd.f32 %v2411, %v2336
    %v2413 = vadd.f32 %v2412, %v2337
    %2414 = vadd.xlane.f32.xlu0 %v2413
    %v2415 = vpop.xlane.xlu0 %2414
    %v2416 = vadd.f32 %v2338, %v2339
    %v2417 = vadd.f32 %v2416, %v2340
    %v2418 = vadd.f32 %v2417, %v2341
    %2419 = vadd.xlane.f32.xlu0 %v2418
    %v2420 = vpop.xlane.xlu0 %2419
    %v2421 = vadd.f32 %v2342, %v2343
    %v2422 = vadd.f32 %v2421, %v2344
    %v2423 = vadd.f32 %v2422, %v2345
    %2424 = vadd.xlane.f32.xlu0 %v2423
    %v2425 = vpop.xlane.xlu0 %2424
    %v2426 = vrcp.pop 512.0
    %v2427 = vmul.f32 %v2350, %v2426
    %v2428 = vmul.f32 %v2355, %v2426
    %v2429 = vmul.f32 %v2360, %v2426
    %v2430 = vmul.f32 %v2365, %v2426
    %v2431 = vmul.f32 %v2370, %v2426
    %v2432 = vmul.f32 %v2375, %v2426
    %v2433 = vmul.f32 %v2380, %v2426
    %v2434 = vmul.f32 %v2385, %v2426
    %v2435 = vmul.f32 %v2390, %v2426
    %v2436 = vmul.f32 %v2395, %v2426
    %v2437 = vmul.f32 %v2400, %v2426
    %v2438 = vmul.f32 %v2405, %v2426
    %v2439 = vmul.f32 %v2410, %v2426
    %v2440 = vmul.f32 %v2415, %v2426
    %v2441 = vmul.f32 %v2420, %v2426
    %v2442 = vmul.f32 %v2425, %v2426
    %v2443 = vmul.f32 %v2282, %v2282
    %v2444 = vmul.f32 %v2283, %v2283
    %v2445 = vmul.f32 %v2284, %v2284
    %v2446 = vmul.f32 %v2285, %v2285
    %v2447 = vmul.f32 %v2286, %v2286
    %v2448 = vmul.f32 %v2287, %v2287
    %v2449 = vmul.f32 %v2288, %v2288
    %v2450 = vmul.f32 %v2289, %v2289
    %v2451 = vmul.f32 %v2290, %v2290
    %v2452 = vmul.f32 %v2291, %v2291
    %v2453 = vmul.f32 %v2292, %v2292
    %v2454 = vmul.f32 %v2293, %v2293
    %v2455 = vmul.f32 %v2294, %v2294
    %v2456 = vmul.f32 %v2295, %v2295
    %v2457 = vmul.f32 %v2296, %v2296
    %v2458 = vmul.f32 %v2297, %v2297
    %v2459 = vmul.f32 %v2298, %v2298
    %v2460 = vmul.f32 %v2299, %v2299
    %v2461 = vmul.f32 %v2300, %v2300
    %v2462 = vmul.f32 %v2301, %v2301
    %v2463 = vmul.f32 %v2302, %v2302
    %v2464 = vmul.f32 %v2303, %v2303
    %v2465 = vmul.f32 %v2304, %v2304
    %v2466 = vmul.f32 %v2305, %v2305
    %v2467 = vmul.f32 %v2306, %v2306
    %v2468 = vmul.f32 %v2307, %v2307
    %v2469 = vmul.f32 %v2308, %v2308
    %v2470 = vmul.f32 %v2309, %v2309
    %v2471 = vmul.f32 %v2310, %v2310
    %v2472 = vmul.f32 %v2311, %v2311
    %v2473 = vmul.f32 %v2312, %v2312
    %v2474 = vmul.f32 %v2313, %v2313
    %v2475 = vmul.f32 %v2314, %v2314
    %v2476 = vmul.f32 %v2315, %v2315
    %v2477 = vmul.f32 %v2316, %v2316
    %v2478 = vmul.f32 %v2317, %v2317
    %v2479 = vmul.f32 %v2318, %v2318
    %v2480 = vmul.f32 %v2319, %v2319
    %v2481 = vmul.f32 %v2320, %v2320
    %v2482 = vmul.f32 %v2321, %v2321
    %v2483 = vmul.f32 %v2322, %v2322
    %v2484 = vmul.f32 %v2323, %v2323
    %v2485 = vmul.f32 %v2324, %v2324
    %v2486 = vmul.f32 %v2325, %v2325
    %v2487 = vmul.f32 %v2326, %v2326
    %v2488 = vmul.f32 %v2327, %v2327
    %v2489 = vmul.f32 %v2328, %v2328
    %v2490 = vmul.f32 %v2329, %v2329
    %v2491 = vmul.f32 %v2330, %v2330
    %v2492 = vmul.f32 %v2331, %v2331
    %v2493 = vmul.f32 %v2332, %v2332
    %v2494 = vmul.f32 %v2333, %v2333
    %v2495 = vmul.f32 %v2334, %v2334
    %v2496 = vmul.f32 %v2335, %v2335
    %v2497 = vmul.f32 %v2336, %v2336
    %v2498 = vmul.f32 %v2337, %v2337
    %v2499 = vmul.f32 %v2338, %v2338
    %v2500 = vmul.f32 %v2339, %v2339
    %v2501 = vmul.f32 %v2340, %v2340
    %v2502 = vmul.f32 %v2341, %v2341
    %v2503 = vmul.f32 %v2342, %v2342
    %v2504 = vmul.f32 %v2343, %v2343
    %v2505 = vmul.f32 %v2344, %v2344
    %v2506 = vmul.f32 %v2345, %v2345
    %v2507 = vadd.f32 %v2443, %v2444
    %v2508 = vadd.f32 %v2507, %v2445
    %v2509 = vadd.f32 %v2508, %v2446
    %2510 = vadd.xlane.f32.xlu0 %v2509
    %v2511 = vpop.xlane.xlu0 %2510
    %v2512 = vadd.f32 %v2447, %v2448
    %v2513 = vadd.f32 %v2512, %v2449
    %v2514 = vadd.f32 %v2513, %v2450
    %2515 = vadd.xlane.f32.xlu0 %v2514
    %v2516 = vpop.xlane.xlu0 %2515
    %v2517 = vadd.f32 %v2451, %v2452
    %v2518 = vadd.f32 %v2517, %v2453
    %v2519 = vadd.f32 %v2518, %v2454
    %2520 = vadd.xlane.f32.xlu0 %v2519
    %v2521 = vpop.xlane.xlu0 %2520
    %v2522 = vadd.f32 %v2455, %v2456
    %v2523 = vadd.f32 %v2522, %v2457
    %v2524 = vadd.f32 %v2523, %v2458
    %2525 = vadd.xlane.f32.xlu0 %v2524
    %v2526 = vpop.xlane.xlu0 %2525
    %v2527 = vadd.f32 %v2459, %v2460
    %v2528 = vadd.f32 %v2527, %v2461
    %v2529 = vadd.f32 %v2528, %v2462
    %2530 = vadd.xlane.f32.xlu0 %v2529
    %v2531 = vpop.xlane.xlu0 %2530
    %v2532 = vadd.f32 %v2463, %v2464
    %v2533 = vadd.f32 %v2532, %v2465
    %v2534 = vadd.f32 %v2533, %v2466
    %2535 = vadd.xlane.f32.xlu0 %v2534
    %v2536 = vpop.xlane.xlu0 %2535
    %v2537 = vadd.f32 %v2467, %v2468
    %v2538 = vadd.f32 %v2537, %v2469
    %v2539 = vadd.f32 %v2538, %v2470
    %2540 = vadd.xlane.f32.xlu0 %v2539
    %v2541 = vpop.xlane.xlu0 %2540
    %v2542 = vadd.f32 %v2471, %v2472
    %v2543 = vadd.f32 %v2542, %v2473
    %v2544 = vadd.f32 %v2543, %v2474
    %2545 = vadd.xlane.f32.xlu0 %v2544
    %v2546 = vpop.xlane.xlu0 %2545
    %v2547 = vadd.f32 %v2475, %v2476
    %v2548 = vadd.f32 %v2547, %v2477
    %v2549 = vadd.f32 %v2548, %v2478
    %2550 = vadd.xlane.f32.xlu0 %v2549
    %v2551 = vpop.xlane.xlu0 %2550
    %v2552 = vadd.f32 %v2479, %v2480
    %v2553 = vadd.f32 %v2552, %v2481
    %v2554 = vadd.f32 %v2553, %v2482
    %2555 = vadd.xlane.f32.xlu0 %v2554
    %v2556 = vpop.xlane.xlu0 %2555
    %v2557 = vadd.f32 %v2483, %v2484
    %v2558 = vadd.f32 %v2557, %v2485
    %v2559 = vadd.f32 %v2558, %v2486
    %2560 = vadd.xlane.f32.xlu0 %v2559
    %v2561 = vpop.xlane.xlu0 %2560
    %v2562 = vadd.f32 %v2487, %v2488
    %v2563 = vadd.f32 %v2562, %v2489
    %v2564 = vadd.f32 %v2563, %v2490
    %2565 = vadd.xlane.f32.xlu0 %v2564
    %v2566 = vpop.xlane.xlu0 %2565
    %v2567 = vadd.f32 %v2491, %v2492
    %v2568 = vadd.f32 %v2567, %v2493
    %v2569 = vadd.f32 %v2568, %v2494
    %2570 = vadd.xlane.f32.xlu0 %v2569
    %v2571 = vpop.xlane.xlu0 %2570
    %v2572 = vadd.f32 %v2495, %v2496
    %v2573 = vadd.f32 %v2572, %v2497
    %v2574 = vadd.f32 %v2573, %v2498
    %2575 = vadd.xlane.f32.xlu0 %v2574
    %v2576 = vpop.xlane.xlu0 %2575
    %v2577 = vadd.f32 %v2499, %v2500
    %v2578 = vadd.f32 %v2577, %v2501
    %v2579 = vadd.f32 %v2578, %v2502
    %2580 = vadd.xlane.f32.xlu0 %v2579
    %v2581 = vpop.xlane.xlu0 %2580
    %v2582 = vadd.f32 %v2503, %v2504
    %v2583 = vadd.f32 %v2582, %v2505
    %v2584 = vadd.f32 %v2583, %v2506
    %2585 = vadd.xlane.f32.xlu0 %v2584
    %v2586 = vpop.xlane.xlu0 %2585
    %v2587 = vmul.f32 %v2511, %v2426
    %v2588 = vmul.f32 %v2516, %v2426
    %v2589 = vmul.f32 %v2521, %v2426
    %v2590 = vmul.f32 %v2526, %v2426
    %v2591 = vmul.f32 %v2531, %v2426
    %v2592 = vmul.f32 %v2536, %v2426
    %v2593 = vmul.f32 %v2541, %v2426
    %v2594 = vmul.f32 %v2546, %v2426
    %v2595 = vmul.f32 %v2551, %v2426
    %v2596 = vmul.f32 %v2556, %v2426
    %v2597 = vmul.f32 %v2561, %v2426
    %v2598 = vmul.f32 %v2566, %v2426
    %v2599 = vmul.f32 %v2571, %v2426
    %v2600 = vmul.f32 %v2576, %v2426
    %v2601 = vmul.f32 %v2581, %v2426
    %v2602 = vmul.f32 %v2586, %v2426
    %v2603 = vsub.f32 %v2282, %v2427
    %v2604 = vsub.f32 %v2283, %v2427
    %v2605 = vsub.f32 %v2284, %v2427
    %v2606 = vsub.f32 %v2285, %v2427
    %v2607 = vsub.f32 %v2286, %v2428
    %v2608 = vsub.f32 %v2287, %v2428
    %v2609 = vsub.f32 %v2288, %v2428
    %v2610 = vsub.f32 %v2289, %v2428
    %v2611 = vsub.f32 %v2290, %v2429
    %v2612 = vsub.f32 %v2291, %v2429
    %v2613 = vsub.f32 %v2292, %v2429
    %v2614 = vsub.f32 %v2293, %v2429
    %v2615 = vsub.f32 %v2294, %v2430
    %v2616 = vsub.f32 %v2295, %v2430
    %v2617 = vsub.f32 %v2296, %v2430
    %v2618 = vsub.f32 %v2297, %v2430
    %v2619 = vsub.f32 %v2298, %v2431
    %v2620 = vsub.f32 %v2299, %v2431
    %v2621 = vsub.f32 %v2300, %v2431
    %v2622 = vsub.f32 %v2301, %v2431
    %v2623 = vsub.f32 %v2302, %v2432
    %v2624 = vsub.f32 %v2303, %v2432
    %v2625 = vsub.f32 %v2304, %v2432
    %v2626 = vsub.f32 %v2305, %v2432
    %v2627 = vsub.f32 %v2306, %v2433
    %v2628 = vsub.f32 %v2307, %v2433
    %v2629 = vsub.f32 %v2308, %v2433
    %v2630 = vsub.f32 %v2309, %v2433
    %v2631 = vsub.f32 %v2310, %v2434
    %v2632 = vsub.f32 %v2311, %v2434
    %v2633 = vsub.f32 %v2312, %v2434
    %v2634 = vsub.f32 %v2313, %v2434
    %v2635 = vsub.f32 %v2314, %v2435
    %v2636 = vsub.f32 %v2315, %v2435
    %v2637 = vsub.f32 %v2316, %v2435
    %v2638 = vsub.f32 %v2317, %v2435
    %v2639 = vsub.f32 %v2318, %v2436
    %v2640 = vsub.f32 %v2319, %v2436
    %v2641 = vsub.f32 %v2320, %v2436
    %v2642 = vsub.f32 %v2321, %v2436
    %v2643 = vsub.f32 %v2322, %v2437
    %v2644 = vsub.f32 %v2323, %v2437
    %v2645 = vsub.f32 %v2324, %v2437
    %v2646 = vsub.f32 %v2325, %v2437
    %v2647 = vsub.f32 %v2326, %v2438
    %v2648 = vsub.f32 %v2327, %v2438
    %v2649 = vsub.f32 %v2328, %v2438
    %v2650 = vsub.f32 %v2329, %v2438
    %v2651 = vsub.f32 %v2330, %v2439
    %v2652 = vsub.f32 %v2331, %v2439
    %v2653 = vsub.f32 %v2332, %v2439
    %v2654 = vsub.f32 %v2333, %v2439
    %v2655 = vsub.f32 %v2334, %v2440
    %v2656 = vsub.f32 %v2335, %v2440
    %v2657 = vsub.f32 %v2336, %v2440
    %v2658 = vsub.f32 %v2337, %v2440
    %v2659 = vsub.f32 %v2338, %v2441
    %v2660 = vsub.f32 %v2339, %v2441
    %v2661 = vsub.f32 %v2340, %v2441
    %v2662 = vsub.f32 %v2341, %v2441
    %v2663 = vsub.f32 %v2342, %v2442
    %v2664 = vsub.f32 %v2343, %v2442
    %v2665 = vsub.f32 %v2344, %v2442
    %v2666 = vsub.f32 %v2345, %v2442
    %v2667 = vmul.f32 %v2427, %v2427
    %v2668 = vmul.f32 %v2428, %v2428
    %v2669 = vmul.f32 %v2429, %v2429
    %v2670 = vmul.f32 %v2430, %v2430
    %v2671 = vmul.f32 %v2431, %v2431
    %v2672 = vmul.f32 %v2432, %v2432
    %v2673 = vmul.f32 %v2433, %v2433
    %v2674 = vmul.f32 %v2434, %v2434
    %v2675 = vmul.f32 %v2435, %v2435
    %v2676 = vmul.f32 %v2436, %v2436
    %v2677 = vmul.f32 %v2437, %v2437
    %v2678 = vmul.f32 %v2438, %v2438
    %v2679 = vmul.f32 %v2439, %v2439
    %v2680 = vmul.f32 %v2440, %v2440
    %v2681 = vmul.f32 %v2441, %v2441
    %v2682 = vmul.f32 %v2442, %v2442
    %v2683 = vsub.f32 %v2587, %v2667
    %v2684 = vsub.f32 %v2588, %v2668
    %v2685 = vsub.f32 %v2589, %v2669
    %v2686 = vsub.f32 %v2590, %v2670
    %v2687 = vsub.f32 %v2591, %v2671
    %v2688 = vsub.f32 %v2592, %v2672
    %v2689 = vsub.f32 %v2593, %v2673
    %v2690 = vsub.f32 %v2594, %v2674
    %v2691 = vsub.f32 %v2595, %v2675
    %v2692 = vsub.f32 %v2596, %v2676
    %v2693 = vsub.f32 %v2597, %v2677
    %v2694 = vsub.f32 %v2598, %v2678
    %v2695 = vsub.f32 %v2599, %v2679
    %v2696 = vsub.f32 %v2600, %v2680
    %v2697 = vsub.f32 %v2601, %v2681
    %v2698 = vsub.f32 %v2602, %v2682
    %v2699 = vadd.f32 %v2683, 1e-05
    %v2700 = vadd.f32 %v2684, 1e-05
    %v2701 = vadd.f32 %v2685, 1e-05
    %v2702 = vadd.f32 %v2686, 1e-05
    %v2703 = vadd.f32 %v2687, 1e-05
    %v2704 = vadd.f32 %v2688, 1e-05
    %v2705 = vadd.f32 %v2689, 1e-05
    %v2706 = vadd.f32 %v2690, 1e-05
    %v2707 = vadd.f32 %v2691, 1e-05
    %v2708 = vadd.f32 %v2692, 1e-05
    %v2709 = vadd.f32 %v2693, 1e-05
    %v2710 = vadd.f32 %v2694, 1e-05
    %v2711 = vadd.f32 %v2695, 1e-05
    %v2712 = vadd.f32 %v2696, 1e-05
    %v2713 = vadd.f32 %v2697, 1e-05
    %v2714 = vadd.f32 %v2698, 1e-05
    %v2715 = vrsqrt.pop %v2699
    %v2716 = vrsqrt.pop %v2700
    %v2717 = vrsqrt.pop %v2701
    %v2718 = vrsqrt.pop %v2702
    %v2719 = vrsqrt.pop %v2703
    %v2720 = vrsqrt.pop %v2704
    %v2721 = vrsqrt.pop %v2705
    %v2722 = vrsqrt.pop %v2706
    %v2723 = vrsqrt.pop %v2707
    %v2724 = vrsqrt.pop %v2708
    %v2725 = vrsqrt.pop %v2709
    %v2726 = vrsqrt.pop %v2710
    %v2727 = vrsqrt.pop %v2711
    %v2728 = vrsqrt.pop %v2712
    %v2729 = vrsqrt.pop %v2713
    %v2730 = vrsqrt.pop %v2714
    %v2731 = vmul.f32 %v2603, %v2715
    %v2732 = vmul.f32 %v2604, %v2715
    %v2733 = vmul.f32 %v2605, %v2715
    %v2734 = vmul.f32 %v2606, %v2715
    %v2735 = vmul.f32 %v2607, %v2716
    %v2736 = vmul.f32 %v2608, %v2716
    %v2737 = vmul.f32 %v2609, %v2716
    %v2738 = vmul.f32 %v2610, %v2716
    %v2739 = vmul.f32 %v2611, %v2717
    %v2740 = vmul.f32 %v2612, %v2717
    %v2741 = vmul.f32 %v2613, %v2717
    %v2742 = vmul.f32 %v2614, %v2717
    %v2743 = vmul.f32 %v2615, %v2718
    %v2744 = vmul.f32 %v2616, %v2718
    %v2745 = vmul.f32 %v2617, %v2718
    %v2746 = vmul.f32 %v2618, %v2718
    %v2747 = vmul.f32 %v2619, %v2719
    %v2748 = vmul.f32 %v2620, %v2719
    %v2749 = vmul.f32 %v2621, %v2719
    %v2750 = vmul.f32 %v2622, %v2719
    %v2751 = vmul.f32 %v2623, %v2720
    %v2752 = vmul.f32 %v2624, %v2720
    %v2753 = vmul.f32 %v2625, %v2720
    %v2754 = vmul.f32 %v2626, %v2720
    %v2755 = vmul.f32 %v2627, %v2721
    %v2756 = vmul.f32 %v2628, %v2721
    %v2757 = vmul.f32 %v2629, %v2721
    %v2758 = vmul.f32 %v2630, %v2721
    %v2759 = vmul.f32 %v2631, %v2722
    %v2760 = vmul.f32 %v2632, %v2722
    %v2761 = vmul.f32 %v2633, %v2722
    %v2762 = vmul.f32 %v2634, %v2722
    %v2763 = vmul.f32 %v2635, %v2723
    %v2764 = vmul.f32 %v2636, %v2723
    %v2765 = vmul.f32 %v2637, %v2723
    %v2766 = vmul.f32 %v2638, %v2723
    %v2767 = vmul.f32 %v2639, %v2724
    %v2768 = vmul.f32 %v2640, %v2724
    %v2769 = vmul.f32 %v2641, %v2724
    %v2770 = vmul.f32 %v2642, %v2724
    %v2771 = vmul.f32 %v2643, %v2725
    %v2772 = vmul.f32 %v2644, %v2725
    %v2773 = vmul.f32 %v2645, %v2725
    %v2774 = vmul.f32 %v2646, %v2725
    %v2775 = vmul.f32 %v2647, %v2726
    %v2776 = vmul.f32 %v2648, %v2726
    %v2777 = vmul.f32 %v2649, %v2726
    %v2778 = vmul.f32 %v2650, %v2726
    %v2779 = vmul.f32 %v2651, %v2727
    %v2780 = vmul.f32 %v2652, %v2727
    %v2781 = vmul.f32 %v2653, %v2727
    %v2782 = vmul.f32 %v2654, %v2727
    %v2783 = vmul.f32 %v2655, %v2728
    %v2784 = vmul.f32 %v2656, %v2728
    %v2785 = vmul.f32 %v2657, %v2728
    %v2786 = vmul.f32 %v2658, %v2728
    %v2787 = vmul.f32 %v2659, %v2729
    %v2788 = vmul.f32 %v2660, %v2729
    %v2789 = vmul.f32 %v2661, %v2729
    %v2790 = vmul.f32 %v2662, %v2729
    %v2791 = vmul.f32 %v2663, %v2730
    %v2792 = vmul.f32 %v2664, %v2730
    %v2793 = vmul.f32 %v2665, %v2730
    %v2794 = vmul.f32 %v2666, %v2730
    %v2795 = vld [vmem:[%s5] sm:$0xf]
    %v2797 = vlaneseq
    %v2798 = vshrl.u32 %v2797, 7
    %v2799 = vsub.s32 0, %v2798
    %v2800 = vrot.slane %v2795, %v2799
    %v2801 = vlaneseq
    %v2802 = vshrl.u32 %v2801, 7
    %v2803 = vsub.s32 1, %v2802
    %v2804 = vrot.slane %v2795, %v2803
    %v2805 = vlaneseq
    %v2806 = vshrl.u32 %v2805, 7
    %v2807 = vsub.s32 2, %v2806
    %v2808 = vrot.slane %v2795, %v2807
    %v2809 = vlaneseq
    %v2810 = vshrl.u32 %v2809, 7
    %v2811 = vsub.s32 3, %v2810
    %v2812 = vrot.slane %v2795, %v2811
    %v2817 = vmul.f32 %v2731, %v2800
    %v2818 = vmul.f32 %v2732, %v2804
    %v2819 = vmul.f32 %v2733, %v2808
    %v2820 = vmul.f32 %v2734, %v2812
    %v2821 = vmul.f32 %v2735, %v2800
    %v2822 = vmul.f32 %v2736, %v2804
    %v2823 = vmul.f32 %v2737, %v2808
    %v2824 = vmul.f32 %v2738, %v2812
    %v2825 = vmul.f32 %v2739, %v2800
    %v2826 = vmul.f32 %v2740, %v2804
    %v2827 = vmul.f32 %v2741, %v2808
    %v2828 = vmul.f32 %v2742, %v2812
    %v2829 = vmul.f32 %v2743, %v2800
    %v2830 = vmul.f32 %v2744, %v2804
    %v2831 = vmul.f32 %v2745, %v2808
    %v2832 = vmul.f32 %v2746, %v2812
    %v2833 = vmul.f32 %v2747, %v2800
    %v2834 = vmul.f32 %v2748, %v2804
    %v2835 = vmul.f32 %v2749, %v2808
    %v2836 = vmul.f32 %v2750, %v2812
    %v2837 = vmul.f32 %v2751, %v2800
    %v2838 = vmul.f32 %v2752, %v2804
    %v2839 = vmul.f32 %v2753, %v2808
    %v2840 = vmul.f32 %v2754, %v2812
    %v2841 = vmul.f32 %v2755, %v2800
    %v2842 = vmul.f32 %v2756, %v2804
    %v2843 = vmul.f32 %v2757, %v2808
    %v2844 = vmul.f32 %v2758, %v2812
    %v2845 = vmul.f32 %v2759, %v2800
    %v2846 = vmul.f32 %v2760, %v2804
    %v2847 = vmul.f32 %v2761, %v2808
    %v2848 = vmul.f32 %v2762, %v2812
    %v2849 = vmul.f32 %v2763, %v2800
    %v2850 = vmul.f32 %v2764, %v2804
    %v2851 = vmul.f32 %v2765, %v2808
    %v2852 = vmul.f32 %v2766, %v2812
    %v2853 = vmul.f32 %v2767, %v2800
    %v2854 = vmul.f32 %v2768, %v2804
    %v2855 = vmul.f32 %v2769, %v2808
    %v2856 = vmul.f32 %v2770, %v2812
    %v2857 = vmul.f32 %v2771, %v2800
    %v2858 = vmul.f32 %v2772, %v2804
    %v2859 = vmul.f32 %v2773, %v2808
    %v2860 = vmul.f32 %v2774, %v2812
    %v2861 = vmul.f32 %v2775, %v2800
    %v2862 = vmul.f32 %v2776, %v2804
    %v2863 = vmul.f32 %v2777, %v2808
    %v2864 = vmul.f32 %v2778, %v2812
    %v2865 = vmul.f32 %v2779, %v2800
    %v2866 = vmul.f32 %v2780, %v2804
    %v2867 = vmul.f32 %v2781, %v2808
    %v2868 = vmul.f32 %v2782, %v2812
    %v2869 = vmul.f32 %v2783, %v2800
    %v2870 = vmul.f32 %v2784, %v2804
    %v2871 = vmul.f32 %v2785, %v2808
    %v2872 = vmul.f32 %v2786, %v2812
    %v2873 = vmul.f32 %v2787, %v2800
    %v2874 = vmul.f32 %v2788, %v2804
    %v2875 = vmul.f32 %v2789, %v2808
    %v2876 = vmul.f32 %v2790, %v2812
    %v2877 = vmul.f32 %v2791, %v2800
    %v2878 = vmul.f32 %v2792, %v2804
    %v2879 = vmul.f32 %v2793, %v2808
    %v2880 = vmul.f32 %v2794, %v2812
    %v2881 = vld [vmem:[%s6] sm:$0xf]
    %v2883 = vlaneseq
    %v2884 = vshrl.u32 %v2883, 7
    %v2885 = vsub.s32 0, %v2884
    %v2886 = vrot.slane %v2881, %v2885
    %v2887 = vlaneseq
    %v2888 = vshrl.u32 %v2887, 7
    %v2889 = vsub.s32 1, %v2888
    %v2890 = vrot.slane %v2881, %v2889
    %v2891 = vlaneseq
    %v2892 = vshrl.u32 %v2891, 7
    %v2893 = vsub.s32 2, %v2892
    %v2894 = vrot.slane %v2881, %v2893
    %v2895 = vlaneseq
    %v2896 = vshrl.u32 %v2895, 7
    %v2897 = vsub.s32 3, %v2896
    %v2898 = vrot.slane %v2881, %v2897
    %v2903 = vadd.f32 %v2817, %v2886
    %v2904 = vadd.f32 %v2818, %v2890
    %v2905 = vadd.f32 %v2819, %v2894
    %v2906 = vadd.f32 %v2820, %v2898
    %v2907 = vadd.f32 %v2821, %v2886
    %v2908 = vadd.f32 %v2822, %v2890
    %v2909 = vadd.f32 %v2823, %v2894
    %v2910 = vadd.f32 %v2824, %v2898
    %v2911 = vadd.f32 %v2825, %v2886
    %v2912 = vadd.f32 %v2826, %v2890
    %v2913 = vadd.f32 %v2827, %v2894
    %v2914 = vadd.f32 %v2828, %v2898
    %v2915 = vadd.f32 %v2829, %v2886
    %v2916 = vadd.f32 %v2830, %v2890
    %v2917 = vadd.f32 %v2831, %v2894
    %v2918 = vadd.f32 %v2832, %v2898
    %v2919 = vadd.f32 %v2833, %v2886
    %v2920 = vadd.f32 %v2834, %v2890
    %v2921 = vadd.f32 %v2835, %v2894
    %v2922 = vadd.f32 %v2836, %v2898
    %v2923 = vadd.f32 %v2837, %v2886
    %v2924 = vadd.f32 %v2838, %v2890
    %v2925 = vadd.f32 %v2839, %v2894
    %v2926 = vadd.f32 %v2840, %v2898
    %v2927 = vadd.f32 %v2841, %v2886
    %v2928 = vadd.f32 %v2842, %v2890
    %v2929 = vadd.f32 %v2843, %v2894
    %v2930 = vadd.f32 %v2844, %v2898
    %v2931 = vadd.f32 %v2845, %v2886
    %v2932 = vadd.f32 %v2846, %v2890
    %v2933 = vadd.f32 %v2847, %v2894
    %v2934 = vadd.f32 %v2848, %v2898
    %v2935 = vadd.f32 %v2849, %v2886
    %v2936 = vadd.f32 %v2850, %v2890
    %v2937 = vadd.f32 %v2851, %v2894
    %v2938 = vadd.f32 %v2852, %v2898
    %v2939 = vadd.f32 %v2853, %v2886
    %v2940 = vadd.f32 %v2854, %v2890
    %v2941 = vadd.f32 %v2855, %v2894
    %v2942 = vadd.f32 %v2856, %v2898
    %v2943 = vadd.f32 %v2857, %v2886
    %v2944 = vadd.f32 %v2858, %v2890
    %v2945 = vadd.f32 %v2859, %v2894
    %v2946 = vadd.f32 %v2860, %v2898
    %v2947 = vadd.f32 %v2861, %v2886
    %v2948 = vadd.f32 %v2862, %v2890
    %v2949 = vadd.f32 %v2863, %v2894
    %v2950 = vadd.f32 %v2864, %v2898
    %v2951 = vadd.f32 %v2865, %v2886
    %v2952 = vadd.f32 %v2866, %v2890
    %v2953 = vadd.f32 %v2867, %v2894
    %v2954 = vadd.f32 %v2868, %v2898
    %v2955 = vadd.f32 %v2869, %v2886
    %v2956 = vadd.f32 %v2870, %v2890
    %v2957 = vadd.f32 %v2871, %v2894
    %v2958 = vadd.f32 %v2872, %v2898
    %v2959 = vadd.f32 %v2873, %v2886
    %v2960 = vadd.f32 %v2874, %v2890
    %v2961 = vadd.f32 %v2875, %v2894
    %v2962 = vadd.f32 %v2876, %v2898
    %v2963 = vadd.f32 %v2877, %v2886
    %v2964 = vadd.f32 %v2878, %v2890
    %v2965 = vadd.f32 %v2879, %v2894
    %v2966 = vadd.f32 %v2880, %v2898
    %2967 = vst [vmem:[%s10] sm:$0xff] %v2903
    %2968 = vst [vmem:[%s10 + $0x8] sm:$0xff] %v2904
    %2969 = vst [vmem:[%s10 + $0x10] sm:$0xff] %v2905
    %2970 = vst [vmem:[%s10 + $0x18] sm:$0xff] %v2906
    %2971 = vst [vmem:[%s10 + $0x20] sm:$0xff] %v2907
    %2972 = vst [vmem:[%s10 + $0x28] sm:$0xff] %v2908
    %2973 = vst [vmem:[%s10 + $0x30] sm:$0xff] %v2909
    %2974 = vst [vmem:[%s10 + $0x38] sm:$0xff] %v2910
    %2975 = vst [vmem:[%s10 + $0x40] sm:$0xff] %v2911
    %2976 = vst [vmem:[%s10 + $0x48] sm:$0xff] %v2912
    %2977 = vst [vmem:[%s10 + $0x50] sm:$0xff] %v2913
    %2978 = vst [vmem:[%s10 + $0x58] sm:$0xff] %v2914
    %2979 = vst [vmem:[%s10 + $0x60] sm:$0xff] %v2915
    %2980 = vst [vmem:[%s10 + $0x68] sm:$0xff] %v2916
    %2981 = vst [vmem:[%s10 + $0x70] sm:$0xff] %v2917
    %2982 = vst [vmem:[%s10 + $0x78] sm:$0xff] %v2918
    %2983 = vst [vmem:[%s10 + $0x80] sm:$0xff] %v2919
    %2984 = vst [vmem:[%s10 + $0x88] sm:$0xff] %v2920
    %2985 = vst [vmem:[%s10 + $0x90] sm:$0xff] %v2921
    %2986 = vst [vmem:[%s10 + $0x98] sm:$0xff] %v2922
    %2987 = vst [vmem:[%s10 + $0xa0] sm:$0xff] %v2923
    %2988 = vst [vmem:[%s10 + $0xa8] sm:$0xff] %v2924
    %2989 = vst [vmem:[%s10 + $0xb0] sm:$0xff] %v2925
    %2990 = vst [vmem:[%s10 + $0xb8] sm:$0xff] %v2926
    %2991 = vst [vmem:[%s10 + $0xc0] sm:$0xff] %v2927
    %2992 = vst [vmem:[%s10 + $0xc8] sm:$0xff] %v2928
    %2993 = vst [vmem:[%s10 + $0xd0] sm:$0xff] %v2929
    %2994 = vst [vmem:[%s10 + $0xd8] sm:$0xff] %v2930
    %2995 = vst [vmem:[%s10 + $0xe0] sm:$0xff] %v2931
    %2996 = vst [vmem:[%s10 + $0xe8] sm:$0xff] %v2932
    %2997 = vst [vmem:[%s10 + $0xf0] sm:$0xff] %v2933
    %2998 = vst [vmem:[%s10 + $0xf8] sm:$0xff] %v2934
    %2999 = vst [vmem:[%s10 + $0x100] sm:$0xff] %v2935
    %3000 = vst [vmem:[%s10 + $0x108] sm:$0xff] %v2936
    %3001 = vst [vmem:[%s10 + $0x110] sm:$0xff] %v2937
    %3002 = vst [vmem:[%s10 + $0x118] sm:$0xff] %v2938
    %3003 = vst [vmem:[%s10 + $0x120] sm:$0xff] %v2939
    %3004 = vst [vmem:[%s10 + $0x128] sm:$0xff] %v2940
    %3005 = vst [vmem:[%s10 + $0x130] sm:$0xff] %v2941
    %3006 = vst [vmem:[%s10 + $0x138] sm:$0xff] %v2942
    %3007 = vst [vmem:[%s10 + $0x140] sm:$0xff] %v2943
    %3008 = vst [vmem:[%s10 + $0x148] sm:$0xff] %v2944
    %3009 = vst [vmem:[%s10 + $0x150] sm:$0xff] %v2945
    %3010 = vst [vmem:[%s10 + $0x158] sm:$0xff] %v2946
    %3011 = vst [vmem:[%s10 + $0x160] sm:$0xff] %v2947
    %3012 = vst [vmem:[%s10 + $0x168] sm:$0xff] %v2948
    %3013 = vst [vmem:[%s10 + $0x170] sm:$0xff] %v2949
    %3014 = vst [vmem:[%s10 + $0x178] sm:$0xff] %v2950
    %3015 = vst [vmem:[%s10 + $0x180] sm:$0xff] %v2951
    %3016 = vst [vmem:[%s10 + $0x188] sm:$0xff] %v2952
    %3017 = vst [vmem:[%s10 + $0x190] sm:$0xff] %v2953
    %3018 = vst [vmem:[%s10 + $0x198] sm:$0xff] %v2954
    %3019 = vst [vmem:[%s10 + $0x1a0] sm:$0xff] %v2955
    %3020 = vst [vmem:[%s10 + $0x1a8] sm:$0xff] %v2956
    %3021 = vst [vmem:[%s10 + $0x1b0] sm:$0xff] %v2957
    %3022 = vst [vmem:[%s10 + $0x1b8] sm:$0xff] %v2958
    %3023 = vst [vmem:[%s10 + $0x1c0] sm:$0xff] %v2959
    %3024 = vst [vmem:[%s10 + $0x1c8] sm:$0xff] %v2960
    %3025 = vst [vmem:[%s10 + $0x1d0] sm:$0xff] %v2961
    %3026 = vst [vmem:[%s10 + $0x1d8] sm:$0xff] %v2962
    %3027 = vst [vmem:[%s10 + $0x1e0] sm:$0xff] %v2963
    %3028 = vst [vmem:[%s10 + $0x1e8] sm:$0xff] %v2964
    %3029 = vst [vmem:[%s10 + $0x1f0] sm:$0xff] %v2965
    %3030 = vst [vmem:[%s10 + $0x1f8] sm:$0xff] %v2966
    %v3031 = vld [vmem:[%s7] sm:$0x1]
    %v3032 = vpack.c.bf16 %v2907, %v2903
    %v3033 = vpack.c.bf16 %v2908, %v2904
    %v3034 = vpack.c.bf16 %v2909, %v2905
    %v3035 = vpack.c.bf16 %v2910, %v2906
    %v3036 = vpack.c.bf16 %v2915, %v2911
    %v3037 = vpack.c.bf16 %v2916, %v2912
    %v3038 = vpack.c.bf16 %v2917, %v2913
    %v3039 = vpack.c.bf16 %v2918, %v2914
    %v3040 = vpack.c.bf16 %v2923, %v2919
    %v3041 = vpack.c.bf16 %v2924, %v2920
    %v3042 = vpack.c.bf16 %v2925, %v2921
    %v3043 = vpack.c.bf16 %v2926, %v2922
    %v3044 = vpack.c.bf16 %v2931, %v2927
    %v3045 = vpack.c.bf16 %v2932, %v2928
    %v3046 = vpack.c.bf16 %v2933, %v2929
    %v3047 = vpack.c.bf16 %v2934, %v2930
    %v3048 = vpack.c.bf16 %v2939, %v2935
    %v3049 = vpack.c.bf16 %v2940, %v2936
    %v3050 = vpack.c.bf16 %v2941, %v2937
    %v3051 = vpack.c.bf16 %v2942, %v2938
    %v3052 = vpack.c.bf16 %v2947, %v2943
    %v3053 = vpack.c.bf16 %v2948, %v2944
    %v3054 = vpack.c.bf16 %v2949, %v2945
    %v3055 = vpack.c.bf16 %v2950, %v2946
    %v3056 = vpack.c.bf16 %v2955, %v2951
    %v3057 = vpack.c.bf16 %v2956, %v2952
    %v3058 = vpack.c.bf16 %v2957, %v2953
    %v3059 = vpack.c.bf16 %v2958, %v2954
    %v3060 = vpack.c.bf16 %v2963, %v2959
    %v3061 = vpack.c.bf16 %v2964, %v2960
    %v3062 = vpack.c.bf16 %v2965, %v2961
    %v3063 = vpack.c.bf16 %v2966, %v2962
    %3064 = vmatprep.subr.bf16.mxu0 %v3033
    %3065 = vmatpush1.bf16.msra.mxu0 %v3032
    %3066 = vmatprep.subr.bf16.mxu0 %v3037
    %3067 = vmatpush1.bf16.msra.mxu0 %v3036
    %3068 = vmatprep.subr.bf16.mxu0 %v3041
    %3069 = vmatpush1.bf16.msra.mxu0 %v3040
    %3070 = vmatprep.subr.bf16.mxu0 %v3045
    %3071 = vmatpush1.bf16.msra.mxu0 %v3044
    %3072 = vmatprep.subr.bf16.mxu0 %v3049
    %3073 = vmatpush1.bf16.msra.mxu0 %v3048
    %3074 = vmatprep.subr.bf16.mxu0 %v3053
    %3075 = vmatpush1.bf16.msra.mxu0 %v3052
    %3076 = vmatprep.subr.bf16.mxu0 %v3057
    %3077 = vmatpush1.bf16.msra.mxu0 %v3056
    %3078 = vmatprep.subr.bf16.mxu0 %v3061
    %3079 = vmatpush1.bf16.msra.mxu0 %v3060
    %3080 = vmatprep.subr.bf16.mxu0 0
    %3081 = vmatpush1.bf16.msra.mxu0 0
    %3082 = vmatprep.subr.bf16.mxu0 0
    %3083 = vmatpush1.bf16.msra.mxu0 0
    %3084 = vmatprep.subr.bf16.mxu0 0
    %3085 = vmatpush1.bf16.msra.mxu0 0
    %3086 = vmatprep.subr.bf16.mxu0 0
    %3087 = vmatpush1.bf16.msra.mxu0 0
    %3088 = vmatprep.subr.bf16.mxu0 0
    %3089 = vmatpush1.bf16.msra.mxu0 0
    %3090 = vmatprep.subr.bf16.mxu0 0
    %3091 = vmatpush1.bf16.msra.mxu0 0
    %3092 = vmatprep.subr.bf16.mxu0 0
    %3093 = vmatpush1.bf16.msra.mxu0 0
    %3094 = vmatprep.subr.bf16.mxu0 0
    %3095 = vmatpush1.bf16.msra.mxu0 0
    %3096 = vmatprep.mubr.bf16.mxu0 0
    %3097 = vmatmul.mubr.bf16.gmra.mrb[0].mxu0 %v3031
    %v3098 = vpop.f32.mrb[0].mxu0
    %v3099 = vadd.f32 0.0, %v3098
    %v3100 = vpop.f32.mrb[0].mxu0
    %v3101 = vadd.f32 0.0, %v3100
    %v3102 = vpop.f32.mrb[0].mxu0
    %v3103 = vpop.f32.mrb[0].mxu0
    %3104 = vdwg.mxu0
    %3105 = vmatprep.subr.bf16.mxu0 %v3035
    %3106 = vmatpush1.bf16.msra.mxu0 %v3034
    %3107 = vmatprep.subr.bf16.mxu0 %v3039
    %3108 = vmatpush1.bf16.msra.mxu0 %v3038
    %3109 = vmatprep.subr.bf16.mxu0 %v3043
    %3110 = vmatpush1.bf16.msra.mxu0 %v3042
    %3111 = vmatprep.subr.bf16.mxu0 %v3047
    %3112 = vmatpush1.bf16.msra.mxu0 %v3046
    %3113 = vmatprep.subr.bf16.mxu0 %v3051
    %3114 = vmatpush1.bf16.msra.mxu0 %v3050
    %3115 = vmatprep.subr.bf16.mxu0 %v3055
    %3116 = vmatpush1.bf16.msra.mxu0 %v3054
    %3117 = vmatprep.subr.bf16.mxu0 %v3059
    %3118 = vmatpush1.bf16.msra.mxu0 %v3058
    %3119 = vmatprep.subr.bf16.mxu0 %v3063
    %3120 = vmatpush1.bf16.msra.mxu0 %v3062
    %3121 = vmatprep.subr.bf16.mxu0 0
    %3122 = vmatpush1.bf16.msra.mxu0 0
    %3123 = vmatprep.subr.bf16.mxu0 0
    %3124 = vmatpush1.bf16.msra.mxu0 0
    %3125 = vmatprep.subr.bf16.mxu0 0
    %3126 = vmatpush1.bf16.msra.mxu0 0
    %3127 = vmatprep.subr.bf16.mxu0 0
    %3128 = vmatpush1.bf16.msra.mxu0 0
    %3129 = vmatprep.subr.bf16.mxu0 0
    %3130 = vmatpush1.bf16.msra.mxu0 0
    %3131 = vmatprep.subr.bf16.mxu0 0
    %3132 = vmatpush1.bf16.msra.mxu0 0
    %3133 = vmatprep.subr.bf16.mxu0 0
    %3134 = vmatpush1.bf16.msra.mxu0 0
    %3135 = vmatprep.subr.bf16.mxu0 0
    %3136 = vmatpush1.bf16.msra.mxu0 0
    %3137 = vmatprep.mubr.bf16.mxu0 0
    %3138 = vmatmul.mubr.bf16.gmra.mrb[0].mxu0 %v3031
    %v3139 = vpop.f32.mrb[0].mxu0
    %v3140 = vadd.f32 0.0, %v3139
    %v3141 = vpop.f32.mrb[0].mxu0
    %v3142 = vadd.f32 0.0, %v3141
    %v3143 = vpop.f32.mrb[0].mxu0
    %v3144 = vpop.f32.mrb[0].mxu0
    %3145 = vdwg.mxu0
    %v3146 = vpack.c.bf16 %v3099, %v3099
    %v3147 = vpack.c.bf16 %v3101, %v3101
    %v3148 = vpack.c.bf16 %v3140, %v3140
    %v3149 = vpack.c.bf16 %v3142, %v3142
    %v3150 = vld [vmem:[%s8] sm:$0xf]
    %v3151 = vld [vmem:[%s8 + $0x4] sm:$0xf]
    %v3152 = vld [vmem:[%s8 + $0x8] sm:$0xf]
    %v3153 = vld [vmem:[%s8 + $0xc] sm:$0xf]
    %v3154 = vld [vmem:[%s8 + $0x10] sm:$0xf]
    %v3155 = vld [vmem:[%s8 + $0x14] sm:$0xf]
    %v3156 = vld [vmem:[%s8 + $0x18] sm:$0xf]
    %v3157 = vld [vmem:[%s8 + $0x1c] sm:$0xf]
    %v3158 = vld [vmem:[%s8 + $0x20] sm:$0xf]
    %v3159 = vld [vmem:[%s8 + $0x24] sm:$0xf]
    %v3160 = vld [vmem:[%s8 + $0x28] sm:$0xf]
    %v3161 = vld [vmem:[%s8 + $0x2c] sm:$0xf]
    %v3162 = vld [vmem:[%s8 + $0x30] sm:$0xf]
    %v3163 = vld [vmem:[%s8 + $0x34] sm:$0xf]
    %v3164 = vld [vmem:[%s8 + $0x38] sm:$0xf]
    %v3165 = vld [vmem:[%s8 + $0x3c] sm:$0xf]
    %v3166 = vld [vmem:[%s8 + $0x40] sm:$0xf]
    %v3167 = vld [vmem:[%s8 + $0x44] sm:$0xf]
    %v3168 = vld [vmem:[%s8 + $0x48] sm:$0xf]
    %v3169 = vld [vmem:[%s8 + $0x4c] sm:$0xf]
    %v3170 = vld [vmem:[%s8 + $0x50] sm:$0xf]
    %v3171 = vld [vmem:[%s8 + $0x54] sm:$0xf]
    %v3172 = vld [vmem:[%s8 + $0x58] sm:$0xf]
    %v3173 = vld [vmem:[%s8 + $0x5c] sm:$0xf]
    %v3174 = vld [vmem:[%s8 + $0x60] sm:$0xf]
    %v3175 = vld [vmem:[%s8 + $0x64] sm:$0xf]
    %v3176 = vld [vmem:[%s8 + $0x68] sm:$0xf]
    %v3177 = vld [vmem:[%s8 + $0x6c] sm:$0xf]
    %v3178 = vld [vmem:[%s8 + $0x70] sm:$0xf]
    %v3179 = vld [vmem:[%s8 + $0x74] sm:$0xf]
    %v3180 = vld [vmem:[%s8 + $0x78] sm:$0xf]
    %v3181 = vld [vmem:[%s8 + $0x7c] sm:$0xf]
    %v3182 = vld [vmem:[%s8 + $0x80] sm:$0xf]
    %v3183 = vld [vmem:[%s8 + $0x84] sm:$0xf]
    %v3184 = vld [vmem:[%s8 + $0x88] sm:$0xf]
    %v3185 = vld [vmem:[%s8 + $0x8c] sm:$0xf]
    %v3186 = vld [vmem:[%s8 + $0x90] sm:$0xf]
    %v3187 = vld [vmem:[%s8 + $0x94] sm:$0xf]
    %v3188 = vld [vmem:[%s8 + $0x98] sm:$0xf]
    %v3189 = vld [vmem:[%s8 + $0x9c] sm:$0xf]
    %v3190 = vld [vmem:[%s8 + $0xa0] sm:$0xf]
    %v3191 = vld [vmem:[%s8 + $0xa4] sm:$0xf]
    %v3192 = vld [vmem:[%s8 + $0xa8] sm:$0xf]
    %v3193 = vld [vmem:[%s8 + $0xac] sm:$0xf]
    %v3194 = vld [vmem:[%s8 + $0xb0] sm:$0xf]
    %v3195 = vld [vmem:[%s8 + $0xb4] sm:$0xf]
    %v3196 = vld [vmem:[%s8 + $0xb8] sm:$0xf]
    %v3197 = vld [vmem:[%s8 + $0xbc] sm:$0xf]
    %v3198 = vld [vmem:[%s8 + $0xc0] sm:$0xf]
    %v3199 = vld [vmem:[%s8 + $0xc4] sm:$0xf]
    %v3200 = vld [vmem:[%s8 + $0xc8] sm:$0xf]
    %v3201 = vld [vmem:[%s8 + $0xcc] sm:$0xf]
    %v3202 = vld [vmem:[%s8 + $0xd0] sm:$0xf]
    %v3203 = vld [vmem:[%s8 + $0xd4] sm:$0xf]
    %v3204 = vld [vmem:[%s8 + $0xd8] sm:$0xf]
    %v3205 = vld [vmem:[%s8 + $0xdc] sm:$0xf]
    %v3206 = vld [vmem:[%s8 + $0xe0] sm:$0xf]
    %v3207 = vld [vmem:[%s8 + $0xe4] sm:$0xf]
    %v3208 = vld [vmem:[%s8 + $0xe8] sm:$0xf]
    %v3209 = vld [vmem:[%s8 + $0xec] sm:$0xf]
    %v3210 = vld [vmem:[%s8 + $0xf0] sm:$0xf]
    %v3211 = vld [vmem:[%s8 + $0xf4] sm:$0xf]
    %v3212 = vld [vmem:[%s8 + $0xf8] sm:$0xf]
    %v3213 = vld [vmem:[%s8 + $0xfc] sm:$0xf]
    %v3214 = vld [vmem:[%s9] sm:$0x1]
    %v3216 = vlaneseq
    %v3217 = vshrl.u32 %v3216, 7
    %v3218 = vsub.s32 0, %v3217
    %v3219 = vrot.slane %v3214, %v3218
    %v3285 = vunpack.c.l.b16 %v3150
    %v3286 = vunpack.c.l.b16 %v3151
    %v3287 = vunpack.c.l.b16 %v3152
    %v3288 = vunpack.c.l.b16 %v3153
    %v3289 = vunpack.c.l.b16 %v3154
    %v3290 = vunpack.c.l.b16 %v3155
    %v3291 = vunpack.c.l.b16 %v3156
    %v3292 = vunpack.c.l.b16 %v3157
    %v3293 = vunpack.c.l.b16 %v3158
    %v3294 = vunpack.c.l.b16 %v3159
    %v3295 = vunpack.c.l.b16 %v3160
    %v3296 = vunpack.c.l.b16 %v3161
    %v3297 = vunpack.c.l.b16 %v3162
    %v3298 = vunpack.c.l.b16 %v3163
    %v3299 = vunpack.c.l.b16 %v3164
    %v3300 = vunpack.c.l.b16 %v3165
    %v3301 = vunpack.c.l.b16 %v3166
    %v3302 = vunpack.c.l.b16 %v3167
    %v3303 = vunpack.c.l.b16 %v3168
    %v3304 = vunpack.c.l.b16 %v3169
    %v3305 = vunpack.c.l.b16 %v3170
    %v3306 = vunpack.c.l.b16 %v3171
    %v3307 = vunpack.c.l.b16 %v3172
    %v3308 = vunpack.c.l.b16 %v3173
    %v3309 = vunpack.c.l.b16 %v3174
    %v3310 = vunpack.c.l.b16 %v3175
    %v3311 = vunpack.c.l.b16 %v3176
    %v3312 = vunpack.c.l.b16 %v3177
    %v3313 = vunpack.c.l.b16 %v3178
    %v3314 = vunpack.c.l.b16 %v3179
    %v3315 = vunpack.c.l.b16 %v3180
    %v3316 = vunpack.c.l.b16 %v3181
    %v3317 = vunpack.c.l.b16 %v3182
    %v3318 = vunpack.c.l.b16 %v3183
    %v3319 = vunpack.c.l.b16 %v3184
    %v3320 = vunpack.c.l.b16 %v3185
    %v3321 = vunpack.c.l.b16 %v3186
    %v3322 = vunpack.c.l.b16 %v3187
    %v3323 = vunpack.c.l.b16 %v3188
    %v3324 = vunpack.c.l.b16 %v3189
    %v3325 = vunpack.c.l.b16 %v3190
    %v3326 = vunpack.c.l.b16 %v3191
    %v3327 = vunpack.c.l.b16 %v3192
    %v3328 = vunpack.c.l.b16 %v3193
    %v3329 = vunpack.c.l.b16 %v3194
    %v3330 = vunpack.c.l.b16 %v3195
    %v3331 = vunpack.c.l.b16 %v3196
    %v3332 = vunpack.c.l.b16 %v3197
    %v3333 = vunpack.c.l.b16 %v3198
    %v3334 = vunpack.c.l.b16 %v3199
    %v3335 = vunpack.c.l.b16 %v3200
    %v3336 = vunpack.c.l.b16 %v3201
    %v3337 = vunpack.c.l.b16 %v3202
    %v3338 = vunpack.c.l.b16 %v3203
    %v3339 = vunpack.c.l.b16 %v3204
    %v3340 = vunpack.c.l.b16 %v3205
    %v3341 = vunpack.c.l.b16 %v3206
    %v3342 = vunpack.c.l.b16 %v3207
    %v3343 = vunpack.c.l.b16 %v3208
    %v3344 = vunpack.c.l.b16 %v3209
    %v3345 = vunpack.c.l.b16 %v3210
    %v3346 = vunpack.c.l.b16 %v3211
    %v3347 = vunpack.c.l.b16 %v3212
    %v3348 = vunpack.c.l.b16 %v3213
    %v3349 = vpack.c.b16 %v3286, %v3285
    %v3350 = vpack.c.b16 %v3288, %v3287
    %v3351 = vpack.c.b16 %v3290, %v3289
    %v3352 = vpack.c.b16 %v3292, %v3291
    %v3353 = vpack.c.b16 %v3294, %v3293
    %v3354 = vpack.c.b16 %v3296, %v3295
    %v3355 = vpack.c.b16 %v3298, %v3297
    %v3356 = vpack.c.b16 %v3300, %v3299
    %v3357 = vpack.c.b16 %v3302, %v3301
    %v3358 = vpack.c.b16 %v3304, %v3303
    %v3359 = vpack.c.b16 %v3306, %v3305
    %v3360 = vpack.c.b16 %v3308, %v3307
    %v3361 = vpack.c.b16 %v3310, %v3309
    %v3362 = vpack.c.b16 %v3312, %v3311
    %v3363 = vpack.c.b16 %v3314, %v3313
    %v3364 = vpack.c.b16 %v3316, %v3315
    %v3365 = vpack.c.b16 %v3318, %v3317
    %v3366 = vpack.c.b16 %v3320, %v3319
    %v3367 = vpack.c.b16 %v3322, %v3321
    %v3368 = vpack.c.b16 %v3324, %v3323
    %v3369 = vpack.c.b16 %v3326, %v3325
    %v3370 = vpack.c.b16 %v3328, %v3327
    %v3371 = vpack.c.b16 %v3330, %v3329
    %v3372 = vpack.c.b16 %v3332, %v3331
    %v3373 = vpack.c.b16 %v3334, %v3333
    %v3374 = vpack.c.b16 %v3336, %v3335
    %v3375 = vpack.c.b16 %v3338, %v3337
    %v3376 = vpack.c.b16 %v3340, %v3339
    %v3377 = vpack.c.b16 %v3342, %v3341
    %v3378 = vpack.c.b16 %v3344, %v3343
    %v3379 = vpack.c.b16 %v3346, %v3345
    %v3380 = vpack.c.b16 %v3348, %v3347
    %3413 = vmatprep.subr.bf16.mxu0 0
    %3414 = vmatpush1.bf16.msra.mxu0 %v3349
    %3415 = vmatprep.subr.bf16.mxu0 0
    %3416 = vmatpush1.bf16.msra.mxu0 %v3350
    %3417 = vmatprep.subr.bf16.mxu0 0
    %3418 = vmatpush1.bf16.msra.mxu0 %v3351
    %3419 = vmatprep.subr.bf16.mxu0 0
    %3420 = vmatpush1.bf16.msra.mxu0 %v3352
    %3421 = vmatprep.subr.bf16.mxu0 0
    %3422 = vmatpush1.bf16.msra.mxu0 %v3353
    %3423 = vmatprep.subr.bf16.mxu0 0
    %3424 = vmatpush1.bf16.msra.mxu0 %v3354
    %3425 = vmatprep.subr.bf16.mxu0 0
    %3426 = vmatpush1.bf16.msra.mxu0 %v3355
    %3427 = vmatprep.subr.bf16.mxu0 0
    %3428 = vmatpush1.bf16.msra.mxu0 %v3356
    %3429 = vmatprep.subr.bf16.mxu0 0
    %3430 = vmatpush1.bf16.msra.mxu0 %v3357
    %3431 = vmatprep.subr.bf16.mxu0 0
    %3432 = vmatpush1.bf16.msra.mxu0 %v3358
    %3433 = vmatprep.subr.bf16.mxu0 0
    %3434 = vmatpush1.bf16.msra.mxu0 %v3359
    %3435 = vmatprep.subr.bf16.mxu0 0
    %3436 = vmatpush1.bf16.msra.mxu0 %v3360
    %3437 = vmatprep.subr.bf16.mxu0 0
    %3438 = vmatpush1.bf16.msra.mxu0 %v3361
    %3439 = vmatprep.subr.bf16.mxu0 0
    %3440 = vmatpush1.bf16.msra.mxu0 %v3362
    %3441 = vmatprep.subr.bf16.mxu0 0
    %3442 = vmatpush1.bf16.msra.mxu0 %v3363
    %3443 = vmatprep.subr.bf16.mxu0 0
    %3444 = vmatpush1.bf16.msra.mxu0 %v3364
    %3445 = vmatprep.mubr.bf16.mxu0 %v3147
    %3446 = vmatmul.mubr.bf16.gmra.mrb[0].mxu0 %v3146
    %v3447 = vpop.f32.mrb[0].mxu0
    %v3448 = vadd.f32 %v3219, %v3447
    %v3449 = vpop.f32.mrb[0].mxu0
    %v3450 = vpop.f32.mrb[0].mxu0
    %v3451 = vpop.f32.mrb[0].mxu0
    %3452 = vdwg.mxu0
    %3453 = vmatprep.subr.bf16.mxu0 0
    %3454 = vmatpush1.bf16.msra.mxu0 %v3365
    %3455 = vmatprep.subr.bf16.mxu0 0
    %3456 = vmatpush1.bf16.msra.mxu0 %v3366
    %3457 = vmatprep.subr.bf16.mxu0 0
    %3458 = vmatpush1.bf16.msra.mxu0 %v3367
    %3459 = vmatprep.subr.bf16.mxu0 0
    %3460 = vmatpush1.bf16.msra.mxu0 %v3368
    %3461 = vmatprep.subr.bf16.mxu0 0
    %3462 = vmatpush1.bf16.msra.mxu0 %v3369
    %3463 = vmatprep.subr.bf16.mxu0 0
    %3464 = vmatpush1.bf16.msra.mxu0 %v3370
    %3465 = vmatprep.subr.bf16.mxu0 0
    %3466 = vmatpush1.bf16.msra.mxu0 %v3371
    %3467 = vmatprep.subr.bf16.mxu0 0
    %3468 = vmatpush1.bf16.msra.mxu0 %v3372
    %3469 = vmatprep.subr.bf16.mxu0 0
    %3470 = vmatpush1.bf16.msra.mxu0 %v3373
    %3471 = vmatprep.subr.bf16.mxu0 0
    %3472 = vmatpush1.bf16.msra.mxu0 %v3374
    %3473 = vmatprep.subr.bf16.mxu0 0
    %3474 = vmatpush1.bf16.msra.mxu0 %v3375
    %3475 = vmatprep.subr.bf16.mxu0 0
    %3476 = vmatpush1.bf16.msra.mxu0 %v3376
    %3477 = vmatprep.subr.bf16.mxu0 0
    %3478 = vmatpush1.bf16.msra.mxu0 %v3377
    %3479 = vmatprep.subr.bf16.mxu0 0
    %3480 = vmatpush1.bf16.msra.mxu0 %v3378
    %3481 = vmatprep.subr.bf16.mxu0 0
    %3482 = vmatpush1.bf16.msra.mxu0 %v3379
    %3483 = vmatprep.subr.bf16.mxu0 0
    %3484 = vmatpush1.bf16.msra.mxu0 %v3380
    %3485 = vmatprep.mubr.bf16.mxu0 %v3149
    %3486 = vmatmul.mubr.bf16.gmra.mrb[0].mxu0 %v3148
    %v3487 = vpop.f32.mrb[0].mxu0
    %v3488 = vadd.f32 %v3448, %v3487
    %v3489 = vpop.f32.mrb[0].mxu0
    %v3490 = vpop.f32.mrb[0].mxu0
    %v3491 = vpop.f32.mrb[0].mxu0
    %3492 = vdwg.mxu0
    %vm3493 = vcmask 9216
    %3494 = vst.msk [vmem:[#allocation2] sm:$0x3] %vm3493, %v3488
    // Predicated region
    $region42: #{knowledge_distiller_forward.1} parent=1 // pred_check
      _
    $region43: #{knowledge_distiller_forward.1} parent=1 // pred_check_branch
      %3496 = sbr.rel (0) target = $region45
    $region44: #{knowledge_distiller_forward.1} parent=1 // pred_region
      _
    $region45: #{knowledge_distiller_forward.1} parent=1 // pred_fallthru
      _
    // Predicated region
    $region46: #{knowledge_distiller_forward.1} parent=1 // pred_check
      _
    $region47: #{knowledge_distiller_forward.1} parent=1 // pred_check_branch
      %3498 = sbr.rel (0) target = $region49
    $region48: #{knowledge_distiller_forward.1} parent=1 // pred_region
      %s3500 = ssub.s32 32, 32
      %3501 = vsyncadd [#allocation3], %s3500
      %s3503 = sshll.u32 [#allocation2], 4
      %s3504 = int_to_ptr.vmem [resolvable:$true] %s3503
      %3506 = dma.vmem_to_hbm [thread:$0]  %s3504, 32, %s11, [#allocation3]
    $region49: #{knowledge_distiller_forward.1} parent=1 // pred_fallthru
      _
    // Predicated region
    $region50: #{knowledge_distiller_forward.1} parent=1 // pred_check
      _
    $region51: #{knowledge_distiller_forward.1} parent=1 // pred_check_branch
      %3508 = sbr.rel (0) target = $region53
    $region52: #{knowledge_distiller_forward.1} parent=1 // pred_region
      _
    $region53: #{knowledge_distiller_forward.1} parent=1 // pred_fallthru
      _
    // Predicated region
    $region54: #{knowledge_distiller_forward.1} parent=1 // pred_check
      _
    $region55: #{knowledge_distiller_forward.1} parent=1 // pred_check_branch
      %3510 = sbr.rel (0) target = $region57
    $region56: #{knowledge_distiller_forward.1} parent=1 // pred_region
      %3511 = dma.done [#allocation3], 32
    $region57: #{knowledge_distiller_forward.1} parent=1 // pred_fallthru
      _
    %3512 = vsyncpa [#allocation3], 1

</llo_original>
